<compile_context>
chip_gen: v6e
topology: v6e:2x2x1
jax: 0.10.0
libtpu: 0.0.40
codegen_flags: <defaults>
</compile_context>

<pallas_src>
import jax
import jax.numpy as jnp
from jax.experimental import pallas as pl
from jax.experimental.pallas import tpu as pltpu

LEAKY_SLOPE = 0.01


def _leaky(x):
    return jnp.where(x >= 0, x, LEAKY_SLOPE * x)


# ---------------------------------------------------------------------------
# Fused per-layer Pallas kernel (router + MoGIN conv + loss partial sums)
# ---------------------------------------------------------------------------
def mogin_layer_kernel(eps_ref, we1_ref, be1_ref, we2_ref, be2_ref,      # SMEM scalars
                       ef_ref, mew_ref, xf_ref, xt_ref,                  # VMEM tiles
                       w1_ref, b1_ref, w2_ref, b2_ref,                   # VMEM resident
                       out_ref, psum_ref, psq_ref):                      # outputs
    He = we1_ref.shape[0]
    K = we2_ref.shape[1]

    ef = ef_ref[...]                        # (TM, N) routing feature (graph-normed dist)
    mew = mew_ref[...]                      # (TM, N) mask * edge_weight
    # Valid edges always have edge_weight > 0 (dist < cutoff, self loops incl.),
    # so the validity mask can be recovered from mask*edge_weight directly.
    mask = jnp.where(mew > 0.0, 1.0, 0.0)

    # ---- edge routing MLP: 1 -> He -> K.  Contraction dim is 1, so this is
    # pure VPU broadcast multiply-add with scalar weights from SMEM (no MXU). ---
    logits = [jnp.zeros_like(ef) + be2_ref[k] for k in range(K)]
    for h in range(He):
        t = ef * we1_ref[h] + be1_ref[h]
        t = jnp.where(t >= 0.0, t, LEAKY_SLOPE * t)
        for k in range(K):
            logits[k] = logits[k] + t * we2_ref[h, k]

    m = logits[0]
    for k in range(1, K):
        m = jnp.maximum(m, logits[k])
    s = jnp.exp(logits[0] - m)
    for k in range(1, K):
        s = s + jnp.exp(logits[k] - m)
    inv = pl.reciprocal(s, approx=True)     # softmax denominator on the EUP slot

    # ---- aggregation + expert node MLPs ------------------------------------
    x_f32 = xf_ref[...]                     # (N, D) all node features (resident RHS)
    x_bf = x_f32.astype(jnp.bfloat16)       # bf16 operand for the MXU aggregation
    x_t = xt_ref[...]                       # (TM, D) this tile's node features

    def node_mlp(k, hin):
        z = jnp.dot(hin, w1_ref[k], preferred_element_type=jnp.float32) + b1_ref[k]
        z = jnp.where(z >= 0.0, z, LEAKY_SLOPE * z)
        return jnp.dot(z, w2_ref[k], preferred_element_type=jnp.float32) + b2_ref[k]

    # shared branch (index 0): adjacency weights = mask * edge_weight
    h0 = jnp.dot(mew.astype(jnp.bfloat16), x_bf, preferred_element_type=jnp.float32)
    acc = node_mlp(0, h0 + x_t * (1.0 + eps_ref[0]))

    lane = jax.lax.broadcasted_iota(jnp.int32, (1, K), 1)
    psum = jnp.zeros((1, K), jnp.float32)
    psq = jnp.zeros((1, 1), jnp.float32)
    for k in range(K):
        p = jnp.exp(logits[k] - m) * inv    # recompute exp (EUP) -> smaller live set
        pm = p * mask                       # masked routing probs (for the loss)
        sk = jnp.sum(jnp.sum(pm, axis=1, keepdims=True), axis=0, keepdims=True)
        psum = psum + jnp.where(lane == k, sk, 0.0)
        psq = psq + jnp.sum(jnp.sum(pm * pm, axis=1, keepdims=True),
                            axis=0, keepdims=True)
        gated = p * mew                     # probs * mask * edge_weight
        hk = jnp.dot(gated.astype(jnp.bfloat16), x_bf,
                     preferred_element_type=jnp.float32)
        acc = acc + node_mlp(k + 1, hk + x_t * (1.0 + eps_ref[k + 1]))

    out_ref[...] = acc.astype(out_ref.dtype)
    psum_ref[...] = psum.reshape(psum_ref.shape)
    psq_ref[...] = psq.reshape(psq_ref.shape)


def _row_tile(n, cap=128):
    # Largest row tile that divides N, is a multiple of 8 and keeps the
    # per-tile VMEM footprint bounded (safe under the default scoped VMEM
    # limit on v5e/v6e and within v7x's 64 MiB physical VMEM).
    cap = max(8, min(cap, ((1 << 21) // max(4 * n, 1)) // 8 * 8))
    best = None
    t = 8
    while t <= min(cap, n):
        if n % t == 0:
            best = t
        t += 8
    return best if best is not None else n


def mogin_layer(ef, mew, x, cp):
    N = ef.shape[0]
    D = x.shape[1]
    Kp1, _, H = cp["w1"].shape
    Dout = cp["w2"].shape[2]
    K = Kp1 - 1
    TM = _row_tile(N)
    G = N // TM

    smem = pl.BlockSpec(memory_space=pltpu.MemorySpace.SMEM)
    grid_spec = pltpu.PrefetchScalarGridSpec(
        num_scalar_prefetch=0,
        grid=(G,),
        in_specs=[
            smem, smem, smem, smem, smem,                        # eps, we1, be1, we2, be2
            pl.BlockSpec((TM, N), lambda i: (i, 0)),             # routing feature rows
            pl.BlockSpec((TM, N), lambda i: (i, 0)),             # mask*edge_weight rows
            pl.BlockSpec((N, D), lambda i: (0, 0)),              # x (resident, matmul RHS)
            pl.BlockSpec((TM, D), lambda i: (i, 0)),             # x rows (self term)
            pl.BlockSpec((Kp1, D, H), lambda i: (0, 0, 0)),      # node MLP w1 stack
            pl.BlockSpec((Kp1, 1, H), lambda i: (0, 0, 0)),      # node MLP b1 stack
            pl.BlockSpec((Kp1, H, Dout), lambda i: (0, 0, 0)),   # node MLP w2 stack
            pl.BlockSpec((Kp1, 1, Dout), lambda i: (0, 0, 0)),   # node MLP b2 stack
        ],
        out_specs=[
            pl.BlockSpec((TM, Dout), lambda i: (i, 0)),          # layer output rows
            pl.BlockSpec((1, 1, K), lambda i: (i, 0, 0)),        # per-tile sum(masked probs)
            pl.BlockSpec((1, 1, 1), lambda i: (i, 0, 0)),        # per-tile sum(probs^2)
        ],
    )
    return pl.pallas_call(
        mogin_layer_kernel,
        out_shape=(jax.ShapeDtypeStruct((N, Dout), jnp.float32),
                   jax.ShapeDtypeStruct((G, 1, K), jnp.float32),
                   jax.ShapeDtypeStruct((G, 1, 1), jnp.float32)),
        grid_spec=grid_spec,
        compiler_params=pltpu.CompilerParams(
            dimension_semantics=("parallel",)),   # shards row tiles across v7x's 2 TCs
    )(cp["eps_all"], cp["we1"], cp["be1"], cp["we2"], cp["be2"],
      ef, mew, x, x, cp["w1"], cp["b1"], cp["w2"], cp["b2"])


# ---------------------------------------------------------------------------
# Plain-JAX glue: GraphNorm, load-balancing loss, graph construction, readout
# ---------------------------------------------------------------------------
def _segment_sum(x, seg, num_segments):
    return jnp.zeros((num_segments,) + x.shape[1:], x.dtype).at[seg].add(x)


def graph_norm(x, batch, num_graphs, weight, bias, mean_scale, eps=1e-5):
    ones = jnp.ones((x.shape[0],), x.dtype)
    cnt = jnp.maximum(_segment_sum(ones, batch, num_graphs), 1.0)
    mean = _segment_sum(x, batch, num_graphs) / cnt[:, None]
    out = x - mean[batch] * mean_scale
    var = _segment_sum(out * out, batch, num_graphs) / cnt[:, None]
    return weight * out / jnp.sqrt(var[batch] + eps) + bias


def edge_graph_norm(dist, mask_f, batch, num_graphs, weight, bias, mean_scale,
                    eps=1e-5):
    # GraphNorm(1) over valid edges, grouped by the source node's graph,
    # evaluated for every (target, source) pair in lane-dense (N, N) layout.
    onehot = (batch[None, :] == jnp.arange(num_graphs)[:, None]).astype(jnp.float32)
    cnt = jnp.maximum(onehot @ jnp.sum(mask_f, axis=0), 1.0)             # (G,)
    mean = (onehot @ jnp.sum(mask_f * dist, axis=0)) / cnt               # (G,)
    out = dist - mean[batch][None, :] * mean_scale
    var = (onehot @ jnp.sum(mask_f * out * out, axis=0)) / cnt
    return weight * out / jnp.sqrt(var[batch][None, :] + eps) + bias


def load_balancing_loss(psum_tiles, psq_tiles, n_valid, num_experts,
                        alpha, beta, threshold):
    if alpha + beta == 0:
        return 0.0
    # NOTE: threshold == 1 would divide by zero below (same as the reference);
    # n_valid > 0 is guaranteed because self loops are always present.
    frac = 1.0 / num_experts
    mean_per_expert = jnp.sum(psum_tiles.reshape(-1, num_experts), axis=0) / n_valid
    expert_bias_loss = (jnp.sum(mean_per_expert ** 2) - frac) * (1.0 / (1.0 - frac))
    uncertainty_loss = 1.0 - jnp.sum(psq_tiles) / n_valid
    t = (alpha + beta) * threshold
    unfiltered = alpha * expert_bias_loss + beta * uncertainty_loss
    return (jnp.maximum(unfiltered, t) - t) * ((alpha + beta) / (alpha + beta - t))


def init_params(key, node_dimses, edge_dimses):
    def lin(k, fi, fo):
        return jax.random.normal(k, (fi, fo), jnp.float32) / jnp.sqrt(float(fi))

    D0 = node_dimses[0][0]
    key, k_emb = jax.random.split(key)
    params = {
        "atom_emb": jax.random.normal(k_emb, (200, D0), jnp.float32) * 0.1,
        "dist_norm": {"w": jnp.ones(()), "b": jnp.zeros(()), "ms": jnp.ones(())},
        "alpha": jnp.ones((len(node_dimses),), jnp.float32),   # constant(alpha, 1.0)
        "convs": [],
        "norms": [],
    }
    for nd, ed in zip(node_dimses, edge_dimses):
        Din, H, Dout = nd[0], nd[1], nd[-1]
        Ein, He, K = ed[0], ed[1], ed[-1]
        assert Ein == 1, "edge feature is the scalar (normalised) distance"
        key, ke1, ke2, kn1, kn2, kb1, kb2 = jax.random.split(key, 7)
        cp = {
            "we1": jax.random.normal(ke1, (He,), jnp.float32),
            "be1": jax.random.normal(jax.random.fold_in(ke1, 1), (He,), jnp.float32) * 0.05,
            "we2": lin(ke2, He, K),
            "be2": jax.random.normal(jax.random.fold_in(ke2, 1), (K,), jnp.float32) * 0.05,
            # index 0 = shared_node_mlp, 1..K = expert node MLPs
            "w1": jnp.stack([lin(jax.random.fold_in(kn1, e), Din, H) for e in range(K + 1)]),
            "b1": jax.random.normal(kb1, (K + 1, 1, H), jnp.float32) * 0.05,
            "w2": jnp.stack([lin(jax.random.fold_in(kn2, e), H, Dout) for e in range(K + 1)]),
            "b2": jax.random.normal(kb2, (K + 1, 1, Dout), jnp.float32) * 0.05,
            "eps_all": jnp.zeros((K + 1,), jnp.float32),   # eps0 / eps reset to 0.0
        }
        params["convs"].append(cp)
        params["norms"].append({"w": jnp.ones((Dout,)), "b": jnp.zeros((Dout,)),
                                "ms": jnp.ones((Dout,))})
    return params


def mogin9_forward(params, pos, batch, atom_type, num_graphs, cutoff,
                   routing_alpha=0.1, routing_beta=0.1, routing_threshold=0.1):
    N = pos.shape[0]
    # --- RadiusInteractionGraph, dense masked form, with self loops ---------
    diff = pos[:, None, :] - pos[None, :, :]
    # TODO(synk): sqrt(0) on the diagonal gives NaN gradients if this is ever
    # differentiated; the forward value is exact.
    dist = jnp.sqrt(jnp.sum(diff ** 2, axis=-1))                     # (N, N)
    same_graph = batch[:, None] == batch[None, :]
    eye = jnp.eye(N, dtype=bool)
    # TODO(synk): radius_graph's max_num_neighbors cap is not enforced (never binds here).
    adj_mask = (same_graph & (dist < cutoff) & (~eye)) | eye
    mask_f = adj_mask.astype(jnp.float32)
    n_valid = jnp.sum(mask_f)

    dn = params["dist_norm"]
    edge_feat = edge_graph_norm(dist, mask_f, batch, num_graphs,
                                dn["w"], dn["b"], dn["ms"])          # (N, N)
    mew = mask_f * (cutoff - dist) / cutoff                          # mask * edge_weight

    h = params["atom_emb"][atom_type]                                # (N, D)
    total_loss = 0.0
    n_convs = len(params["convs"])

    for i, cp in enumerate(params["convs"]):
        K = cp["we2"].shape[1]
        h_, psum, psq = mogin_layer(edge_feat, mew, h, cp)
        loss = load_balancing_loss(psum, psq, n_valid, K,
                                   routing_alpha, routing_beta, routing_threshold)
        total_loss = total_loss + loss / n_convs
        if i + 1 < n_convs:
            # TODO(synk): GraphNorm + LeakyReLU between layers stays in XLA
            # (needs global per-graph statistics).
            np_ = params["norms"][i]
            h_ = graph_norm(h_, batch, num_graphs, np_["w"], np_["b"], np_["ms"])
            h_ = _leaky(h_)
        h = h + params["alpha"][i] * h_

    # readout: per-graph mean over nodes, then mean over the feature dim
    ones = jnp.ones((N,), jnp.float32)
    cnt = jnp.maximum(_segment_sum(ones, batch, num_graphs), 1.0)
    hg = _segment_sum(h, batch, num_graphs) / cnt[:, None]
    return hg.mean(-1), total_loss


# ---------------------------------------------------------------------------
if __name__ == "__main__":
    key = jax.random.PRNGKey(0)

    # model config: 2 conv layers, node dims [32, 32, 32], edge dims [1, 16, 4]
    node_dimses = [[32, 32, 32], [32, 32, 32]]
    edge_dimses = [[1, 16, 4], [1, 16, 4]]
    cutoff = 2.5

    N = 16                       # nodes total, 2 graphs of 8 nodes
    num_graphs = 2

    key, kp, kpos, katom = jax.random.split(key, 4)
    params = init_params(kp, node_dimses, edge_dimses)

    pos = jax.random.uniform(kpos, (N, 3), jnp.float32, minval=0.0, maxval=3.0)
    batch = jnp.concatenate([jnp.zeros((N // 2,), jnp.int32),
                             jnp.ones((N - N // 2,), jnp.int32)])
    atom_type = jax.random.randint(katom, (N,), 0, 200)

    out, lb_loss = mogin9_forward(params, pos, batch, atom_type, num_graphs, cutoff)
    jax.block_until_ready(out)
    jax.block_until_ready(lb_loss)
    print("KERNEL_OK")
</pallas_src>

<mosaic_0001>
module attributes {stable_mosaic.version = 11 : i64} {
  func.func @mogin_layer_kernel(%arg0: i32, %arg1: memref<5xf32, #tpu.memory_space<smem>>, %arg2: memref<16xf32, #tpu.memory_space<smem>>, %arg3: memref<16xf32, #tpu.memory_space<smem>>, %arg4: memref<16x4xf32, #tpu.memory_space<smem>>, %arg5: memref<4xf32, #tpu.memory_space<smem>>, %arg6: memref<16x16xf32, #tpu.memory_space<vmem>>, %arg7: memref<16x16xf32, #tpu.memory_space<vmem>>, %arg8: memref<16x32xf32, #tpu.memory_space<vmem>>, %arg9: memref<16x32xf32, #tpu.memory_space<vmem>>, %arg10: memref<5x32x32xf32, #tpu.memory_space<vmem>>, %arg11: memref<5x1x32xf32, #tpu.memory_space<vmem>>, %arg12: memref<5x32x32xf32, #tpu.memory_space<vmem>>, %arg13: memref<5x1x32xf32, #tpu.memory_space<vmem>>, %arg14: memref<16x32xf32, #tpu.memory_space<vmem>>, %arg15: memref<1x1x4xf32, #tpu.memory_space<vmem>>, %arg16: memref<1x1x1xf32, #tpu.memory_space<vmem>>) attributes {dimension_semantics = [#tpu.dimension_semantics<parallel>], iteration_bounds = array<i64: 1>, scalar_prefetch = 0 : i64, scratch_operands = 0 : i64, tpu.core_type = #tpu.core_type<tc>, window_params = [{transform_indices = @transform_0, window_bounds = array<i64: 5>}, {transform_indices = @transform_1, window_bounds = array<i64: 16>}, {transform_indices = @transform_2, window_bounds = array<i64: 16>}, {transform_indices = @transform_3, window_bounds = array<i64: 16, 4>}, {transform_indices = @transform_4, window_bounds = array<i64: 4>}, {transform_indices = @transform_5, window_bounds = array<i64: 16, 16>}, {transform_indices = @transform_6, window_bounds = array<i64: 16, 16>}, {pipeline_mode = #tpu.pipeline_mode<synchronous>, transform_indices = @transform_7, window_bounds = array<i64: 16, 32>}, {transform_indices = @transform_8, window_bounds = array<i64: 16, 32>}, {pipeline_mode = #tpu.pipeline_mode<synchronous>, transform_indices = @transform_9, window_bounds = array<i64: 5, 32, 32>}, {pipeline_mode = #tpu.pipeline_mode<synchronous>, transform_indices = @transform_10, window_bounds = array<i64: 5, 1, 32>}, {pipeline_mode = #tpu.pipeline_mode<synchronous>, transform_indices = @transform_11, window_bounds = array<i64: 5, 32, 32>}, {pipeline_mode = #tpu.pipeline_mode<synchronous>, transform_indices = @transform_12, window_bounds = array<i64: 5, 1, 32>}, {transform_indices = @transform_13, window_bounds = array<i64: 16, 32>}, {transform_indices = @transform_14, window_bounds = array<i64: 1, 1, 4>}, {transform_indices = @transform_15, window_bounds = array<i64: 1, 1, 1>}]} {
    %c0 = arith.constant 0 : index
    %c0_0 = arith.constant 0 : index
    %0 = vector.load %arg6[%c0, %c0_0] : memref<16x16xf32, #tpu.memory_space<vmem>>, vector<16x16xf32>
    %c0_1 = arith.constant 0 : index
    %c0_2 = arith.constant 0 : index
    %1 = vector.load %arg7[%c0_1, %c0_2] : memref<16x16xf32, #tpu.memory_space<vmem>>, vector<16x16xf32>
    %cst = arith.constant 0.000000e+00 : f32
    %2 = vector.broadcast %cst : f32 to vector<16x16xf32>
    %3 = arith.cmpf ogt, %1, %2 : vector<16x16xf32>
    %cst_3 = arith.constant 1.000000e+00 : f32
    %cst_4 = arith.constant 0.000000e+00 : f32
    %4 = vector.broadcast %cst_3 : f32 to vector<16x16xf32>
    %5 = vector.broadcast %cst_4 : f32 to vector<16x16xf32>
    %6 = arith.select %3, %4, %5 : vector<16x16xi1>, vector<16x16xf32>
    %cst_5 = arith.constant 0.000000e+00 : f32
    %7 = vector.broadcast %cst_5 : f32 to vector<16x16xf32>
    %c0_6 = arith.constant 0 : index
    %8 = memref.load %arg5[%c0_6] : memref<4xf32, #tpu.memory_space<smem>>
    %9 = vector.broadcast %8 : f32 to vector<16x16xf32>
    %10 = arith.addf %7, %9 : vector<16x16xf32>
    %cst_7 = arith.constant 0.000000e+00 : f32
    %11 = vector.broadcast %cst_7 : f32 to vector<16x16xf32>
    %c1 = arith.constant 1 : index
    %12 = memref.load %arg5[%c1] : memref<4xf32, #tpu.memory_space<smem>>
    %13 = vector.broadcast %12 : f32 to vector<16x16xf32>
    %14 = arith.addf %11, %13 : vector<16x16xf32>
    %cst_8 = arith.constant 0.000000e+00 : f32
    %15 = vector.broadcast %cst_8 : f32 to vector<16x16xf32>
    %c2 = arith.constant 2 : index
    %16 = memref.load %arg5[%c2] : memref<4xf32, #tpu.memory_space<smem>>
    %17 = vector.broadcast %16 : f32 to vector<16x16xf32>
    %18 = arith.addf %15, %17 : vector<16x16xf32>
    %cst_9 = arith.constant 0.000000e+00 : f32
    %19 = vector.broadcast %cst_9 : f32 to vector<16x16xf32>
    %c3 = arith.constant 3 : index
    %20 = memref.load %arg5[%c3] : memref<4xf32, #tpu.memory_space<smem>>
    %21 = vector.broadcast %20 : f32 to vector<16x16xf32>
    %22 = arith.addf %19, %21 : vector<16x16xf32>
    %c0_10 = arith.constant 0 : index
    %23 = memref.load %arg2[%c0_10] : memref<16xf32, #tpu.memory_space<smem>>
    %24 = vector.broadcast %23 : f32 to vector<16x16xf32>
    %25 = arith.mulf %0, %24 : vector<16x16xf32>
    %c0_11 = arith.constant 0 : index
    %26 = memref.load %arg3[%c0_11] : memref<16xf32, #tpu.memory_space<smem>>
    %27 = vector.broadcast %26 : f32 to vector<16x16xf32>
    %28 = arith.addf %25, %27 : vector<16x16xf32>
    %cst_12 = arith.constant 0.000000e+00 : f32
    %29 = vector.broadcast %cst_12 : f32 to vector<16x16xf32>
    %30 = arith.cmpf oge, %28, %29 : vector<16x16xf32>
    %cst_13 = arith.constant 0.00999999977 : f32
    %31 = vector.broadcast %cst_13 : f32 to vector<16x16xf32>
    %32 = arith.mulf %31, %28 : vector<16x16xf32>
    %33 = arith.select %30, %28, %32 : vector<16x16xi1>, vector<16x16xf32>
    %c0_14 = arith.constant 0 : index
    %c0_15 = arith.constant 0 : index
    %34 = memref.load %arg4[%c0_14, %c0_15] : memref<16x4xf32, #tpu.memory_space<smem>>
    %35 = vector.broadcast %34 : f32 to vector<16x16xf32>
    %36 = arith.mulf %33, %35 : vector<16x16xf32>
    %37 = arith.addf %10, %36 : vector<16x16xf32>
    %c0_16 = arith.constant 0 : index
    %c1_17 = arith.constant 1 : index
    %38 = memref.load %arg4[%c0_16, %c1_17] : memref<16x4xf32, #tpu.memory_space<smem>>
    %39 = vector.broadcast %38 : f32 to vector<16x16xf32>
    %40 = arith.mulf %33, %39 : vector<16x16xf32>
    %41 = arith.addf %14, %40 : vector<16x16xf32>
    %c0_18 = arith.constant 0 : index
    %c2_19 = arith.constant 2 : index
    %42 = memref.load %arg4[%c0_18, %c2_19] : memref<16x4xf32, #tpu.memory_space<smem>>
    %43 = vector.broadcast %42 : f32 to vector<16x16xf32>
    %44 = arith.mulf %33, %43 : vector<16x16xf32>
    %45 = arith.addf %18, %44 : vector<16x16xf32>
    %c0_20 = arith.constant 0 : index
    %c3_21 = arith.constant 3 : index
    %46 = memref.load %arg4[%c0_20, %c3_21] : memref<16x4xf32, #tpu.memory_space<smem>>
    %47 = vector.broadcast %46 : f32 to vector<16x16xf32>
    %48 = arith.mulf %33, %47 : vector<16x16xf32>
    %49 = arith.addf %22, %48 : vector<16x16xf32>
    %c1_22 = arith.constant 1 : index
    %50 = memref.load %arg2[%c1_22] : memref<16xf32, #tpu.memory_space<smem>>
    %51 = vector.broadcast %50 : f32 to vector<16x16xf32>
    %52 = arith.mulf %0, %51 : vector<16x16xf32>
    %c1_23 = arith.constant 1 : index
    %53 = memref.load %arg3[%c1_23] : memref<16xf32, #tpu.memory_space<smem>>
    %54 = vector.broadcast %53 : f32 to vector<16x16xf32>
    %55 = arith.addf %52, %54 : vector<16x16xf32>
    %cst_24 = arith.constant 0.000000e+00 : f32
    %56 = vector.broadcast %cst_24 : f32 to vector<16x16xf32>
    %57 = arith.cmpf oge, %55, %56 : vector<16x16xf32>
    %cst_25 = arith.constant 0.00999999977 : f32
    %58 = vector.broadcast %cst_25 : f32 to vector<16x16xf32>
    %59 = arith.mulf %58, %55 : vector<16x16xf32>
    %60 = arith.select %57, %55, %59 : vector<16x16xi1>, vector<16x16xf32>
    %c1_26 = arith.constant 1 : index
    %c0_27 = arith.constant 0 : index
    %61 = memref.load %arg4[%c1_26, %c0_27] : memref<16x4xf32, #tpu.memory_space<smem>>
    %62 = vector.broadcast %61 : f32 to vector<16x16xf32>
    %63 = arith.mulf %60, %62 : vector<16x16xf32>
    %64 = arith.addf %37, %63 : vector<16x16xf32>
    %c1_28 = arith.constant 1 : index
    %c1_29 = arith.constant 1 : index
    %65 = memref.load %arg4[%c1_28, %c1_29] : memref<16x4xf32, #tpu.memory_space<smem>>
    %66 = vector.broadcast %65 : f32 to vector<16x16xf32>
    %67 = arith.mulf %60, %66 : vector<16x16xf32>
    %68 = arith.addf %41, %67 : vector<16x16xf32>
    %c1_30 = arith.constant 1 : index
    %c2_31 = arith.constant 2 : index
    %69 = memref.load %arg4[%c1_30, %c2_31] : memref<16x4xf32, #tpu.memory_space<smem>>
    %70 = vector.broadcast %69 : f32 to vector<16x16xf32>
    %71 = arith.mulf %60, %70 : vector<16x16xf32>
    %72 = arith.addf %45, %71 : vector<16x16xf32>
    %c1_32 = arith.constant 1 : index
    %c3_33 = arith.constant 3 : index
    %73 = memref.load %arg4[%c1_32, %c3_33] : memref<16x4xf32, #tpu.memory_space<smem>>
    %74 = vector.broadcast %73 : f32 to vector<16x16xf32>
    %75 = arith.mulf %60, %74 : vector<16x16xf32>
    %76 = arith.addf %49, %75 : vector<16x16xf32>
    %c2_34 = arith.constant 2 : index
    %77 = memref.load %arg2[%c2_34] : memref<16xf32, #tpu.memory_space<smem>>
    %78 = vector.broadcast %77 : f32 to vector<16x16xf32>
    %79 = arith.mulf %0, %78 : vector<16x16xf32>
    %c2_35 = arith.constant 2 : index
    %80 = memref.load %arg3[%c2_35] : memref<16xf32, #tpu.memory_space<smem>>
    %81 = vector.broadcast %80 : f32 to vector<16x16xf32>
    %82 = arith.addf %79, %81 : vector<16x16xf32>
    %cst_36 = arith.constant 0.000000e+00 : f32
    %83 = vector.broadcast %cst_36 : f32 to vector<16x16xf32>
    %84 = arith.cmpf oge, %82, %83 : vector<16x16xf32>
    %cst_37 = arith.constant 0.00999999977 : f32
    %85 = vector.broadcast %cst_37 : f32 to vector<16x16xf32>
    %86 = arith.mulf %85, %82 : vector<16x16xf32>
    %87 = arith.select %84, %82, %86 : vector<16x16xi1>, vector<16x16xf32>
    %c2_38 = arith.constant 2 : index
    %c0_39 = arith.constant 0 : index
    %88 = memref.load %arg4[%c2_38, %c0_39] : memref<16x4xf32, #tpu.memory_space<smem>>
    %89 = vector.broadcast %88 : f32 to vector<16x16xf32>
    %90 = arith.mulf %87, %89 : vector<16x16xf32>
    %91 = arith.addf %64, %90 : vector<16x16xf32>
    %c2_40 = arith.constant 2 : index
    %c1_41 = arith.constant 1 : index
    %92 = memref.load %arg4[%c2_40, %c1_41] : memref<16x4xf32, #tpu.memory_space<smem>>
    %93 = vector.broadcast %92 : f32 to vector<16x16xf32>
    %94 = arith.mulf %87, %93 : vector<16x16xf32>
    %95 = arith.addf %68, %94 : vector<16x16xf32>
    %c2_42 = arith.constant 2 : index
    %c2_43 = arith.constant 2 : index
    %96 = memref.load %arg4[%c2_42, %c2_43] : memref<16x4xf32, #tpu.memory_space<smem>>
    %97 = vector.broadcast %96 : f32 to vector<16x16xf32>
    %98 = arith.mulf %87, %97 : vector<16x16xf32>
    %99 = arith.addf %72, %98 : vector<16x16xf32>
    %c2_44 = arith.constant 2 : index
    %c3_45 = arith.constant 3 : index
    %100 = memref.load %arg4[%c2_44, %c3_45] : memref<16x4xf32, #tpu.memory_space<smem>>
    %101 = vector.broadcast %100 : f32 to vector<16x16xf32>
    %102 = arith.mulf %87, %101 : vector<16x16xf32>
    %103 = arith.addf %76, %102 : vector<16x16xf32>
    %c3_46 = arith.constant 3 : index
    %104 = memref.load %arg2[%c3_46] : memref<16xf32, #tpu.memory_space<smem>>
    %105 = vector.broadcast %104 : f32 to vector<16x16xf32>
    %106 = arith.mulf %0, %105 : vector<16x16xf32>
    %c3_47 = arith.constant 3 : index
    %107 = memref.load %arg3[%c3_47] : memref<16xf32, #tpu.memory_space<smem>>
    %108 = vector.broadcast %107 : f32 to vector<16x16xf32>
    %109 = arith.addf %106, %108 : vector<16x16xf32>
    %cst_48 = arith.constant 0.000000e+00 : f32
    %110 = vector.broadcast %cst_48 : f32 to vector<16x16xf32>
    %111 = arith.cmpf oge, %109, %110 : vector<16x16xf32>
    %cst_49 = arith.constant 0.00999999977 : f32
    %112 = vector.broadcast %cst_49 : f32 to vector<16x16xf32>
    %113 = arith.mulf %112, %109 : vector<16x16xf32>
    %114 = arith.select %111, %109, %113 : vector<16x16xi1>, vector<16x16xf32>
    %c3_50 = arith.constant 3 : index
    %c0_51 = arith.constant 0 : index
    %115 = memref.load %arg4[%c3_50, %c0_51] : memref<16x4xf32, #tpu.memory_space<smem>>
    %116 = vector.broadcast %115 : f32 to vector<16x16xf32>
    %117 = arith.mulf %114, %116 : vector<16x16xf32>
    %118 = arith.addf %91, %117 : vector<16x16xf32>
    %c3_52 = arith.constant 3 : index
    %c1_53 = arith.constant 1 : index
    %119 = memref.load %arg4[%c3_52, %c1_53] : memref<16x4xf32, #tpu.memory_space<smem>>
    %120 = vector.broadcast %119 : f32 to vector<16x16xf32>
    %121 = arith.mulf %114, %120 : vector<16x16xf32>
    %122 = arith.addf %95, %121 : vector<16x16xf32>
    %c3_54 = arith.constant 3 : index
    %c2_55 = arith.constant 2 : index
    %123 = memref.load %arg4[%c3_54, %c2_55] : memref<16x4xf32, #tpu.memory_space<smem>>
    %124 = vector.broadcast %123 : f32 to vector<16x16xf32>
    %125 = arith.mulf %114, %124 : vector<16x16xf32>
    %126 = arith.addf %99, %125 : vector<16x16xf32>
    %c3_56 = arith.constant 3 : index
    %c3_57 = arith.constant 3 : index
    %127 = memref.load %arg4[%c3_56, %c3_57] : memref<16x4xf32, #tpu.memory_space<smem>>
    %128 = vector.broadcast %127 : f32 to vector<16x16xf32>
    %129 = arith.mulf %114, %128 : vector<16x16xf32>
    %130 = arith.addf %103, %129 : vector<16x16xf32>
    %c4 = arith.constant 4 : index
    %131 = memref.load %arg2[%c4] : memref<16xf32, #tpu.memory_space<smem>>
    %132 = vector.broadcast %131 : f32 to vector<16x16xf32>
    %133 = arith.mulf %0, %132 : vector<16x16xf32>
    %c4_58 = arith.constant 4 : index
    %134 = memref.load %arg3[%c4_58] : memref<16xf32, #tpu.memory_space<smem>>
    %135 = vector.broadcast %134 : f32 to vector<16x16xf32>
    %136 = arith.addf %133, %135 : vector<16x16xf32>
    %cst_59 = arith.constant 0.000000e+00 : f32
    %137 = vector.broadcast %cst_59 : f32 to vector<16x16xf32>
    %138 = arith.cmpf oge, %136, %137 : vector<16x16xf32>
    %cst_60 = arith.constant 0.00999999977 : f32
    %139 = vector.broadcast %cst_60 : f32 to vector<16x16xf32>
    %140 = arith.mulf %139, %136 : vector<16x16xf32>
    %141 = arith.select %138, %136, %140 : vector<16x16xi1>, vector<16x16xf32>
    %c4_61 = arith.constant 4 : index
    %c0_62 = arith.constant 0 : index
    %142 = memref.load %arg4[%c4_61, %c0_62] : memref<16x4xf32, #tpu.memory_space<smem>>
    %143 = vector.broadcast %142 : f32 to vector<16x16xf32>
    %144 = arith.mulf %141, %143 : vector<16x16xf32>
    %145 = arith.addf %118, %144 : vector<16x16xf32>
    %c4_63 = arith.constant 4 : index
    %c1_64 = arith.constant 1 : index
    %146 = memref.load %arg4[%c4_63, %c1_64] : memref<16x4xf32, #tpu.memory_space<smem>>
    %147 = vector.broadcast %146 : f32 to vector<16x16xf32>
    %148 = arith.mulf %141, %147 : vector<16x16xf32>
    %149 = arith.addf %122, %148 : vector<16x16xf32>
    %c4_65 = arith.constant 4 : index
    %c2_66 = arith.constant 2 : index
    %150 = memref.load %arg4[%c4_65, %c2_66] : memref<16x4xf32, #tpu.memory_space<smem>>
    %151 = vector.broadcast %150 : f32 to vector<16x16xf32>
    %152 = arith.mulf %141, %151 : vector<16x16xf32>
    %153 = arith.addf %126, %152 : vector<16x16xf32>
    %c4_67 = arith.constant 4 : index
    %c3_68 = arith.constant 3 : index
    %154 = memref.load %arg4[%c4_67, %c3_68] : memref<16x4xf32, #tpu.memory_space<smem>>
    %155 = vector.broadcast %154 : f32 to vector<16x16xf32>
    %156 = arith.mulf %141, %155 : vector<16x16xf32>
    %157 = arith.addf %130, %156 : vector<16x16xf32>
    %c5 = arith.constant 5 : index
    %158 = memref.load %arg2[%c5] : memref<16xf32, #tpu.memory_space<smem>>
    %159 = vector.broadcast %158 : f32 to vector<16x16xf32>
    %160 = arith.mulf %0, %159 : vector<16x16xf32>
    %c5_69 = arith.constant 5 : index
    %161 = memref.load %arg3[%c5_69] : memref<16xf32, #tpu.memory_space<smem>>
    %162 = vector.broadcast %161 : f32 to vector<16x16xf32>
    %163 = arith.addf %160, %162 : vector<16x16xf32>
    %cst_70 = arith.constant 0.000000e+00 : f32
    %164 = vector.broadcast %cst_70 : f32 to vector<16x16xf32>
    %165 = arith.cmpf oge, %163, %164 : vector<16x16xf32>
    %cst_71 = arith.constant 0.00999999977 : f32
    %166 = vector.broadcast %cst_71 : f32 to vector<16x16xf32>
    %167 = arith.mulf %166, %163 : vector<16x16xf32>
    %168 = arith.select %165, %163, %167 : vector<16x16xi1>, vector<16x16xf32>
    %c5_72 = arith.constant 5 : index
    %c0_73 = arith.constant 0 : index
    %169 = memref.load %arg4[%c5_72, %c0_73] : memref<16x4xf32, #tpu.memory_space<smem>>
    %170 = vector.broadcast %169 : f32 to vector<16x16xf32>
    %171 = arith.mulf %168, %170 : vector<16x16xf32>
    %172 = arith.addf %145, %171 : vector<16x16xf32>
    %c5_74 = arith.constant 5 : index
    %c1_75 = arith.constant 1 : index
    %173 = memref.load %arg4[%c5_74, %c1_75] : memref<16x4xf32, #tpu.memory_space<smem>>
    %174 = vector.broadcast %173 : f32 to vector<16x16xf32>
    %175 = arith.mulf %168, %174 : vector<16x16xf32>
    %176 = arith.addf %149, %175 : vector<16x16xf32>
    %c5_76 = arith.constant 5 : index
    %c2_77 = arith.constant 2 : index
    %177 = memref.load %arg4[%c5_76, %c2_77] : memref<16x4xf32, #tpu.memory_space<smem>>
    %178 = vector.broadcast %177 : f32 to vector<16x16xf32>
    %179 = arith.mulf %168, %178 : vector<16x16xf32>
    %180 = arith.addf %153, %179 : vector<16x16xf32>
    %c5_78 = arith.constant 5 : index
    %c3_79 = arith.constant 3 : index
    %181 = memref.load %arg4[%c5_78, %c3_79] : memref<16x4xf32, #tpu.memory_space<smem>>
    %182 = vector.broadcast %181 : f32 to vector<16x16xf32>
    %183 = arith.mulf %168, %182 : vector<16x16xf32>
    %184 = arith.addf %157, %183 : vector<16x16xf32>
    %c6 = arith.constant 6 : index
    %185 = memref.load %arg2[%c6] : memref<16xf32, #tpu.memory_space<smem>>
    %186 = vector.broadcast %185 : f32 to vector<16x16xf32>
    %187 = arith.mulf %0, %186 : vector<16x16xf32>
    %c6_80 = arith.constant 6 : index
    %188 = memref.load %arg3[%c6_80] : memref<16xf32, #tpu.memory_space<smem>>
    %189 = vector.broadcast %188 : f32 to vector<16x16xf32>
    %190 = arith.addf %187, %189 : vector<16x16xf32>
    %cst_81 = arith.constant 0.000000e+00 : f32
    %191 = vector.broadcast %cst_81 : f32 to vector<16x16xf32>
    %192 = arith.cmpf oge, %190, %191 : vector<16x16xf32>
    %cst_82 = arith.constant 0.00999999977 : f32
    %193 = vector.broadcast %cst_82 : f32 to vector<16x16xf32>
    %194 = arith.mulf %193, %190 : vector<16x16xf32>
    %195 = arith.select %192, %190, %194 : vector<16x16xi1>, vector<16x16xf32>
    %c6_83 = arith.constant 6 : index
    %c0_84 = arith.constant 0 : index
    %196 = memref.load %arg4[%c6_83, %c0_84] : memref<16x4xf32, #tpu.memory_space<smem>>
    %197 = vector.broadcast %196 : f32 to vector<16x16xf32>
    %198 = arith.mulf %195, %197 : vector<16x16xf32>
    %199 = arith.addf %172, %198 : vector<16x16xf32>
    %c6_85 = arith.constant 6 : index
    %c1_86 = arith.constant 1 : index
    %200 = memref.load %arg4[%c6_85, %c1_86] : memref<16x4xf32, #tpu.memory_space<smem>>
    %201 = vector.broadcast %200 : f32 to vector<16x16xf32>
    %202 = arith.mulf %195, %201 : vector<16x16xf32>
    %203 = arith.addf %176, %202 : vector<16x16xf32>
    %c6_87 = arith.constant 6 : index
    %c2_88 = arith.constant 2 : index
    %204 = memref.load %arg4[%c6_87, %c2_88] : memref<16x4xf32, #tpu.memory_space<smem>>
    %205 = vector.broadcast %204 : f32 to vector<16x16xf32>
    %206 = arith.mulf %195, %205 : vector<16x16xf32>
    %207 = arith.addf %180, %206 : vector<16x16xf32>
    %c6_89 = arith.constant 6 : index
    %c3_90 = arith.constant 3 : index
    %208 = memref.load %arg4[%c6_89, %c3_90] : memref<16x4xf32, #tpu.memory_space<smem>>
    %209 = vector.broadcast %208 : f32 to vector<16x16xf32>
    %210 = arith.mulf %195, %209 : vector<16x16xf32>
    %211 = arith.addf %184, %210 : vector<16x16xf32>
    %c7 = arith.constant 7 : index
    %212 = memref.load %arg2[%c7] : memref<16xf32, #tpu.memory_space<smem>>
    %213 = vector.broadcast %212 : f32 to vector<16x16xf32>
    %214 = arith.mulf %0, %213 : vector<16x16xf32>
    %c7_91 = arith.constant 7 : index
    %215 = memref.load %arg3[%c7_91] : memref<16xf32, #tpu.memory_space<smem>>
    %216 = vector.broadcast %215 : f32 to vector<16x16xf32>
    %217 = arith.addf %214, %216 : vector<16x16xf32>
    %cst_92 = arith.constant 0.000000e+00 : f32
    %218 = vector.broadcast %cst_92 : f32 to vector<16x16xf32>
    %219 = arith.cmpf oge, %217, %218 : vector<16x16xf32>
    %cst_93 = arith.constant 0.00999999977 : f32
    %220 = vector.broadcast %cst_93 : f32 to vector<16x16xf32>
    %221 = arith.mulf %220, %217 : vector<16x16xf32>
    %222 = arith.select %219, %217, %221 : vector<16x16xi1>, vector<16x16xf32>
    %c7_94 = arith.constant 7 : index
    %c0_95 = arith.constant 0 : index
    %223 = memref.load %arg4[%c7_94, %c0_95] : memref<16x4xf32, #tpu.memory_space<smem>>
    %224 = vector.broadcast %223 : f32 to vector<16x16xf32>
    %225 = arith.mulf %222, %224 : vector<16x16xf32>
    %226 = arith.addf %199, %225 : vector<16x16xf32>
    %c7_96 = arith.constant 7 : index
    %c1_97 = arith.constant 1 : index
    %227 = memref.load %arg4[%c7_96, %c1_97] : memref<16x4xf32, #tpu.memory_space<smem>>
    %228 = vector.broadcast %227 : f32 to vector<16x16xf32>
    %229 = arith.mulf %222, %228 : vector<16x16xf32>
    %230 = arith.addf %203, %229 : vector<16x16xf32>
    %c7_98 = arith.constant 7 : index
    %c2_99 = arith.constant 2 : index
    %231 = memref.load %arg4[%c7_98, %c2_99] : memref<16x4xf32, #tpu.memory_space<smem>>
    %232 = vector.broadcast %231 : f32 to vector<16x16xf32>
    %233 = arith.mulf %222, %232 : vector<16x16xf32>
    %234 = arith.addf %207, %233 : vector<16x16xf32>
    %c7_100 = arith.constant 7 : index
    %c3_101 = arith.constant 3 : index
    %235 = memref.load %arg4[%c7_100, %c3_101] : memref<16x4xf32, #tpu.memory_space<smem>>
    %236 = vector.broadcast %235 : f32 to vector<16x16xf32>
    %237 = arith.mulf %222, %236 : vector<16x16xf32>
    %238 = arith.addf %211, %237 : vector<16x16xf32>
    %c8 = arith.constant 8 : index
    %239 = memref.load %arg2[%c8] : memref<16xf32, #tpu.memory_space<smem>>
    %240 = vector.broadcast %239 : f32 to vector<16x16xf32>
    %241 = arith.mulf %0, %240 : vector<16x16xf32>
    %c8_102 = arith.constant 8 : index
    %242 = memref.load %arg3[%c8_102] : memref<16xf32, #tpu.memory_space<smem>>
    %243 = vector.broadcast %242 : f32 to vector<16x16xf32>
    %244 = arith.addf %241, %243 : vector<16x16xf32>
    %cst_103 = arith.constant 0.000000e+00 : f32
    %245 = vector.broadcast %cst_103 : f32 to vector<16x16xf32>
    %246 = arith.cmpf oge, %244, %245 : vector<16x16xf32>
    %cst_104 = arith.constant 0.00999999977 : f32
    %247 = vector.broadcast %cst_104 : f32 to vector<16x16xf32>
    %248 = arith.mulf %247, %244 : vector<16x16xf32>
    %249 = arith.select %246, %244, %248 : vector<16x16xi1>, vector<16x16xf32>
    %c8_105 = arith.constant 8 : index
    %c0_106 = arith.constant 0 : index
    %250 = memref.load %arg4[%c8_105, %c0_106] : memref<16x4xf32, #tpu.memory_space<smem>>
    %251 = vector.broadcast %250 : f32 to vector<16x16xf32>
    %252 = arith.mulf %249, %251 : vector<16x16xf32>
    %253 = arith.addf %226, %252 : vector<16x16xf32>
    %c8_107 = arith.constant 8 : index
    %c1_108 = arith.constant 1 : index
    %254 = memref.load %arg4[%c8_107, %c1_108] : memref<16x4xf32, #tpu.memory_space<smem>>
    %255 = vector.broadcast %254 : f32 to vector<16x16xf32>
    %256 = arith.mulf %249, %255 : vector<16x16xf32>
    %257 = arith.addf %230, %256 : vector<16x16xf32>
    %c8_109 = arith.constant 8 : index
    %c2_110 = arith.constant 2 : index
    %258 = memref.load %arg4[%c8_109, %c2_110] : memref<16x4xf32, #tpu.memory_space<smem>>
    %259 = vector.broadcast %258 : f32 to vector<16x16xf32>
    %260 = arith.mulf %249, %259 : vector<16x16xf32>
    %261 = arith.addf %234, %260 : vector<16x16xf32>
    %c8_111 = arith.constant 8 : index
    %c3_112 = arith.constant 3 : index
    %262 = memref.load %arg4[%c8_111, %c3_112] : memref<16x4xf32, #tpu.memory_space<smem>>
    %263 = vector.broadcast %262 : f32 to vector<16x16xf32>
    %264 = arith.mulf %249, %263 : vector<16x16xf32>
    %265 = arith.addf %238, %264 : vector<16x16xf32>
    %c9 = arith.constant 9 : index
    %266 = memref.load %arg2[%c9] : memref<16xf32, #tpu.memory_space<smem>>
    %267 = vector.broadcast %266 : f32 to vector<16x16xf32>
    %268 = arith.mulf %0, %267 : vector<16x16xf32>
    %c9_113 = arith.constant 9 : index
    %269 = memref.load %arg3[%c9_113] : memref<16xf32, #tpu.memory_space<smem>>
    %270 = vector.broadcast %269 : f32 to vector<16x16xf32>
    %271 = arith.addf %268, %270 : vector<16x16xf32>
    %cst_114 = arith.constant 0.000000e+00 : f32
    %272 = vector.broadcast %cst_114 : f32 to vector<16x16xf32>
    %273 = arith.cmpf oge, %271, %272 : vector<16x16xf32>
    %cst_115 = arith.constant 0.00999999977 : f32
    %274 = vector.broadcast %cst_115 : f32 to vector<16x16xf32>
    %275 = arith.mulf %274, %271 : vector<16x16xf32>
    %276 = arith.select %273, %271, %275 : vector<16x16xi1>, vector<16x16xf32>
    %c9_116 = arith.constant 9 : index
    %c0_117 = arith.constant 0 : index
    %277 = memref.load %arg4[%c9_116, %c0_117] : memref<16x4xf32, #tpu.memory_space<smem>>
    %278 = vector.broadcast %277 : f32 to vector<16x16xf32>
    %279 = arith.mulf %276, %278 : vector<16x16xf32>
    %280 = arith.addf %253, %279 : vector<16x16xf32>
    %c9_118 = arith.constant 9 : index
    %c1_119 = arith.constant 1 : index
    %281 = memref.load %arg4[%c9_118, %c1_119] : memref<16x4xf32, #tpu.memory_space<smem>>
    %282 = vector.broadcast %281 : f32 to vector<16x16xf32>
    %283 = arith.mulf %276, %282 : vector<16x16xf32>
    %284 = arith.addf %257, %283 : vector<16x16xf32>
    %c9_120 = arith.constant 9 : index
    %c2_121 = arith.constant 2 : index
    %285 = memref.load %arg4[%c9_120, %c2_121] : memref<16x4xf32, #tpu.memory_space<smem>>
    %286 = vector.broadcast %285 : f32 to vector<16x16xf32>
    %287 = arith.mulf %276, %286 : vector<16x16xf32>
    %288 = arith.addf %261, %287 : vector<16x16xf32>
    %c9_122 = arith.constant 9 : index
    %c3_123 = arith.constant 3 : index
    %289 = memref.load %arg4[%c9_122, %c3_123] : memref<16x4xf32, #tpu.memory_space<smem>>
    %290 = vector.broadcast %289 : f32 to vector<16x16xf32>
    %291 = arith.mulf %276, %290 : vector<16x16xf32>
    %292 = arith.addf %265, %291 : vector<16x16xf32>
    %c10 = arith.constant 10 : index
    %293 = memref.load %arg2[%c10] : memref<16xf32, #tpu.memory_space<smem>>
    %294 = vector.broadcast %293 : f32 to vector<16x16xf32>
    %295 = arith.mulf %0, %294 : vector<16x16xf32>
    %c10_124 = arith.constant 10 : index
    %296 = memref.load %arg3[%c10_124] : memref<16xf32, #tpu.memory_space<smem>>
    %297 = vector.broadcast %296 : f32 to vector<16x16xf32>
    %298 = arith.addf %295, %297 : vector<16x16xf32>
    %cst_125 = arith.constant 0.000000e+00 : f32
    %299 = vector.broadcast %cst_125 : f32 to vector<16x16xf32>
    %300 = arith.cmpf oge, %298, %299 : vector<16x16xf32>
    %cst_126 = arith.constant 0.00999999977 : f32
    %301 = vector.broadcast %cst_126 : f32 to vector<16x16xf32>
    %302 = arith.mulf %301, %298 : vector<16x16xf32>
    %303 = arith.select %300, %298, %302 : vector<16x16xi1>, vector<16x16xf32>
    %c10_127 = arith.constant 10 : index
    %c0_128 = arith.constant 0 : index
    %304 = memref.load %arg4[%c10_127, %c0_128] : memref<16x4xf32, #tpu.memory_space<smem>>
    %305 = vector.broadcast %304 : f32 to vector<16x16xf32>
    %306 = arith.mulf %303, %305 : vector<16x16xf32>
    %307 = arith.addf %280, %306 : vector<16x16xf32>
    %c10_129 = arith.constant 10 : index
    %c1_130 = arith.constant 1 : index
    %308 = memref.load %arg4[%c10_129, %c1_130] : memref<16x4xf32, #tpu.memory_space<smem>>
    %309 = vector.broadcast %308 : f32 to vector<16x16xf32>
    %310 = arith.mulf %303, %309 : vector<16x16xf32>
    %311 = arith.addf %284, %310 : vector<16x16xf32>
    %c10_131 = arith.constant 10 : index
    %c2_132 = arith.constant 2 : index
    %312 = memref.load %arg4[%c10_131, %c2_132] : memref<16x4xf32, #tpu.memory_space<smem>>
    %313 = vector.broadcast %312 : f32 to vector<16x16xf32>
    %314 = arith.mulf %303, %313 : vector<16x16xf32>
    %315 = arith.addf %288, %314 : vector<16x16xf32>
    %c10_133 = arith.constant 10 : index
    %c3_134 = arith.constant 3 : index
    %316 = memref.load %arg4[%c10_133, %c3_134] : memref<16x4xf32, #tpu.memory_space<smem>>
    %317 = vector.broadcast %316 : f32 to vector<16x16xf32>
    %318 = arith.mulf %303, %317 : vector<16x16xf32>
    %319 = arith.addf %292, %318 : vector<16x16xf32>
    %c11 = arith.constant 11 : index
    %320 = memref.load %arg2[%c11] : memref<16xf32, #tpu.memory_space<smem>>
    %321 = vector.broadcast %320 : f32 to vector<16x16xf32>
    %322 = arith.mulf %0, %321 : vector<16x16xf32>
    %c11_135 = arith.constant 11 : index
    %323 = memref.load %arg3[%c11_135] : memref<16xf32, #tpu.memory_space<smem>>
    %324 = vector.broadcast %323 : f32 to vector<16x16xf32>
    %325 = arith.addf %322, %324 : vector<16x16xf32>
    %cst_136 = arith.constant 0.000000e+00 : f32
    %326 = vector.broadcast %cst_136 : f32 to vector<16x16xf32>
    %327 = arith.cmpf oge, %325, %326 : vector<16x16xf32>
    %cst_137 = arith.constant 0.00999999977 : f32
    %328 = vector.broadcast %cst_137 : f32 to vector<16x16xf32>
    %329 = arith.mulf %328, %325 : vector<16x16xf32>
    %330 = arith.select %327, %325, %329 : vector<16x16xi1>, vector<16x16xf32>
    %c11_138 = arith.constant 11 : index
    %c0_139 = arith.constant 0 : index
    %331 = memref.load %arg4[%c11_138, %c0_139] : memref<16x4xf32, #tpu.memory_space<smem>>
    %332 = vector.broadcast %331 : f32 to vector<16x16xf32>
    %333 = arith.mulf %330, %332 : vector<16x16xf32>
    %334 = arith.addf %307, %333 : vector<16x16xf32>
    %c11_140 = arith.constant 11 : index
    %c1_141 = arith.constant 1 : index
    %335 = memref.load %arg4[%c11_140, %c1_141] : memref<16x4xf32, #tpu.memory_space<smem>>
    %336 = vector.broadcast %335 : f32 to vector<16x16xf32>
    %337 = arith.mulf %330, %336 : vector<16x16xf32>
    %338 = arith.addf %311, %337 : vector<16x16xf32>
    %c11_142 = arith.constant 11 : index
    %c2_143 = arith.constant 2 : index
    %339 = memref.load %arg4[%c11_142, %c2_143] : memref<16x4xf32, #tpu.memory_space<smem>>
    %340 = vector.broadcast %339 : f32 to vector<16x16xf32>
    %341 = arith.mulf %330, %340 : vector<16x16xf32>
    %342 = arith.addf %315, %341 : vector<16x16xf32>
    %c11_144 = arith.constant 11 : index
    %c3_145 = arith.constant 3 : index
    %343 = memref.load %arg4[%c11_144, %c3_145] : memref<16x4xf32, #tpu.memory_space<smem>>
    %344 = vector.broadcast %343 : f32 to vector<16x16xf32>
    %345 = arith.mulf %330, %344 : vector<16x16xf32>
    %346 = arith.addf %319, %345 : vector<16x16xf32>
    %c12 = arith.constant 12 : index
    %347 = memref.load %arg2[%c12] : memref<16xf32, #tpu.memory_space<smem>>
    %348 = vector.broadcast %347 : f32 to vector<16x16xf32>
    %349 = arith.mulf %0, %348 : vector<16x16xf32>
    %c12_146 = arith.constant 12 : index
    %350 = memref.load %arg3[%c12_146] : memref<16xf32, #tpu.memory_space<smem>>
    %351 = vector.broadcast %350 : f32 to vector<16x16xf32>
    %352 = arith.addf %349, %351 : vector<16x16xf32>
    %cst_147 = arith.constant 0.000000e+00 : f32
    %353 = vector.broadcast %cst_147 : f32 to vector<16x16xf32>
    %354 = arith.cmpf oge, %352, %353 : vector<16x16xf32>
    %cst_148 = arith.constant 0.00999999977 : f32
    %355 = vector.broadcast %cst_148 : f32 to vector<16x16xf32>
    %356 = arith.mulf %355, %352 : vector<16x16xf32>
    %357 = arith.select %354, %352, %356 : vector<16x16xi1>, vector<16x16xf32>
    %c12_149 = arith.constant 12 : index
    %c0_150 = arith.constant 0 : index
    %358 = memref.load %arg4[%c12_149, %c0_150] : memref<16x4xf32, #tpu.memory_space<smem>>
    %359 = vector.broadcast %358 : f32 to vector<16x16xf32>
    %360 = arith.mulf %357, %359 : vector<16x16xf32>
    %361 = arith.addf %334, %360 : vector<16x16xf32>
    %c12_151 = arith.constant 12 : index
    %c1_152 = arith.constant 1 : index
    %362 = memref.load %arg4[%c12_151, %c1_152] : memref<16x4xf32, #tpu.memory_space<smem>>
    %363 = vector.broadcast %362 : f32 to vector<16x16xf32>
    %364 = arith.mulf %357, %363 : vector<16x16xf32>
    %365 = arith.addf %338, %364 : vector<16x16xf32>
    %c12_153 = arith.constant 12 : index
    %c2_154 = arith.constant 2 : index
    %366 = memref.load %arg4[%c12_153, %c2_154] : memref<16x4xf32, #tpu.memory_space<smem>>
    %367 = vector.broadcast %366 : f32 to vector<16x16xf32>
    %368 = arith.mulf %357, %367 : vector<16x16xf32>
    %369 = arith.addf %342, %368 : vector<16x16xf32>
    %c12_155 = arith.constant 12 : index
    %c3_156 = arith.constant 3 : index
    %370 = memref.load %arg4[%c12_155, %c3_156] : memref<16x4xf32, #tpu.memory_space<smem>>
    %371 = vector.broadcast %370 : f32 to vector<16x16xf32>
    %372 = arith.mulf %357, %371 : vector<16x16xf32>
    %373 = arith.addf %346, %372 : vector<16x16xf32>
    %c13 = arith.constant 13 : index
    %374 = memref.load %arg2[%c13] : memref<16xf32, #tpu.memory_space<smem>>
    %375 = vector.broadcast %374 : f32 to vector<16x16xf32>
    %376 = arith.mulf %0, %375 : vector<16x16xf32>
    %c13_157 = arith.constant 13 : index
    %377 = memref.load %arg3[%c13_157] : memref<16xf32, #tpu.memory_space<smem>>
    %378 = vector.broadcast %377 : f32 to vector<16x16xf32>
    %379 = arith.addf %376, %378 : vector<16x16xf32>
    %cst_158 = arith.constant 0.000000e+00 : f32
    %380 = vector.broadcast %cst_158 : f32 to vector<16x16xf32>
    %381 = arith.cmpf oge, %379, %380 : vector<16x16xf32>
    %cst_159 = arith.constant 0.00999999977 : f32
    %382 = vector.broadcast %cst_159 : f32 to vector<16x16xf32>
    %383 = arith.mulf %382, %379 : vector<16x16xf32>
    %384 = arith.select %381, %379, %383 : vector<16x16xi1>, vector<16x16xf32>
    %c13_160 = arith.constant 13 : index
    %c0_161 = arith.constant 0 : index
    %385 = memref.load %arg4[%c13_160, %c0_161] : memref<16x4xf32, #tpu.memory_space<smem>>
    %386 = vector.broadcast %385 : f32 to vector<16x16xf32>
    %387 = arith.mulf %384, %386 : vector<16x16xf32>
    %388 = arith.addf %361, %387 : vector<16x16xf32>
    %c13_162 = arith.constant 13 : index
    %c1_163 = arith.constant 1 : index
    %389 = memref.load %arg4[%c13_162, %c1_163] : memref<16x4xf32, #tpu.memory_space<smem>>
    %390 = vector.broadcast %389 : f32 to vector<16x16xf32>
    %391 = arith.mulf %384, %390 : vector<16x16xf32>
    %392 = arith.addf %365, %391 : vector<16x16xf32>
    %c13_164 = arith.constant 13 : index
    %c2_165 = arith.constant 2 : index
    %393 = memref.load %arg4[%c13_164, %c2_165] : memref<16x4xf32, #tpu.memory_space<smem>>
    %394 = vector.broadcast %393 : f32 to vector<16x16xf32>
    %395 = arith.mulf %384, %394 : vector<16x16xf32>
    %396 = arith.addf %369, %395 : vector<16x16xf32>
    %c13_166 = arith.constant 13 : index
    %c3_167 = arith.constant 3 : index
    %397 = memref.load %arg4[%c13_166, %c3_167] : memref<16x4xf32, #tpu.memory_space<smem>>
    %398 = vector.broadcast %397 : f32 to vector<16x16xf32>
    %399 = arith.mulf %384, %398 : vector<16x16xf32>
    %400 = arith.addf %373, %399 : vector<16x16xf32>
    %c14 = arith.constant 14 : index
    %401 = memref.load %arg2[%c14] : memref<16xf32, #tpu.memory_space<smem>>
    %402 = vector.broadcast %401 : f32 to vector<16x16xf32>
    %403 = arith.mulf %0, %402 : vector<16x16xf32>
    %c14_168 = arith.constant 14 : index
    %404 = memref.load %arg3[%c14_168] : memref<16xf32, #tpu.memory_space<smem>>
    %405 = vector.broadcast %404 : f32 to vector<16x16xf32>
    %406 = arith.addf %403, %405 : vector<16x16xf32>
    %cst_169 = arith.constant 0.000000e+00 : f32
    %407 = vector.broadcast %cst_169 : f32 to vector<16x16xf32>
    %408 = arith.cmpf oge, %406, %407 : vector<16x16xf32>
    %cst_170 = arith.constant 0.00999999977 : f32
    %409 = vector.broadcast %cst_170 : f32 to vector<16x16xf32>
    %410 = arith.mulf %409, %406 : vector<16x16xf32>
    %411 = arith.select %408, %406, %410 : vector<16x16xi1>, vector<16x16xf32>
    %c14_171 = arith.constant 14 : index
    %c0_172 = arith.constant 0 : index
    %412 = memref.load %arg4[%c14_171, %c0_172] : memref<16x4xf32, #tpu.memory_space<smem>>
    %413 = vector.broadcast %412 : f32 to vector<16x16xf32>
    %414 = arith.mulf %411, %413 : vector<16x16xf32>
    %415 = arith.addf %388, %414 : vector<16x16xf32>
    %c14_173 = arith.constant 14 : index
    %c1_174 = arith.constant 1 : index
    %416 = memref.load %arg4[%c14_173, %c1_174] : memref<16x4xf32, #tpu.memory_space<smem>>
    %417 = vector.broadcast %416 : f32 to vector<16x16xf32>
    %418 = arith.mulf %411, %417 : vector<16x16xf32>
    %419 = arith.addf %392, %418 : vector<16x16xf32>
    %c14_175 = arith.constant 14 : index
    %c2_176 = arith.constant 2 : index
    %420 = memref.load %arg4[%c14_175, %c2_176] : memref<16x4xf32, #tpu.memory_space<smem>>
    %421 = vector.broadcast %420 : f32 to vector<16x16xf32>
    %422 = arith.mulf %411, %421 : vector<16x16xf32>
    %423 = arith.addf %396, %422 : vector<16x16xf32>
    %c14_177 = arith.constant 14 : index
    %c3_178 = arith.constant 3 : index
    %424 = memref.load %arg4[%c14_177, %c3_178] : memref<16x4xf32, #tpu.memory_space<smem>>
    %425 = vector.broadcast %424 : f32 to vector<16x16xf32>
    %426 = arith.mulf %411, %425 : vector<16x16xf32>
    %427 = arith.addf %400, %426 : vector<16x16xf32>
    %c15 = arith.constant 15 : index
    %428 = memref.load %arg2[%c15] : memref<16xf32, #tpu.memory_space<smem>>
    %429 = vector.broadcast %428 : f32 to vector<16x16xf32>
    %430 = arith.mulf %0, %429 : vector<16x16xf32>
    %c15_179 = arith.constant 15 : index
    %431 = memref.load %arg3[%c15_179] : memref<16xf32, #tpu.memory_space<smem>>
    %432 = vector.broadcast %431 : f32 to vector<16x16xf32>
    %433 = arith.addf %430, %432 : vector<16x16xf32>
    %cst_180 = arith.constant 0.000000e+00 : f32
    %434 = vector.broadcast %cst_180 : f32 to vector<16x16xf32>
    %435 = arith.cmpf oge, %433, %434 : vector<16x16xf32>
    %cst_181 = arith.constant 0.00999999977 : f32
    %436 = vector.broadcast %cst_181 : f32 to vector<16x16xf32>
    %437 = arith.mulf %436, %433 : vector<16x16xf32>
    %438 = arith.select %435, %433, %437 : vector<16x16xi1>, vector<16x16xf32>
    %c15_182 = arith.constant 15 : index
    %c0_183 = arith.constant 0 : index
    %439 = memref.load %arg4[%c15_182, %c0_183] : memref<16x4xf32, #tpu.memory_space<smem>>
    %440 = vector.broadcast %439 : f32 to vector<16x16xf32>
    %441 = arith.mulf %438, %440 : vector<16x16xf32>
    %442 = arith.addf %415, %441 : vector<16x16xf32>
    %c15_184 = arith.constant 15 : index
    %c1_185 = arith.constant 1 : index
    %443 = memref.load %arg4[%c15_184, %c1_185] : memref<16x4xf32, #tpu.memory_space<smem>>
    %444 = vector.broadcast %443 : f32 to vector<16x16xf32>
    %445 = arith.mulf %438, %444 : vector<16x16xf32>
    %446 = arith.addf %419, %445 : vector<16x16xf32>
    %c15_186 = arith.constant 15 : index
    %c2_187 = arith.constant 2 : index
    %447 = memref.load %arg4[%c15_186, %c2_187] : memref<16x4xf32, #tpu.memory_space<smem>>
    %448 = vector.broadcast %447 : f32 to vector<16x16xf32>
    %449 = arith.mulf %438, %448 : vector<16x16xf32>
    %450 = arith.addf %423, %449 : vector<16x16xf32>
    %c15_188 = arith.constant 15 : index
    %c3_189 = arith.constant 3 : index
    %451 = memref.load %arg4[%c15_188, %c3_189] : memref<16x4xf32, #tpu.memory_space<smem>>
    %452 = vector.broadcast %451 : f32 to vector<16x16xf32>
    %453 = arith.mulf %438, %452 : vector<16x16xf32>
    %454 = arith.addf %427, %453 : vector<16x16xf32>
    %455 = arith.maximumf %442, %446 : vector<16x16xf32>
    %456 = arith.maximumf %455, %450 : vector<16x16xf32>
    %457 = arith.maximumf %456, %454 : vector<16x16xf32>
    %458 = arith.subf %442, %457 : vector<16x16xf32>
    %459 = math.exp %458 : vector<16x16xf32>
    %460 = arith.subf %446, %457 : vector<16x16xf32>
    %461 = math.exp %460 : vector<16x16xf32>
    %462 = arith.addf %459, %461 : vector<16x16xf32>
    %463 = arith.subf %450, %457 : vector<16x16xf32>
    %464 = math.exp %463 : vector<16x16xf32>
    %465 = arith.addf %462, %464 : vector<16x16xf32>
    %466 = arith.subf %454, %457 : vector<16x16xf32>
    %467 = math.exp %466 : vector<16x16xf32>
    %468 = arith.addf %465, %467 : vector<16x16xf32>
    %469 = tpu.reciprocal %468 {approx = true} : vector<16x16xf32> -> vector<16x16xf32>
    %c0_190 = arith.constant 0 : index
    %c0_191 = arith.constant 0 : index
    %470 = vector.load %arg8[%c0_190, %c0_191] : memref<16x32xf32, #tpu.memory_space<vmem>>, vector<16x32xf32>
    %471 = arith.truncf %470 : vector<16x32xf32> to vector<16x32xbf16>
    %c0_192 = arith.constant 0 : index
    %c0_193 = arith.constant 0 : index
    %472 = vector.load %arg9[%c0_192, %c0_193] : memref<16x32xf32, #tpu.memory_space<vmem>>, vector<16x32xf32>
    %473 = arith.truncf %1 : vector<16x16xf32> to vector<16x16xbf16>
    %cst_194 = arith.constant dense<0.000000e+00> : vector<16x32xf32>
    %474 = tpu.matmul %473, %471, %cst_194 {dimension_numbers = #tpu.dot_dimension_numbers<[1], [0], [0], [1], [0, 0, 1, 1], [], []>} : vector<16x16xbf16>, vector<16x32xbf16>, vector<16x32xf32> -> vector<16x32xf32>
    %c0_195 = arith.constant 0 : index
    %475 = memref.load %arg1[%c0_195] : memref<5xf32, #tpu.memory_space<smem>>
    %cst_196 = arith.constant 1.000000e+00 : f32
    %476 = arith.addf %cst_196, %475 : f32
    %477 = vector.broadcast %476 : f32 to vector<16x32xf32>
    %478 = arith.mulf %472, %477 : vector<16x32xf32>
    %479 = arith.addf %474, %478 : vector<16x32xf32>
    %c0_197 = arith.constant 0 : index
    %c0_198 = arith.constant 0 : index
    %c0_199 = arith.constant 0 : index
    %480 = vector.load %arg10[%c0_197, %c0_198, %c0_199] : memref<5x32x32xf32, #tpu.memory_space<vmem>>, vector<1x32x32xf32>
    %481 = vector.shape_cast %480 : vector<1x32x32xf32> to vector<32x32xf32>
    %cst_200 = arith.constant dense<0.000000e+00> : vector<16x32xf32>
    %482 = tpu.matmul %479, %481, %cst_200 {dimension_numbers = #tpu.dot_dimension_numbers<[1], [0], [0], [1], [0, 0, 1, 1], [], []>} : vector<16x32xf32>, vector<32x32xf32>, vector<16x32xf32> -> vector<16x32xf32>
    %c0_201 = arith.constant 0 : index
    %c0_202 = arith.constant 0 : index
    %c0_203 = arith.constant 0 : index
    %483 = vector.load %arg11[%c0_201, %c0_202, %c0_203] : memref<5x1x32xf32, #tpu.memory_space<vmem>>, vector<1x1x32xf32>
    %484 = vector.shape_cast %483 : vector<1x1x32xf32> to vector<1x32xf32>
    %485 = vector.broadcast %484 : vector<1x32xf32> to vector<16x32xf32>
    %486 = arith.addf %482, %485 : vector<16x32xf32>
    %cst_204 = arith.constant 0.000000e+00 : f32
    %487 = vector.broadcast %cst_204 : f32 to vector<16x32xf32>
    %488 = arith.cmpf oge, %486, %487 : vector<16x32xf32>
    %cst_205 = arith.constant 0.00999999977 : f32
    %489 = vector.broadcast %cst_205 : f32 to vector<16x32xf32>
    %490 = arith.mulf %489, %486 : vector<16x32xf32>
    %491 = arith.select %488, %486, %490 : vector<16x32xi1>, vector<16x32xf32>
    %c0_206 = arith.constant 0 : index
    %c0_207 = arith.constant 0 : index
    %c0_208 = arith.constant 0 : index
    %492 = vector.load %arg12[%c0_206, %c0_207, %c0_208] : memref<5x32x32xf32, #tpu.memory_space<vmem>>, vector<1x32x32xf32>
    %493 = vector.shape_cast %492 : vector<1x32x32xf32> to vector<32x32xf32>
    %cst_209 = arith.constant dense<0.000000e+00> : vector<16x32xf32>
    %494 = tpu.matmul %491, %493, %cst_209 {dimension_numbers = #tpu.dot_dimension_numbers<[1], [0], [0], [1], [0, 0, 1, 1], [], []>} : vector<16x32xf32>, vector<32x32xf32>, vector<16x32xf32> -> vector<16x32xf32>
    %c0_210 = arith.constant 0 : index
    %c0_211 = arith.constant 0 : index
    %c0_212 = arith.constant 0 : index
    %495 = vector.load %arg13[%c0_210, %c0_211, %c0_212] : memref<5x1x32xf32, #tpu.memory_space<vmem>>, vector<1x1x32xf32>
    %496 = vector.shape_cast %495 : vector<1x1x32xf32> to vector<1x32xf32>
    %497 = vector.broadcast %496 : vector<1x32xf32> to vector<16x32xf32>
    %498 = arith.addf %494, %497 : vector<16x32xf32>
    %499 = tpu.iota {dimensions = array<i32: 1>} : vector<1x4xi32>
    %cst_213 = arith.constant 0.000000e+00 : f32
    %500 = vector.broadcast %cst_213 : f32 to vector<1x4xf32>
    %cst_214 = arith.constant 0.000000e+00 : f32
    %501 = vector.broadcast %cst_214 : f32 to vector<1x1xf32>
    %502 = arith.subf %442, %457 : vector<16x16xf32>
    %503 = math.exp %502 : vector<16x16xf32>
    %504 = arith.mulf %503, %469 : vector<16x16xf32>
    %505 = arith.mulf %504, %6 : vector<16x16xf32>
    %cst_215 = arith.constant dense<0.000000e+00> : vector<16xf32>
    %506 = vector.multi_reduction <add>, %505, %cst_215 [1] : vector<16x16xf32> to vector<16xf32>
    %507 = vector.shape_cast %506 : vector<16xf32> to vector<16x1xf32>
    %cst_216 = arith.constant dense<0.000000e+00> : vector<1xf32>
    %508 = vector.multi_reduction <add>, %507, %cst_216 [0] : vector<16x1xf32> to vector<1xf32>
    %509 = vector.shape_cast %508 : vector<1xf32> to vector<1x1xf32>
    %c0_i32 = arith.constant 0 : i32
    %510 = vector.broadcast %c0_i32 : i32 to vector<1x4xi32>
    %511 = arith.cmpi eq, %499, %510 : vector<1x4xi32>
    %cst_217 = arith.constant 0.000000e+00 : f32
    %512 = vector.shape_cast %509 : vector<1x1xf32> to vector<1x1xf32>
    %513 = vector.broadcast %512 : vector<1x1xf32> to vector<1x4xf32>
    %514 = vector.broadcast %cst_217 : f32 to vector<1x4xf32>
    %515 = arith.select %511, %513, %514 : vector<1x4xi1>, vector<1x4xf32>
    %516 = arith.addf %500, %515 : vector<1x4xf32>
    %517 = arith.mulf %505, %505 : vector<16x16xf32>
    %cst_218 = arith.constant dense<0.000000e+00> : vector<16xf32>
    %518 = vector.multi_reduction <add>, %517, %cst_218 [1] : vector<16x16xf32> to vector<16xf32>
    %519 = vector.shape_cast %518 : vector<16xf32> to vector<16x1xf32>
    %cst_219 = arith.constant dense<0.000000e+00> : vector<1xf32>
    %520 = vector.multi_reduction <add>, %519, %cst_219 [0] : vector<16x1xf32> to vector<1xf32>
    %521 = vector.shape_cast %520 : vector<1xf32> to vector<1x1xf32>
    %522 = arith.addf %501, %521 : vector<1x1xf32>
    %523 = arith.mulf %504, %1 : vector<16x16xf32>
    %524 = arith.truncf %523 : vector<16x16xf32> to vector<16x16xbf16>
    %cst_220 = arith.constant dense<0.000000e+00> : vector<16x32xf32>
    %525 = tpu.matmul %524, %471, %cst_220 {dimension_numbers = #tpu.dot_dimension_numbers<[1], [0], [0], [1], [0, 0, 1, 1], [], []>} : vector<16x16xbf16>, vector<16x32xbf16>, vector<16x32xf32> -> vector<16x32xf32>
    %c1_221 = arith.constant 1 : index
    %526 = memref.load %arg1[%c1_221] : memref<5xf32, #tpu.memory_space<smem>>
    %cst_222 = arith.constant 1.000000e+00 : f32
    %527 = arith.addf %cst_222, %526 : f32
    %528 = vector.broadcast %527 : f32 to vector<16x32xf32>
    %529 = arith.mulf %472, %528 : vector<16x32xf32>
    %530 = arith.addf %525, %529 : vector<16x32xf32>
    %c1_223 = arith.constant 1 : index
    %c0_224 = arith.constant 0 : index
    %c0_225 = arith.constant 0 : index
    %531 = vector.load %arg10[%c1_223, %c0_224, %c0_225] : memref<5x32x32xf32, #tpu.memory_space<vmem>>, vector<1x32x32xf32>
    %532 = vector.shape_cast %531 : vector<1x32x32xf32> to vector<32x32xf32>
    %cst_226 = arith.constant dense<0.000000e+00> : vector<16x32xf32>
    %533 = tpu.matmul %530, %532, %cst_226 {dimension_numbers = #tpu.dot_dimension_numbers<[1], [0], [0], [1], [0, 0, 1, 1], [], []>} : vector<16x32xf32>, vector<32x32xf32>, vector<16x32xf32> -> vector<16x32xf32>
    %c1_227 = arith.constant 1 : index
    %c0_228 = arith.constant 0 : index
    %c0_229 = arith.constant 0 : index
    %534 = vector.load %arg11[%c1_227, %c0_228, %c0_229] : memref<5x1x32xf32, #tpu.memory_space<vmem>>, vector<1x1x32xf32>
    %535 = vector.shape_cast %534 : vector<1x1x32xf32> to vector<1x32xf32>
    %536 = vector.broadcast %535 : vector<1x32xf32> to vector<16x32xf32>
    %537 = arith.addf %533, %536 : vector<16x32xf32>
    %cst_230 = arith.constant 0.000000e+00 : f32
    %538 = vector.broadcast %cst_230 : f32 to vector<16x32xf32>
    %539 = arith.cmpf oge, %537, %538 : vector<16x32xf32>
    %cst_231 = arith.constant 0.00999999977 : f32
    %540 = vector.broadcast %cst_231 : f32 to vector<16x32xf32>
    %541 = arith.mulf %540, %537 : vector<16x32xf32>
    %542 = arith.select %539, %537, %541 : vector<16x32xi1>, vector<16x32xf32>
    %c1_232 = arith.constant 1 : index
    %c0_233 = arith.constant 0 : index
    %c0_234 = arith.constant 0 : index
    %543 = vector.load %arg12[%c1_232, %c0_233, %c0_234] : memref<5x32x32xf32, #tpu.memory_space<vmem>>, vector<1x32x32xf32>
    %544 = vector.shape_cast %543 : vector<1x32x32xf32> to vector<32x32xf32>
    %cst_235 = arith.constant dense<0.000000e+00> : vector<16x32xf32>
    %545 = tpu.matmul %542, %544, %cst_235 {dimension_numbers = #tpu.dot_dimension_numbers<[1], [0], [0], [1], [0, 0, 1, 1], [], []>} : vector<16x32xf32>, vector<32x32xf32>, vector<16x32xf32> -> vector<16x32xf32>
    %c1_236 = arith.constant 1 : index
    %c0_237 = arith.constant 0 : index
    %c0_238 = arith.constant 0 : index
    %546 = vector.load %arg13[%c1_236, %c0_237, %c0_238] : memref<5x1x32xf32, #tpu.memory_space<vmem>>, vector<1x1x32xf32>
    %547 = vector.shape_cast %546 : vector<1x1x32xf32> to vector<1x32xf32>
    %548 = vector.broadcast %547 : vector<1x32xf32> to vector<16x32xf32>
    %549 = arith.addf %545, %548 : vector<16x32xf32>
    %550 = arith.addf %498, %549 : vector<16x32xf32>
    %551 = arith.subf %446, %457 : vector<16x16xf32>
    %552 = math.exp %551 : vector<16x16xf32>
    %553 = arith.mulf %552, %469 : vector<16x16xf32>
    %554 = arith.mulf %553, %6 : vector<16x16xf32>
    %cst_239 = arith.constant dense<0.000000e+00> : vector<16xf32>
    %555 = vector.multi_reduction <add>, %554, %cst_239 [1] : vector<16x16xf32> to vector<16xf32>
    %556 = vector.shape_cast %555 : vector<16xf32> to vector<16x1xf32>
    %cst_240 = arith.constant dense<0.000000e+00> : vector<1xf32>
    %557 = vector.multi_reduction <add>, %556, %cst_240 [0] : vector<16x1xf32> to vector<1xf32>
    %558 = vector.shape_cast %557 : vector<1xf32> to vector<1x1xf32>
    %c1_i32 = arith.constant 1 : i32
    %559 = vector.broadcast %c1_i32 : i32 to vector<1x4xi32>
    %560 = arith.cmpi eq, %499, %559 : vector<1x4xi32>
    %cst_241 = arith.constant 0.000000e+00 : f32
    %561 = vector.shape_cast %558 : vector<1x1xf32> to vector<1x1xf32>
    %562 = vector.broadcast %561 : vector<1x1xf32> to vector<1x4xf32>
    %563 = vector.broadcast %cst_241 : f32 to vector<1x4xf32>
    %564 = arith.select %560, %562, %563 : vector<1x4xi1>, vector<1x4xf32>
    %565 = arith.addf %516, %564 : vector<1x4xf32>
    %566 = arith.mulf %554, %554 : vector<16x16xf32>
    %cst_242 = arith.constant dense<0.000000e+00> : vector<16xf32>
    %567 = vector.multi_reduction <add>, %566, %cst_242 [1] : vector<16x16xf32> to vector<16xf32>
    %568 = vector.shape_cast %567 : vector<16xf32> to vector<16x1xf32>
    %cst_243 = arith.constant dense<0.000000e+00> : vector<1xf32>
    %569 = vector.multi_reduction <add>, %568, %cst_243 [0] : vector<16x1xf32> to vector<1xf32>
    %570 = vector.shape_cast %569 : vector<1xf32> to vector<1x1xf32>
    %571 = arith.addf %522, %570 : vector<1x1xf32>
    %572 = arith.mulf %553, %1 : vector<16x16xf32>
    %573 = arith.truncf %572 : vector<16x16xf32> to vector<16x16xbf16>
    %cst_244 = arith.constant dense<0.000000e+00> : vector<16x32xf32>
    %574 = tpu.matmul %573, %471, %cst_244 {dimension_numbers = #tpu.dot_dimension_numbers<[1], [0], [0], [1], [0, 0, 1, 1], [], []>} : vector<16x16xbf16>, vector<16x32xbf16>, vector<16x32xf32> -> vector<16x32xf32>
    %c2_245 = arith.constant 2 : index
    %575 = memref.load %arg1[%c2_245] : memref<5xf32, #tpu.memory_space<smem>>
    %cst_246 = arith.constant 1.000000e+00 : f32
    %576 = arith.addf %cst_246, %575 : f32
    %577 = vector.broadcast %576 : f32 to vector<16x32xf32>
    %578 = arith.mulf %472, %577 : vector<16x32xf32>
    %579 = arith.addf %574, %578 : vector<16x32xf32>
    %c2_247 = arith.constant 2 : index
    %c0_248 = arith.constant 0 : index
    %c0_249 = arith.constant 0 : index
    %580 = vector.load %arg10[%c2_247, %c0_248, %c0_249] : memref<5x32x32xf32, #tpu.memory_space<vmem>>, vector<1x32x32xf32>
    %581 = vector.shape_cast %580 : vector<1x32x32xf32> to vector<32x32xf32>
    %cst_250 = arith.constant dense<0.000000e+00> : vector<16x32xf32>
    %582 = tpu.matmul %579, %581, %cst_250 {dimension_numbers = #tpu.dot_dimension_numbers<[1], [0], [0], [1], [0, 0, 1, 1], [], []>} : vector<16x32xf32>, vector<32x32xf32>, vector<16x32xf32> -> vector<16x32xf32>
    %c2_251 = arith.constant 2 : index
    %c0_252 = arith.constant 0 : index
    %c0_253 = arith.constant 0 : index
    %583 = vector.load %arg11[%c2_251, %c0_252, %c0_253] : memref<5x1x32xf32, #tpu.memory_space<vmem>>, vector<1x1x32xf32>
    %584 = vector.shape_cast %583 : vector<1x1x32xf32> to vector<1x32xf32>
    %585 = vector.broadcast %584 : vector<1x32xf32> to vector<16x32xf32>
    %586 = arith.addf %582, %585 : vector<16x32xf32>
    %cst_254 = arith.constant 0.000000e+00 : f32
    %587 = vector.broadcast %cst_254 : f32 to vector<16x32xf32>
    %588 = arith.cmpf oge, %586, %587 : vector<16x32xf32>
    %cst_255 = arith.constant 0.00999999977 : f32
    %589 = vector.broadcast %cst_255 : f32 to vector<16x32xf32>
    %590 = arith.mulf %589, %586 : vector<16x32xf32>
    %591 = arith.select %588, %586, %590 : vector<16x32xi1>, vector<16x32xf32>
    %c2_256 = arith.constant 2 : index
    %c0_257 = arith.constant 0 : index
    %c0_258 = arith.constant 0 : index
    %592 = vector.load %arg12[%c2_256, %c0_257, %c0_258] : memref<5x32x32xf32, #tpu.memory_space<vmem>>, vector<1x32x32xf32>
    %593 = vector.shape_cast %592 : vector<1x32x32xf32> to vector<32x32xf32>
    %cst_259 = arith.constant dense<0.000000e+00> : vector<16x32xf32>
    %594 = tpu.matmul %591, %593, %cst_259 {dimension_numbers = #tpu.dot_dimension_numbers<[1], [0], [0], [1], [0, 0, 1, 1], [], []>} : vector<16x32xf32>, vector<32x32xf32>, vector<16x32xf32> -> vector<16x32xf32>
    %c2_260 = arith.constant 2 : index
    %c0_261 = arith.constant 0 : index
    %c0_262 = arith.constant 0 : index
    %595 = vector.load %arg13[%c2_260, %c0_261, %c0_262] : memref<5x1x32xf32, #tpu.memory_space<vmem>>, vector<1x1x32xf32>
    %596 = vector.shape_cast %595 : vector<1x1x32xf32> to vector<1x32xf32>
    %597 = vector.broadcast %596 : vector<1x32xf32> to vector<16x32xf32>
    %598 = arith.addf %594, %597 : vector<16x32xf32>
    %599 = arith.addf %550, %598 : vector<16x32xf32>
    %600 = arith.subf %450, %457 : vector<16x16xf32>
    %601 = math.exp %600 : vector<16x16xf32>
    %602 = arith.mulf %601, %469 : vector<16x16xf32>
    %603 = arith.mulf %602, %6 : vector<16x16xf32>
    %cst_263 = arith.constant dense<0.000000e+00> : vector<16xf32>
    %604 = vector.multi_reduction <add>, %603, %cst_263 [1] : vector<16x16xf32> to vector<16xf32>
    %605 = vector.shape_cast %604 : vector<16xf32> to vector<16x1xf32>
    %cst_264 = arith.constant dense<0.000000e+00> : vector<1xf32>
    %606 = vector.multi_reduction <add>, %605, %cst_264 [0] : vector<16x1xf32> to vector<1xf32>
    %607 = vector.shape_cast %606 : vector<1xf32> to vector<1x1xf32>
    %c2_i32 = arith.constant 2 : i32
    %608 = vector.broadcast %c2_i32 : i32 to vector<1x4xi32>
    %609 = arith.cmpi eq, %499, %608 : vector<1x4xi32>
    %cst_265 = arith.constant 0.000000e+00 : f32
    %610 = vector.shape_cast %607 : vector<1x1xf32> to vector<1x1xf32>
    %611 = vector.broadcast %610 : vector<1x1xf32> to vector<1x4xf32>
    %612 = vector.broadcast %cst_265 : f32 to vector<1x4xf32>
    %613 = arith.select %609, %611, %612 : vector<1x4xi1>, vector<1x4xf32>
    %614 = arith.addf %565, %613 : vector<1x4xf32>
    %615 = arith.mulf %603, %603 : vector<16x16xf32>
    %cst_266 = arith.constant dense<0.000000e+00> : vector<16xf32>
    %616 = vector.multi_reduction <add>, %615, %cst_266 [1] : vector<16x16xf32> to vector<16xf32>
    %617 = vector.shape_cast %616 : vector<16xf32> to vector<16x1xf32>
    %cst_267 = arith.constant dense<0.000000e+00> : vector<1xf32>
    %618 = vector.multi_reduction <add>, %617, %cst_267 [0] : vector<16x1xf32> to vector<1xf32>
    %619 = vector.shape_cast %618 : vector<1xf32> to vector<1x1xf32>
    %620 = arith.addf %571, %619 : vector<1x1xf32>
    %621 = arith.mulf %602, %1 : vector<16x16xf32>
    %622 = arith.truncf %621 : vector<16x16xf32> to vector<16x16xbf16>
    %cst_268 = arith.constant dense<0.000000e+00> : vector<16x32xf32>
    %623 = tpu.matmul %622, %471, %cst_268 {dimension_numbers = #tpu.dot_dimension_numbers<[1], [0], [0], [1], [0, 0, 1, 1], [], []>} : vector<16x16xbf16>, vector<16x32xbf16>, vector<16x32xf32> -> vector<16x32xf32>
    %c3_269 = arith.constant 3 : index
    %624 = memref.load %arg1[%c3_269] : memref<5xf32, #tpu.memory_space<smem>>
    %cst_270 = arith.constant 1.000000e+00 : f32
    %625 = arith.addf %cst_270, %624 : f32
    %626 = vector.broadcast %625 : f32 to vector<16x32xf32>
    %627 = arith.mulf %472, %626 : vector<16x32xf32>
    %628 = arith.addf %623, %627 : vector<16x32xf32>
    %c3_271 = arith.constant 3 : index
    %c0_272 = arith.constant 0 : index
    %c0_273 = arith.constant 0 : index
    %629 = vector.load %arg10[%c3_271, %c0_272, %c0_273] : memref<5x32x32xf32, #tpu.memory_space<vmem>>, vector<1x32x32xf32>
    %630 = vector.shape_cast %629 : vector<1x32x32xf32> to vector<32x32xf32>
    %cst_274 = arith.constant dense<0.000000e+00> : vector<16x32xf32>
    %631 = tpu.matmul %628, %630, %cst_274 {dimension_numbers = #tpu.dot_dimension_numbers<[1], [0], [0], [1], [0, 0, 1, 1], [], []>} : vector<16x32xf32>, vector<32x32xf32>, vector<16x32xf32> -> vector<16x32xf32>
    %c3_275 = arith.constant 3 : index
    %c0_276 = arith.constant 0 : index
    %c0_277 = arith.constant 0 : index
    %632 = vector.load %arg11[%c3_275, %c0_276, %c0_277] : memref<5x1x32xf32, #tpu.memory_space<vmem>>, vector<1x1x32xf32>
    %633 = vector.shape_cast %632 : vector<1x1x32xf32> to vector<1x32xf32>
    %634 = vector.broadcast %633 : vector<1x32xf32> to vector<16x32xf32>
    %635 = arith.addf %631, %634 : vector<16x32xf32>
    %cst_278 = arith.constant 0.000000e+00 : f32
    %636 = vector.broadcast %cst_278 : f32 to vector<16x32xf32>
    %637 = arith.cmpf oge, %635, %636 : vector<16x32xf32>
    %cst_279 = arith.constant 0.00999999977 : f32
    %638 = vector.broadcast %cst_279 : f32 to vector<16x32xf32>
    %639 = arith.mulf %638, %635 : vector<16x32xf32>
    %640 = arith.select %637, %635, %639 : vector<16x32xi1>, vector<16x32xf32>
    %c3_280 = arith.constant 3 : index
    %c0_281 = arith.constant 0 : index
    %c0_282 = arith.constant 0 : index
    %641 = vector.load %arg12[%c3_280, %c0_281, %c0_282] : memref<5x32x32xf32, #tpu.memory_space<vmem>>, vector<1x32x32xf32>
    %642 = vector.shape_cast %641 : vector<1x32x32xf32> to vector<32x32xf32>
    %cst_283 = arith.constant dense<0.000000e+00> : vector<16x32xf32>
    %643 = tpu.matmul %640, %642, %cst_283 {dimension_numbers = #tpu.dot_dimension_numbers<[1], [0], [0], [1], [0, 0, 1, 1], [], []>} : vector<16x32xf32>, vector<32x32xf32>, vector<16x32xf32> -> vector<16x32xf32>
    %c3_284 = arith.constant 3 : index
    %c0_285 = arith.constant 0 : index
    %c0_286 = arith.constant 0 : index
    %644 = vector.load %arg13[%c3_284, %c0_285, %c0_286] : memref<5x1x32xf32, #tpu.memory_space<vmem>>, vector<1x1x32xf32>
    %645 = vector.shape_cast %644 : vector<1x1x32xf32> to vector<1x32xf32>
    %646 = vector.broadcast %645 : vector<1x32xf32> to vector<16x32xf32>
    %647 = arith.addf %643, %646 : vector<16x32xf32>
    %648 = arith.addf %599, %647 : vector<16x32xf32>
    %649 = arith.subf %454, %457 : vector<16x16xf32>
    %650 = math.exp %649 : vector<16x16xf32>
    %651 = arith.mulf %650, %469 : vector<16x16xf32>
    %652 = arith.mulf %651, %6 : vector<16x16xf32>
    %cst_287 = arith.constant dense<0.000000e+00> : vector<16xf32>
    %653 = vector.multi_reduction <add>, %652, %cst_287 [1] : vector<16x16xf32> to vector<16xf32>
    %654 = vector.shape_cast %653 : vector<16xf32> to vector<16x1xf32>
    %cst_288 = arith.constant dense<0.000000e+00> : vector<1xf32>
    %655 = vector.multi_reduction <add>, %654, %cst_288 [0] : vector<16x1xf32> to vector<1xf32>
    %656 = vector.shape_cast %655 : vector<1xf32> to vector<1x1xf32>
    %c3_i32 = arith.constant 3 : i32
    %657 = vector.broadcast %c3_i32 : i32 to vector<1x4xi32>
    %658 = arith.cmpi eq, %499, %657 : vector<1x4xi32>
    %cst_289 = arith.constant 0.000000e+00 : f32
    %659 = vector.shape_cast %656 : vector<1x1xf32> to vector<1x1xf32>
    %660 = vector.broadcast %659 : vector<1x1xf32> to vector<1x4xf32>
    %661 = vector.broadcast %cst_289 : f32 to vector<1x4xf32>
    %662 = arith.select %658, %660, %661 : vector<1x4xi1>, vector<1x4xf32>
    %663 = arith.addf %614, %662 : vector<1x4xf32>
    %664 = arith.mulf %652, %652 : vector<16x16xf32>
    %cst_290 = arith.constant dense<0.000000e+00> : vector<16xf32>
    %665 = vector.multi_reduction <add>, %664, %cst_290 [1] : vector<16x16xf32> to vector<16xf32>
    %666 = vector.shape_cast %665 : vector<16xf32> to vector<16x1xf32>
    %cst_291 = arith.constant dense<0.000000e+00> : vector<1xf32>
    %667 = vector.multi_reduction <add>, %666, %cst_291 [0] : vector<16x1xf32> to vector<1xf32>
    %668 = vector.shape_cast %667 : vector<1xf32> to vector<1x1xf32>
    %669 = arith.addf %620, %668 : vector<1x1xf32>
    %670 = arith.mulf %651, %1 : vector<16x16xf32>
    %671 = arith.truncf %670 : vector<16x16xf32> to vector<16x16xbf16>
    %cst_292 = arith.constant dense<0.000000e+00> : vector<16x32xf32>
    %672 = tpu.matmul %671, %471, %cst_292 {dimension_numbers = #tpu.dot_dimension_numbers<[1], [0], [0], [1], [0, 0, 1, 1], [], []>} : vector<16x16xbf16>, vector<16x32xbf16>, vector<16x32xf32> -> vector<16x32xf32>
    %c4_293 = arith.constant 4 : index
    %673 = memref.load %arg1[%c4_293] : memref<5xf32, #tpu.memory_space<smem>>
    %cst_294 = arith.constant 1.000000e+00 : f32
    %674 = arith.addf %cst_294, %673 : f32
    %675 = vector.broadcast %674 : f32 to vector<16x32xf32>
    %676 = arith.mulf %472, %675 : vector<16x32xf32>
    %677 = arith.addf %672, %676 : vector<16x32xf32>
    %c4_295 = arith.constant 4 : index
    %c0_296 = arith.constant 0 : index
    %c0_297 = arith.constant 0 : index
    %678 = vector.load %arg10[%c4_295, %c0_296, %c0_297] : memref<5x32x32xf32, #tpu.memory_space<vmem>>, vector<1x32x32xf32>
    %679 = vector.shape_cast %678 : vector<1x32x32xf32> to vector<32x32xf32>
    %cst_298 = arith.constant dense<0.000000e+00> : vector<16x32xf32>
    %680 = tpu.matmul %677, %679, %cst_298 {dimension_numbers = #tpu.dot_dimension_numbers<[1], [0], [0], [1], [0, 0, 1, 1], [], []>} : vector<16x32xf32>, vector<32x32xf32>, vector<16x32xf32> -> vector<16x32xf32>
    %c4_299 = arith.constant 4 : index
    %c0_300 = arith.constant 0 : index
    %c0_301 = arith.constant 0 : index
    %681 = vector.load %arg11[%c4_299, %c0_300, %c0_301] : memref<5x1x32xf32, #tpu.memory_space<vmem>>, vector<1x1x32xf32>
    %682 = vector.shape_cast %681 : vector<1x1x32xf32> to vector<1x32xf32>
    %683 = vector.broadcast %682 : vector<1x32xf32> to vector<16x32xf32>
    %684 = arith.addf %680, %683 : vector<16x32xf32>
    %cst_302 = arith.constant 0.000000e+00 : f32
    %685 = vector.broadcast %cst_302 : f32 to vector<16x32xf32>
    %686 = arith.cmpf oge, %684, %685 : vector<16x32xf32>
    %cst_303 = arith.constant 0.00999999977 : f32
    %687 = vector.broadcast %cst_303 : f32 to vector<16x32xf32>
    %688 = arith.mulf %687, %684 : vector<16x32xf32>
    %689 = arith.select %686, %684, %688 : vector<16x32xi1>, vector<16x32xf32>
    %c4_304 = arith.constant 4 : index
    %c0_305 = arith.constant 0 : index
    %c0_306 = arith.constant 0 : index
    %690 = vector.load %arg12[%c4_304, %c0_305, %c0_306] : memref<5x32x32xf32, #tpu.memory_space<vmem>>, vector<1x32x32xf32>
    %691 = vector.shape_cast %690 : vector<1x32x32xf32> to vector<32x32xf32>
    %cst_307 = arith.constant dense<0.000000e+00> : vector<16x32xf32>
    %692 = tpu.matmul %689, %691, %cst_307 {dimension_numbers = #tpu.dot_dimension_numbers<[1], [0], [0], [1], [0, 0, 1, 1], [], []>} : vector<16x32xf32>, vector<32x32xf32>, vector<16x32xf32> -> vector<16x32xf32>
    %c4_308 = arith.constant 4 : index
    %c0_309 = arith.constant 0 : index
    %c0_310 = arith.constant 0 : index
    %693 = vector.load %arg13[%c4_308, %c0_309, %c0_310] : memref<5x1x32xf32, #tpu.memory_space<vmem>>, vector<1x1x32xf32>
    %694 = vector.shape_cast %693 : vector<1x1x32xf32> to vector<1x32xf32>
    %695 = vector.broadcast %694 : vector<1x32xf32> to vector<16x32xf32>
    %696 = arith.addf %692, %695 : vector<16x32xf32>
    %697 = arith.addf %648, %696 : vector<16x32xf32>
    %c0_311 = arith.constant 0 : index
    %c0_312 = arith.constant 0 : index
    %698 = vector.load %arg14[%c0_311, %c0_312] : memref<16x32xf32, #tpu.memory_space<vmem>>, vector<16x32xf32>
    tpu.vector_store %arg14[%c0_311, %c0_312], %697 {strides = array<i32>} : memref<16x32xf32, #tpu.memory_space<vmem>>, vector<16x32xf32>,
    %699 = vector.shape_cast %663 : vector<1x4xf32> to vector<1x1x4xf32>
    %c0_313 = arith.constant 0 : index
    %c0_314 = arith.constant 0 : index
    %c0_315 = arith.constant 0 : index
    %700 = vector.load %arg15[%c0_313, %c0_314, %c0_315] : memref<1x1x4xf32, #tpu.memory_space<vmem>>, vector<1x1x4xf32>
    tpu.vector_store %arg15[%c0_313, %c0_314, %c0_315], %699 {strides = array<i32>} : memref<1x1x4xf32, #tpu.memory_space<vmem>>, vector<1x1x4xf32>,
    %701 = vector.shape_cast %669 : vector<1x1xf32> to vector<1x1x1xf32>
    %c0_316 = arith.constant 0 : index
    %c0_317 = arith.constant 0 : index
    %c0_318 = arith.constant 0 : index
    %702 = vector.load %arg16[%c0_316, %c0_317, %c0_318] : memref<1x1x1xf32, #tpu.memory_space<vmem>>, vector<1x1x1xf32>
    tpu.vector_store %arg16[%c0_316, %c0_317, %c0_318], %701 {strides = array<i32>} : memref<1x1x1xf32, #tpu.memory_space<vmem>>, vector<1x1x1xf32>,
    return
  }
  func.func @transform_0(%arg0: i32) -> i32 {
    %c0_i32 = arith.constant 0 : i32
    %c0_i32_0 = arith.constant 0 : i32
    return %c0_i32 : i32
  }
  func.func @transform_1(%arg0: i32) -> i32 {
    %c0_i32 = arith.constant 0 : i32
    %c0_i32_0 = arith.constant 0 : i32
    return %c0_i32 : i32
  }
  func.func @transform_2(%arg0: i32) -> i32 {
    %c0_i32 = arith.constant 0 : i32
    %c0_i32_0 = arith.constant 0 : i32
    return %c0_i32 : i32
  }
  func.func @transform_3(%arg0: i32) -> (i32, i32) {
    %c0_i32 = arith.constant 0 : i32
    %c0_i32_0 = arith.constant 0 : i32
    %c0_i32_1 = arith.constant 0 : i32
    return %c0_i32, %c0_i32_0 : i32, i32
  }
  func.func @transform_4(%arg0: i32) -> i32 {
    %c0_i32 = arith.constant 0 : i32
    %c0_i32_0 = arith.constant 0 : i32
    return %c0_i32 : i32
  }
  func.func @transform_5(%arg0: i32) -> (i32, i32) {
    %c0_i32 = arith.constant 0 : i32
    %c0_i32_0 = arith.constant 0 : i32
    return %arg0, %c0_i32 : i32, i32
  }
  func.func @transform_6(%arg0: i32) -> (i32, i32) {
    %c0_i32 = arith.constant 0 : i32
    %c0_i32_0 = arith.constant 0 : i32
    return %arg0, %c0_i32 : i32, i32
  }
  func.func @transform_7(%arg0: i32) -> (i32, i32) {
    %c0_i32 = arith.constant 0 : i32
    %c0_i32_0 = arith.constant 0 : i32
    %c0_i32_1 = arith.constant 0 : i32
    return %c0_i32, %c0_i32_0 : i32, i32
  }
  func.func @transform_8(%arg0: i32) -> (i32, i32) {
    %c0_i32 = arith.constant 0 : i32
    %c0_i32_0 = arith.constant 0 : i32
    return %arg0, %c0_i32 : i32, i32
  }
  func.func @transform_9(%arg0: i32) -> (i32, i32, i32) {
    %c0_i32 = arith.constant 0 : i32
    %c0_i32_0 = arith.constant 0 : i32
    %c0_i32_1 = arith.constant 0 : i32
    %c0_i32_2 = arith.constant 0 : i32
    return %c0_i32, %c0_i32_0, %c0_i32_1 : i32, i32, i32
  }
  func.func @transform_10(%arg0: i32) -> (i32, i32, i32) {
    %c0_i32 = arith.constant 0 : i32
    %c0_i32_0 = arith.constant 0 : i32
    %c0_i32_1 = arith.constant 0 : i32
    %c0_i32_2 = arith.constant 0 : i32
    return %c0_i32, %c0_i32_0, %c0_i32_1 : i32, i32, i32
  }
  func.func @transform_11(%arg0: i32) -> (i32, i32, i32) {
    %c0_i32 = arith.constant 0 : i32
    %c0_i32_0 = arith.constant 0 : i32
    %c0_i32_1 = arith.constant 0 : i32
    %c0_i32_2 = arith.constant 0 : i32
    return %c0_i32, %c0_i32_0, %c0_i32_1 : i32, i32, i32
  }
  func.func @transform_12(%arg0: i32) -> (i32, i32, i32) {
    %c0_i32 = arith.constant 0 : i32
    %c0_i32_0 = arith.constant 0 : i32
    %c0_i32_1 = arith.constant 0 : i32
    %c0_i32_2 = arith.constant 0 : i32
    return %c0_i32, %c0_i32_0, %c0_i32_1 : i32, i32, i32
  }
  func.func @transform_13(%arg0: i32) -> (i32, i32) {
    %c0_i32 = arith.constant 0 : i32
    %c0_i32_0 = arith.constant 0 : i32
    return %arg0, %c0_i32 : i32, i32
  }
  func.func @transform_14(%arg0: i32) -> (i32, i32, i32) {
    %c0_i32 = arith.constant 0 : i32
    %c0_i32_0 = arith.constant 0 : i32
    %c0_i32_1 = arith.constant 0 : i32
    return %arg0, %c0_i32, %c0_i32_0 : i32, i32, i32
  }
  func.func @transform_15(%arg0: i32) -> (i32, i32, i32) {
    %c0_i32 = arith.constant 0 : i32
    %c0_i32_0 = arith.constant 0 : i32
    %c0_i32_1 = arith.constant 0 : i32
    return %arg0, %c0_i32, %c0_i32_0 : i32, i32, i32
  }
}

</mosaic_0001>

<llo_original>
// kernel: tpu_custom_call.1
$region0: #{tpu_custom_call.1}
  #allocation0 [shape = 'u32[]', space=smem, size = 0x4, offset = 0x4, fixed_abs, tag = 'smem constant byte address 0x4 - core index']
  #allocation1 [shape = 'u32[144,128]{1,0:T(1,128)}', space=vmem, size = 0x12000, scoped, tag = 'internal scratch']
  %s0 = inlined_call_operand.hbm [shape: f32[5], index: 0, kind: input, shape index: {}]
  %s1 = inlined_call_operand.hbm [shape: f32[16], index: 1, kind: input, shape index: {}]
  %s2 = inlined_call_operand.hbm [shape: f32[16], index: 2, kind: input, shape index: {}]
  %s3 = inlined_call_operand.vmem [shape: f32[16,4], index: 3, kind: input, shape index: {}]
  %s4 = inlined_call_operand.hbm [shape: f32[4], index: 4, kind: input, shape index: {}]
  %s5 = inlined_call_operand.vmem [shape: f32[16,16], index: 5, kind: input, shape index: {}]
  %s6 = inlined_call_operand.hbm [shape: f32[16,16], index: 6, kind: input, shape index: {}]
  %s7 = inlined_call_operand.vmem [shape: f32[16,32], index: 7, kind: input, shape index: {}]
  %s8 = inlined_call_operand.hbm [shape: f32[16,32], index: 8, kind: input, shape index: {}]
  %s9 = inlined_call_operand.hbm [shape: f32[5,32,32], index: 9, kind: input, shape index: {}]
  %s10 = inlined_call_operand.vmem [shape: f32[5,1,32], index: 10, kind: input, shape index: {}]
  %s11 = inlined_call_operand.hbm [shape: f32[5,32,32], index: 11, kind: input, shape index: {}]
  %s12 = inlined_call_operand.hbm [shape: f32[5,1,32], index: 12, kind: input, shape index: {}]
  %s13 = inlined_call_operand.hbm [shape: f32[16,32], index: 13, kind: output, shape index: {0}]
  %s14 = inlined_call_operand.hbm [shape: f32[1,1,4], index: 14, kind: output, shape index: {1}]
  %s15 = inlined_call_operand.hbm [shape: f32[1,1,1], index: 15, kind: output, shape index: {2}]
  %16 = xla_tuple %s13, %s14, %s15
  %s17 = sld [smem:[#allocation0]]
  $region118: #{tpu_custom_call.1} parent=0
    _
  %s19 = ssub.s32 1, %s17
  %s20 = scalar_select 0, %s19, %s17
  $region1: #{tpu_custom_call.1} parent=0
    #allocation2 [shape = 'u8[512]{0}', space=smem, size = 0x200, scoped, tag = 'input window, operand 0, single buffered']
    #allocation3 [shape = 's32[1]{0}', space=sflag, size = 0x4, scoped, tag = 'scoped memory for tpu_custom_call.1']
    #allocation4 [shape = 's32[1]{0}', space=sflag, size = 0x4, scoped, tag = 'scoped memory for tpu_custom_call.1']
    #allocation5 [shape = 's32[1]{0}', space=sflag, size = 0x4, scoped, tag = 'scoped memory for tpu_custom_call.1']
    #allocation6 [shape = 's32[1]{0}', space=sflag, size = 0x4, scoped, tag = 'scoped memory for tpu_custom_call.1']
    #allocation7 [shape = 'u8[512]{0}', space=smem, size = 0x200, scoped, tag = 'input window, operand 1, single buffered']
    #allocation8 [shape = 's32[1]{0}', space=sflag, size = 0x4, scoped, tag = 'scoped memory for tpu_custom_call.1']
    #allocation9 [shape = 'u8[512]{0}', space=smem, size = 0x200, scoped, tag = 'input window, operand 2, single buffered']
    #allocation10 [shape = 'u8[8192]{0}', space=smem, size = 0x2000, scoped, tag = 'input window, operand 3, single buffered']
    #allocation11 [shape = 'u8[512]{0}', space=smem, size = 0x200, scoped, tag = 'input window, operand 4, single buffered']
    #allocation12 [shape = 's32[1]{0}', space=sflag, size = 0x4, scoped, tag = 'scoped memory for tpu_custom_call.1']
    #allocation13 [shape = 'u8[8192]{0}', space=vmem, size = 0x2000, scoped, tag = 'input window, operand 6, single buffered']
    #allocation14 [shape = 'u8[8192]{0}', space=vmem, size = 0x2000, scoped, tag = 'input window, operand 8, single buffered']
    #allocation15 [shape = 's32[1]{0}', space=sflag, size = 0x4, scoped, tag = 'scoped memory for tpu_custom_call.1']
    #allocation16 [shape = 'u8[81920]{0}', space=vmem, size = 0x14000, scoped, tag = 'input window, operand 9, single buffered']
    #allocation17 [shape = 'u8[81920]{0}', space=vmem, size = 0x14000, scoped, tag = 'input window, operand 11, single buffered']
    #allocation18 [shape = 's32[1]{0}', space=sflag, size = 0x4, scoped, tag = 'scoped memory for tpu_custom_call.1']
    #allocation19 [shape = 'u8[2560]{0}', space=vmem, size = 0xc00, scoped, tag = 'input window, operand 12, single buffered']
    #allocation20 [shape = 'u8[8192]{0}', space=vmem, size = 0x2000, scoped, tag = 'output window, operand 0, single buffered']
    #allocation21 [shape = 'u8[512]{0}', space=vmem, size = 0x400, scoped, tag = 'output window, operand 1, single buffered']
    #allocation22 [shape = 's32[1]{0}', space=sflag, size = 0x4, scoped, tag = 'scoped memory for tpu_custom_call.1']
    #allocation23 [shape = 'u8[512]{0}', space=vmem, size = 0x400, scoped, tag = 'output window, operand 2, single buffered']
    %21 = vsyncpa [#allocation5], 0
    %22 = vsyncpa [#allocation8], 0
    %23 = vsyncpa [#allocation6], 0
    %24 = vsyncpa [#allocation12], 0
    %25 = vsyncpa [#allocation3], 0
    %26 = vsyncpa [#allocation15], 0
    %27 = vsyncpa [#allocation18], 0
    %28 = vsyncpa [#allocation4], 0
    %29 = vsyncpa [#allocation22], 0
    // Predicated region
    $region2: #{tpu_custom_call.1} parent=1 // pred_check
      _
    $region3: #{tpu_custom_call.1} parent=1 // pred_check_branch
      %31 = sbr.rel (0) target = $region5
    $region4: #{tpu_custom_call.1} parent=1 // pred_region
      %s33 = ssub.s32 16, 16
      %34 = vsyncadd [#allocation5], %s33
      %37 = dma.hbm_to_smem %s0, 16, [#allocation2], [#allocation5]
    $region5: #{tpu_custom_call.1} parent=1 // pred_fallthru
      _
    // Predicated region
    $region6: #{tpu_custom_call.1} parent=1 // pred_check
      _
    $region7: #{tpu_custom_call.1} parent=1 // pred_check_branch
      %39 = sbr.rel (0) target = $region9
    $region8: #{tpu_custom_call.1} parent=1 // pred_region
      %s41 = ssub.s32 16, 16
      %42 = vsyncadd [#allocation8], %s41
      %45 = dma.hbm_to_smem %s1, 16, [#allocation7], [#allocation8]
    $region9: #{tpu_custom_call.1} parent=1 // pred_fallthru
      _
    // Predicated region
    $region10: #{tpu_custom_call.1} parent=1 // pred_check
      _
    $region11: #{tpu_custom_call.1} parent=1 // pred_check_branch
      %47 = sbr.rel (0) target = $region13
    $region12: #{tpu_custom_call.1} parent=1 // pred_region
      %s49 = ssub.s32 16, 16
      %50 = vsyncadd [#allocation8], %s49
      %53 = dma.hbm_to_smem %s2, 16, [#allocation9], [#allocation8]
    $region13: #{tpu_custom_call.1} parent=1 // pred_fallthru
      _
    // Predicated region
    $region14: #{tpu_custom_call.1} parent=1 // pred_check
      _
    $region15: #{tpu_custom_call.1} parent=1 // pred_check_branch
      %55 = sbr.rel (0) target = $region17
    $region16: #{tpu_custom_call.1} parent=1 // pred_region
      %s57 = ssub.s32 256, 256
      %58 = vsyncadd [#allocation6], %s57
      %s59 = sshll.u32 %s3, 4
      %s60 = int_to_ptr.vmem [resolvable:$true] %s59
      %65 = dma.vmem_to_smem %s60, 256, [#allocation10], [#allocation6], 128, 128, 8
    $region17: #{tpu_custom_call.1} parent=1 // pred_fallthru
      _
    // Predicated region
    $region18: #{tpu_custom_call.1} parent=1 // pred_check
      _
    $region19: #{tpu_custom_call.1} parent=1 // pred_check_branch
      %67 = sbr.rel (0) target = $region21
    $region20: #{tpu_custom_call.1} parent=1 // pred_region
      %s69 = ssub.s32 16, 16
      %70 = vsyncadd [#allocation12], %s69
      %73 = dma.hbm_to_smem %s4, 16, [#allocation11], [#allocation12]
    $region21: #{tpu_custom_call.1} parent=1 // pred_fallthru
      _
    // Predicated region
    $region22: #{tpu_custom_call.1} parent=1 // pred_check
      _
    $region23: #{tpu_custom_call.1} parent=1 // pred_check_branch
      %75 = sbr.rel (0) target = $region25
    $region24: #{tpu_custom_call.1} parent=1 // pred_region
      _
    $region25: #{tpu_custom_call.1} parent=1 // pred_fallthru
      _
    // Predicated region
    $region26: #{tpu_custom_call.1} parent=1 // pred_check
      _
    $region27: #{tpu_custom_call.1} parent=1 // pred_check_branch
      %77 = sbr.rel (0) target = $region29
    $region28: #{tpu_custom_call.1} parent=1 // pred_region
      %s79 = ssub.s32 256, 256
      %80 = vsyncadd [#allocation3], %s79
      %s81 = sshll.u32 [#allocation13], 4
      %s82 = int_to_ptr.vmem [resolvable:$true] %s81
      %87 = dma.hbm_to_vmem [thread:$0]  %s6, 256, %s82, [#allocation3], 128, 128, 8
    $region29: #{tpu_custom_call.1} parent=1 // pred_fallthru
      _
    // Predicated region
    $region30: #{tpu_custom_call.1} parent=1 // pred_check
      _
    $region31: #{tpu_custom_call.1} parent=1 // pred_check_branch
      %89 = sbr.rel (0) target = $region33
    $region32: #{tpu_custom_call.1} parent=1 // pred_region
      _
    $region33: #{tpu_custom_call.1} parent=1 // pred_fallthru
      _
    // Predicated region
    $region34: #{tpu_custom_call.1} parent=1 // pred_check
      _
    $region35: #{tpu_custom_call.1} parent=1 // pred_check_branch
      %91 = sbr.rel (0) target = $region37
    $region36: #{tpu_custom_call.1} parent=1 // pred_region
      %s93 = ssub.s32 256, 256
      %94 = vsyncadd [#allocation15], %s93
      %s95 = sshll.u32 [#allocation14], 4
      %s96 = int_to_ptr.vmem [resolvable:$true] %s95
      %101 = dma.hbm_to_vmem [thread:$0]  %s8, 256, %s96, [#allocation15], 128, 128, 8
    $region37: #{tpu_custom_call.1} parent=1 // pred_fallthru
      _
    // Predicated region
    $region38: #{tpu_custom_call.1} parent=1 // pred_check
      _
    $region39: #{tpu_custom_call.1} parent=1 // pred_check_branch
      %103 = sbr.rel (0) target = $region41
    $region40: #{tpu_custom_call.1} parent=1 // pred_region
      %s105 = ssub.s32 2560, 2560
      %106 = vsyncadd [#allocation15], %s105
      %s107 = sshll.u32 [#allocation16], 4
      %s108 = int_to_ptr.vmem [resolvable:$true] %s107
      %113 = dma.hbm_to_vmem [thread:$0]  %s9, 2560, %s108, [#allocation15], 128, 128, 8
    $region41: #{tpu_custom_call.1} parent=1 // pred_fallthru
      _
    // Predicated region
    $region42: #{tpu_custom_call.1} parent=1 // pred_check
      _
    $region43: #{tpu_custom_call.1} parent=1 // pred_check_branch
      %115 = sbr.rel (0) target = $region45
    $region44: #{tpu_custom_call.1} parent=1 // pred_region
      _
    $region45: #{tpu_custom_call.1} parent=1 // pred_fallthru
      _
    // Predicated region
    $region46: #{tpu_custom_call.1} parent=1 // pred_check
      _
    $region47: #{tpu_custom_call.1} parent=1 // pred_check_branch
      %117 = sbr.rel (0) target = $region49
    $region48: #{tpu_custom_call.1} parent=1 // pred_region
      %s119 = ssub.s32 2560, 2560
      %120 = vsyncadd [#allocation18], %s119
      %s121 = sshll.u32 [#allocation17], 4
      %s122 = int_to_ptr.vmem [resolvable:$true] %s121
      %127 = dma.hbm_to_vmem [thread:$0]  %s11, 2560, %s122, [#allocation18], 128, 128, 8
    $region49: #{tpu_custom_call.1} parent=1 // pred_fallthru
      _
    // Predicated region
    $region50: #{tpu_custom_call.1} parent=1 // pred_check
      _
    $region51: #{tpu_custom_call.1} parent=1 // pred_check_branch
      %129 = sbr.rel (0) target = $region53
    $region52: #{tpu_custom_call.1} parent=1 // pred_region
      %s131 = ssub.s32 80, 80
      %132 = vsyncadd [#allocation18], %s131
      %s133 = sshll.u32 [#allocation19], 4
      %s134 = int_to_ptr.vmem [resolvable:$true] %s133
      %139 = dma.hbm_to_vmem [thread:$0]  %s12, 80, %s134, [#allocation18], 16, 16, 1
    $region53: #{tpu_custom_call.1} parent=1 // pred_fallthru
      _
    // Predicated region
    $region54: #{tpu_custom_call.1} parent=1 // pred_check
      _
    $region55: #{tpu_custom_call.1} parent=1 // pred_check_branch
      %141 = sbr.rel (0) target = $region57
    $region56: #{tpu_custom_call.1} parent=1 // pred_region
      %142 = dma.done [#allocation5], 16
    $region57: #{tpu_custom_call.1} parent=1 // pred_fallthru
      _
    // Predicated region
    $region58: #{tpu_custom_call.1} parent=1 // pred_check
      _
    $region59: #{tpu_custom_call.1} parent=1 // pred_check_branch
      %144 = sbr.rel (0) target = $region61
    $region60: #{tpu_custom_call.1} parent=1 // pred_region
      %145 = dma.done [#allocation8], 16
    $region61: #{tpu_custom_call.1} parent=1 // pred_fallthru
      _
    // Predicated region
    $region62: #{tpu_custom_call.1} parent=1 // pred_check
      _
    $region63: #{tpu_custom_call.1} parent=1 // pred_check_branch
      %147 = sbr.rel (0) target = $region65
    $region64: #{tpu_custom_call.1} parent=1 // pred_region
      %148 = dma.done [#allocation8], 16
    $region65: #{tpu_custom_call.1} parent=1 // pred_fallthru
      _
    // Predicated region
    $region66: #{tpu_custom_call.1} parent=1 // pred_check
      _
    $region67: #{tpu_custom_call.1} parent=1 // pred_check_branch
      %150 = sbr.rel (0) target = $region69
    $region68: #{tpu_custom_call.1} parent=1 // pred_region
      %151 = dma.done [#allocation6], 256
    $region69: #{tpu_custom_call.1} parent=1 // pred_fallthru
      _
    // Predicated region
    $region70: #{tpu_custom_call.1} parent=1 // pred_check
      _
    $region71: #{tpu_custom_call.1} parent=1 // pred_check_branch
      %153 = sbr.rel (0) target = $region73
    $region72: #{tpu_custom_call.1} parent=1 // pred_region
      %154 = dma.done [#allocation12], 16
    $region73: #{tpu_custom_call.1} parent=1 // pred_fallthru
      _
    // Predicated region
    $region74: #{tpu_custom_call.1} parent=1 // pred_check
      _
    $region75: #{tpu_custom_call.1} parent=1 // pred_check_branch
      %156 = sbr.rel (0) target = $region77
    $region76: #{tpu_custom_call.1} parent=1 // pred_region
      %157 = dma.done [#allocation3], 256
    $region77: #{tpu_custom_call.1} parent=1 // pred_fallthru
      _
    // Predicated region
    $region78: #{tpu_custom_call.1} parent=1 // pred_check
      _
    $region79: #{tpu_custom_call.1} parent=1 // pred_check_branch
      %159 = sbr.rel (0) target = $region81
    $region80: #{tpu_custom_call.1} parent=1 // pred_region
      %160 = dma.done [#allocation15], 256
    $region81: #{tpu_custom_call.1} parent=1 // pred_fallthru
      _
    // Predicated region
    $region82: #{tpu_custom_call.1} parent=1 // pred_check
      _
    $region83: #{tpu_custom_call.1} parent=1 // pred_check_branch
      %162 = sbr.rel (0) target = $region85
    $region84: #{tpu_custom_call.1} parent=1 // pred_region
      %163 = dma.done [#allocation15], 2560
    $region85: #{tpu_custom_call.1} parent=1 // pred_fallthru
      _
    // Predicated region
    $region86: #{tpu_custom_call.1} parent=1 // pred_check
      _
    $region87: #{tpu_custom_call.1} parent=1 // pred_check_branch
      %165 = sbr.rel (0) target = $region89
    $region88: #{tpu_custom_call.1} parent=1 // pred_region
      %166 = dma.done [#allocation18], 2560
    $region89: #{tpu_custom_call.1} parent=1 // pred_fallthru
      _
    // Predicated region
    $region90: #{tpu_custom_call.1} parent=1 // pred_check
      _
    $region91: #{tpu_custom_call.1} parent=1 // pred_check_branch
      %168 = sbr.rel (0) target = $region93
    $region92: #{tpu_custom_call.1} parent=1 // pred_region
      %169 = dma.done [#allocation18], 80
    $region93: #{tpu_custom_call.1} parent=1 // pred_fallthru
      _
    %170 = sfence
    %v172 = vld [vmem:[%s5] sm:$0xff]
    %v173 = vld [vmem:[%s5 + $0x8] sm:$0xff]
    %v174 = vld [vmem:[#allocation13] sm:$0xff]
    %v175 = vld [vmem:[#allocation13 + $0x8] sm:$0xff]
    %vm176 = vcmp.gt.f32.partialorder %v174, 0.0
    %vm177 = vcmp.gt.f32.partialorder %v175, 0.0
    %v178 = vsel %vm176, 1.0, 0.0
    %v179 = vsel %vm177, 1.0, 0.0
    %s180 = sld [smem:[#allocation11]]
    %v181 = vstv %s180
    %v182 = vadd.f32 %v181, 0.0
    %s183 = sld [smem:[#allocation11 + $0x1]]
    %v184 = vstv %s183
    %v185 = vadd.f32 %v184, 0.0
    %s186 = sld [smem:[#allocation11 + $0x2]]
    %v187 = vstv %s186
    %v188 = vadd.f32 %v187, 0.0
    %s189 = sld [smem:[#allocation11 + $0x3]]
    %v190 = vstv %s189
    %v191 = vadd.f32 %v190, 0.0
    %s192 = sld [smem:[#allocation7]]
    %v193 = vstv %s192
    %v194 = vmul.f32 %v172, %v193
    %v195 = vmul.f32 %v173, %v193
    %s196 = sld [smem:[#allocation9]]
    %v197 = vstv %s196
    %v198 = vadd.f32 %v194, %v197
    %v199 = vadd.f32 %v195, %v197
    %vm200 = vcmp.ge.f32.partialorder %v198, 0.0
    %vm201 = vcmp.ge.f32.partialorder %v199, 0.0
    %v202 = vmul.f32 %v198, 0.01
    %v203 = vmul.f32 %v199, 0.01
    %v204 = vsel %vm200, %v198, %v202
    %v205 = vsel %vm201, %v199, %v203
    %s206 = sld [smem:[#allocation10]]
    %v207 = vstv %s206
    %v208 = vmul.f32 %v204, %v207
    %v209 = vmul.f32 %v205, %v207
    %v210 = vadd.f32 %v182, %v208
    %v211 = vadd.f32 %v182, %v209
    %s212 = sld [smem:[#allocation10 + $0x1]]
    %v213 = vstv %s212
    %v214 = vmul.f32 %v204, %v213
    %v215 = vmul.f32 %v205, %v213
    %v216 = vadd.f32 %v185, %v214
    %v217 = vadd.f32 %v185, %v215
    %s218 = sld [smem:[#allocation10 + $0x2]]
    %v219 = vstv %s218
    %v220 = vmul.f32 %v204, %v219
    %v221 = vmul.f32 %v205, %v219
    %v222 = vadd.f32 %v188, %v220
    %v223 = vadd.f32 %v188, %v221
    %s224 = sld [smem:[#allocation10 + $0x3]]
    %v225 = vstv %s224
    %v226 = vmul.f32 %v204, %v225
    %v227 = vmul.f32 %v205, %v225
    %v228 = vadd.f32 %v191, %v226
    %v229 = vadd.f32 %v191, %v227
    %s230 = sld [smem:[#allocation7 + $0x1]]
    %v231 = vstv %s230
    %v232 = vmul.f32 %v172, %v231
    %v233 = vmul.f32 %v173, %v231
    %s234 = sld [smem:[#allocation9 + $0x1]]
    %v235 = vstv %s234
    %v236 = vadd.f32 %v232, %v235
    %v237 = vadd.f32 %v233, %v235
    %vm238 = vcmp.ge.f32.partialorder %v236, 0.0
    %vm239 = vcmp.ge.f32.partialorder %v237, 0.0
    %v240 = vmul.f32 %v236, 0.01
    %v241 = vmul.f32 %v237, 0.01
    %v242 = vsel %vm238, %v236, %v240
    %v243 = vsel %vm239, %v237, %v241
    %s244 = sld [smem:[#allocation10 + $0x80]]
    %v245 = vstv %s244
    %v246 = vmul.f32 %v242, %v245
    %v247 = vmul.f32 %v243, %v245
    %v248 = vadd.f32 %v210, %v246
    %v249 = vadd.f32 %v211, %v247
    %s250 = sld [smem:[#allocation10 + $0x81]]
    %v251 = vstv %s250
    %v252 = vmul.f32 %v242, %v251
    %v253 = vmul.f32 %v243, %v251
    %v254 = vadd.f32 %v216, %v252
    %v255 = vadd.f32 %v217, %v253
    %s256 = sld [smem:[#allocation10 + $0x82]]
    %v257 = vstv %s256
    %v258 = vmul.f32 %v242, %v257
    %v259 = vmul.f32 %v243, %v257
    %v260 = vadd.f32 %v222, %v258
    %v261 = vadd.f32 %v223, %v259
    %s262 = sld [smem:[#allocation10 + $0x83]]
    %v263 = vstv %s262
    %v264 = vmul.f32 %v242, %v263
    %v265 = vmul.f32 %v243, %v263
    %v266 = vadd.f32 %v228, %v264
    %v267 = vadd.f32 %v229, %v265
    %s268 = sld [smem:[#allocation7 + $0x2]]
    %v269 = vstv %s268
    %v270 = vmul.f32 %v172, %v269
    %v271 = vmul.f32 %v173, %v269
    %s272 = sld [smem:[#allocation9 + $0x2]]
    %v273 = vstv %s272
    %v274 = vadd.f32 %v270, %v273
    %v275 = vadd.f32 %v271, %v273
    %vm276 = vcmp.ge.f32.partialorder %v274, 0.0
    %vm277 = vcmp.ge.f32.partialorder %v275, 0.0
    %v278 = vmul.f32 %v274, 0.01
    %v279 = vmul.f32 %v275, 0.01
    %v280 = vsel %vm276, %v274, %v278
    %v281 = vsel %vm277, %v275, %v279
    %s282 = sld [smem:[#allocation10 + $0x100]]
    %v283 = vstv %s282
    %v284 = vmul.f32 %v280, %v283
    %v285 = vmul.f32 %v281, %v283
    %v286 = vadd.f32 %v248, %v284
    %v287 = vadd.f32 %v249, %v285
    %s288 = sld [smem:[#allocation10 + $0x101]]
    %v289 = vstv %s288
    %v290 = vmul.f32 %v280, %v289
    %v291 = vmul.f32 %v281, %v289
    %v292 = vadd.f32 %v254, %v290
    %v293 = vadd.f32 %v255, %v291
    %s294 = sld [smem:[#allocation10 + $0x102]]
    %v295 = vstv %s294
    %v296 = vmul.f32 %v280, %v295
    %v297 = vmul.f32 %v281, %v295
    %v298 = vadd.f32 %v260, %v296
    %v299 = vadd.f32 %v261, %v297
    %s300 = sld [smem:[#allocation10 + $0x103]]
    %v301 = vstv %s300
    %v302 = vmul.f32 %v280, %v301
    %v303 = vmul.f32 %v281, %v301
    %v304 = vadd.f32 %v266, %v302
    %v305 = vadd.f32 %v267, %v303
    %s306 = sld [smem:[#allocation7 + $0x3]]
    %v307 = vstv %s306
    %v308 = vmul.f32 %v172, %v307
    %v309 = vmul.f32 %v173, %v307
    %s310 = sld [smem:[#allocation9 + $0x3]]
    %v311 = vstv %s310
    %v312 = vadd.f32 %v308, %v311
    %v313 = vadd.f32 %v309, %v311
    %vm314 = vcmp.ge.f32.partialorder %v312, 0.0
    %vm315 = vcmp.ge.f32.partialorder %v313, 0.0
    %v316 = vmul.f32 %v312, 0.01
    %v317 = vmul.f32 %v313, 0.01
    %v318 = vsel %vm314, %v312, %v316
    %v319 = vsel %vm315, %v313, %v317
    %s320 = sld [smem:[#allocation10 + $0x180]]
    %v321 = vstv %s320
    %v322 = vmul.f32 %v318, %v321
    %v323 = vmul.f32 %v319, %v321
    %v324 = vadd.f32 %v286, %v322
    %v325 = vadd.f32 %v287, %v323
    %s326 = sld [smem:[#allocation10 + $0x181]]
    %v327 = vstv %s326
    %v328 = vmul.f32 %v318, %v327
    %v329 = vmul.f32 %v319, %v327
    %v330 = vadd.f32 %v292, %v328
    %v331 = vadd.f32 %v293, %v329
    %s332 = sld [smem:[#allocation10 + $0x182]]
    %v333 = vstv %s332
    %v334 = vmul.f32 %v318, %v333
    %v335 = vmul.f32 %v319, %v333
    %v336 = vadd.f32 %v298, %v334
    %v337 = vadd.f32 %v299, %v335
    %s338 = sld [smem:[#allocation10 + $0x183]]
    %v339 = vstv %s338
    %v340 = vmul.f32 %v318, %v339
    %v341 = vmul.f32 %v319, %v339
    %v342 = vadd.f32 %v304, %v340
    %v343 = vadd.f32 %v305, %v341
    %s344 = sld [smem:[#allocation7 + $0x4]]
    %v345 = vstv %s344
    %v346 = vmul.f32 %v172, %v345
    %v347 = vmul.f32 %v173, %v345
    %s348 = sld [smem:[#allocation9 + $0x4]]
    %v349 = vstv %s348
    %v350 = vadd.f32 %v346, %v349
    %v351 = vadd.f32 %v347, %v349
    %vm352 = vcmp.ge.f32.partialorder %v350, 0.0
    %vm353 = vcmp.ge.f32.partialorder %v351, 0.0
    %v354 = vmul.f32 %v350, 0.01
    %v355 = vmul.f32 %v351, 0.01
    %v356 = vsel %vm352, %v350, %v354
    %v357 = vsel %vm353, %v351, %v355
    %s358 = sld [smem:[#allocation10 + $0x200]]
    %v359 = vstv %s358
    %v360 = vmul.f32 %v356, %v359
    %v361 = vmul.f32 %v357, %v359
    %v362 = vadd.f32 %v324, %v360
    %v363 = vadd.f32 %v325, %v361
    %s364 = sld [smem:[#allocation10 + $0x201]]
    %v365 = vstv %s364
    %v366 = vmul.f32 %v356, %v365
    %v367 = vmul.f32 %v357, %v365
    %v368 = vadd.f32 %v330, %v366
    %v369 = vadd.f32 %v331, %v367
    %s370 = sld [smem:[#allocation10 + $0x202]]
    %v371 = vstv %s370
    %v372 = vmul.f32 %v356, %v371
    %v373 = vmul.f32 %v357, %v371
    %v374 = vadd.f32 %v336, %v372
    %v375 = vadd.f32 %v337, %v373
    %s376 = sld [smem:[#allocation10 + $0x203]]
    %v377 = vstv %s376
    %v378 = vmul.f32 %v356, %v377
    %v379 = vmul.f32 %v357, %v377
    %v380 = vadd.f32 %v342, %v378
    %v381 = vadd.f32 %v343, %v379
    %s382 = sld [smem:[#allocation7 + $0x5]]
    %v383 = vstv %s382
    %v384 = vmul.f32 %v172, %v383
    %v385 = vmul.f32 %v173, %v383
    %s386 = sld [smem:[#allocation9 + $0x5]]
    %v387 = vstv %s386
    %v388 = vadd.f32 %v384, %v387
    %v389 = vadd.f32 %v385, %v387
    %vm390 = vcmp.ge.f32.partialorder %v388, 0.0
    %vm391 = vcmp.ge.f32.partialorder %v389, 0.0
    %v392 = vmul.f32 %v388, 0.01
    %v393 = vmul.f32 %v389, 0.01
    %v394 = vsel %vm390, %v388, %v392
    %v395 = vsel %vm391, %v389, %v393
    %s396 = sld [smem:[#allocation10 + $0x280]]
    %v397 = vstv %s396
    %v398 = vmul.f32 %v394, %v397
    %v399 = vmul.f32 %v395, %v397
    %v400 = vadd.f32 %v362, %v398
    %v401 = vadd.f32 %v363, %v399
    %s402 = sld [smem:[#allocation10 + $0x281]]
    %v403 = vstv %s402
    %v404 = vmul.f32 %v394, %v403
    %v405 = vmul.f32 %v395, %v403
    %v406 = vadd.f32 %v368, %v404
    %v407 = vadd.f32 %v369, %v405
    %s408 = sld [smem:[#allocation10 + $0x282]]
    %v409 = vstv %s408
    %v410 = vmul.f32 %v394, %v409
    %v411 = vmul.f32 %v395, %v409
    %v412 = vadd.f32 %v374, %v410
    %v413 = vadd.f32 %v375, %v411
    %s414 = sld [smem:[#allocation10 + $0x283]]
    %v415 = vstv %s414
    %v416 = vmul.f32 %v394, %v415
    %v417 = vmul.f32 %v395, %v415
    %v418 = vadd.f32 %v380, %v416
    %v419 = vadd.f32 %v381, %v417
    %s420 = sld [smem:[#allocation7 + $0x6]]
    %v421 = vstv %s420
    %v422 = vmul.f32 %v172, %v421
    %v423 = vmul.f32 %v173, %v421
    %s424 = sld [smem:[#allocation9 + $0x6]]
    %v425 = vstv %s424
    %v426 = vadd.f32 %v422, %v425
    %v427 = vadd.f32 %v423, %v425
    %vm428 = vcmp.ge.f32.partialorder %v426, 0.0
    %vm429 = vcmp.ge.f32.partialorder %v427, 0.0
    %v430 = vmul.f32 %v426, 0.01
    %v431 = vmul.f32 %v427, 0.01
    %v432 = vsel %vm428, %v426, %v430
    %v433 = vsel %vm429, %v427, %v431
    %s434 = sld [smem:[#allocation10 + $0x300]]
    %v435 = vstv %s434
    %v436 = vmul.f32 %v432, %v435
    %v437 = vmul.f32 %v433, %v435
    %v438 = vadd.f32 %v400, %v436
    %v439 = vadd.f32 %v401, %v437
    %s440 = sld [smem:[#allocation10 + $0x301]]
    %v441 = vstv %s440
    %v442 = vmul.f32 %v432, %v441
    %v443 = vmul.f32 %v433, %v441
    %v444 = vadd.f32 %v406, %v442
    %v445 = vadd.f32 %v407, %v443
    %s446 = sld [smem:[#allocation10 + $0x302]]
    %v447 = vstv %s446
    %v448 = vmul.f32 %v432, %v447
    %v449 = vmul.f32 %v433, %v447
    %v450 = vadd.f32 %v412, %v448
    %v451 = vadd.f32 %v413, %v449
    %s452 = sld [smem:[#allocation10 + $0x303]]
    %v453 = vstv %s452
    %v454 = vmul.f32 %v432, %v453
    %v455 = vmul.f32 %v433, %v453
    %v456 = vadd.f32 %v418, %v454
    %v457 = vadd.f32 %v419, %v455
    %s458 = sld [smem:[#allocation7 + $0x7]]
    %v459 = vstv %s458
    %v460 = vmul.f32 %v172, %v459
    %v461 = vmul.f32 %v173, %v459
    %s462 = sld [smem:[#allocation9 + $0x7]]
    %v463 = vstv %s462
    %v464 = vadd.f32 %v460, %v463
    %v465 = vadd.f32 %v461, %v463
    %vm466 = vcmp.ge.f32.partialorder %v464, 0.0
    %vm467 = vcmp.ge.f32.partialorder %v465, 0.0
    %v468 = vmul.f32 %v464, 0.01
    %v469 = vmul.f32 %v465, 0.01
    %v470 = vsel %vm466, %v464, %v468
    %v471 = vsel %vm467, %v465, %v469
    %s472 = sld [smem:[#allocation10 + $0x380]]
    %v473 = vstv %s472
    %v474 = vmul.f32 %v470, %v473
    %v475 = vmul.f32 %v471, %v473
    %v476 = vadd.f32 %v438, %v474
    %v477 = vadd.f32 %v439, %v475
    %s478 = sld [smem:[#allocation10 + $0x381]]
    %v479 = vstv %s478
    %v480 = vmul.f32 %v470, %v479
    %v481 = vmul.f32 %v471, %v479
    %v482 = vadd.f32 %v444, %v480
    %v483 = vadd.f32 %v445, %v481
    %s484 = sld [smem:[#allocation10 + $0x382]]
    %v485 = vstv %s484
    %v486 = vmul.f32 %v470, %v485
    %v487 = vmul.f32 %v471, %v485
    %v488 = vadd.f32 %v450, %v486
    %v489 = vadd.f32 %v451, %v487
    %s490 = sld [smem:[#allocation10 + $0x383]]
    %v491 = vstv %s490
    %v492 = vmul.f32 %v470, %v491
    %v493 = vmul.f32 %v471, %v491
    %v494 = vadd.f32 %v456, %v492
    %v495 = vadd.f32 %v457, %v493
    %s496 = sld [smem:[#allocation7 + $0x8]]
    %v497 = vstv %s496
    %v498 = vmul.f32 %v172, %v497
    %v499 = vmul.f32 %v173, %v497
    %s500 = sld [smem:[#allocation9 + $0x8]]
    %v501 = vstv %s500
    %v502 = vadd.f32 %v498, %v501
    %v503 = vadd.f32 %v499, %v501
    %vm504 = vcmp.ge.f32.partialorder %v502, 0.0
    %vm505 = vcmp.ge.f32.partialorder %v503, 0.0
    %v506 = vmul.f32 %v502, 0.01
    %v507 = vmul.f32 %v503, 0.01
    %v508 = vsel %vm504, %v502, %v506
    %v509 = vsel %vm505, %v503, %v507
    %s510 = sld [smem:[#allocation10 + $0x400]]
    %v511 = vstv %s510
    %v512 = vmul.f32 %v508, %v511
    %v513 = vmul.f32 %v509, %v511
    %v514 = vadd.f32 %v476, %v512
    %v515 = vadd.f32 %v477, %v513
    %s516 = sld [smem:[#allocation10 + $0x401]]
    %v517 = vstv %s516
    %v518 = vmul.f32 %v508, %v517
    %v519 = vmul.f32 %v509, %v517
    %v520 = vadd.f32 %v482, %v518
    %v521 = vadd.f32 %v483, %v519
    %s522 = sld [smem:[#allocation10 + $0x402]]
    %v523 = vstv %s522
    %v524 = vmul.f32 %v508, %v523
    %v525 = vmul.f32 %v509, %v523
    %v526 = vadd.f32 %v488, %v524
    %v527 = vadd.f32 %v489, %v525
    %s528 = sld [smem:[#allocation10 + $0x403]]
    %v529 = vstv %s528
    %v530 = vmul.f32 %v508, %v529
    %v531 = vmul.f32 %v509, %v529
    %v532 = vadd.f32 %v494, %v530
    %v533 = vadd.f32 %v495, %v531
    %s534 = sld [smem:[#allocation7 + $0x9]]
    %v535 = vstv %s534
    %v536 = vmul.f32 %v172, %v535
    %v537 = vmul.f32 %v173, %v535
    %s538 = sld [smem:[#allocation9 + $0x9]]
    %v539 = vstv %s538
    %v540 = vadd.f32 %v536, %v539
    %v541 = vadd.f32 %v537, %v539
    %vm542 = vcmp.ge.f32.partialorder %v540, 0.0
    %vm543 = vcmp.ge.f32.partialorder %v541, 0.0
    %v544 = vmul.f32 %v540, 0.01
    %v545 = vmul.f32 %v541, 0.01
    %v546 = vsel %vm542, %v540, %v544
    %v547 = vsel %vm543, %v541, %v545
    %s548 = sld [smem:[#allocation10 + $0x480]]
    %v549 = vstv %s548
    %v550 = vmul.f32 %v546, %v549
    %v551 = vmul.f32 %v547, %v549
    %v552 = vadd.f32 %v514, %v550
    %v553 = vadd.f32 %v515, %v551
    %s554 = sld [smem:[#allocation10 + $0x481]]
    %v555 = vstv %s554
    %v556 = vmul.f32 %v546, %v555
    %v557 = vmul.f32 %v547, %v555
    %v558 = vadd.f32 %v520, %v556
    %v559 = vadd.f32 %v521, %v557
    %s560 = sld [smem:[#allocation10 + $0x482]]
    %v561 = vstv %s560
    %v562 = vmul.f32 %v546, %v561
    %v563 = vmul.f32 %v547, %v561
    %v564 = vadd.f32 %v526, %v562
    %v565 = vadd.f32 %v527, %v563
    %s566 = sld [smem:[#allocation10 + $0x483]]
    %v567 = vstv %s566
    %v568 = vmul.f32 %v546, %v567
    %v569 = vmul.f32 %v547, %v567
    %v570 = vadd.f32 %v532, %v568
    %v571 = vadd.f32 %v533, %v569
    %s572 = sld [smem:[#allocation7 + $0xa]]
    %v573 = vstv %s572
    %v574 = vmul.f32 %v172, %v573
    %v575 = vmul.f32 %v173, %v573
    %s576 = sld [smem:[#allocation9 + $0xa]]
    %v577 = vstv %s576
    %v578 = vadd.f32 %v574, %v577
    %v579 = vadd.f32 %v575, %v577
    %vm580 = vcmp.ge.f32.partialorder %v578, 0.0
    %vm581 = vcmp.ge.f32.partialorder %v579, 0.0
    %v582 = vmul.f32 %v578, 0.01
    %v583 = vmul.f32 %v579, 0.01
    %v584 = vsel %vm580, %v578, %v582
    %v585 = vsel %vm581, %v579, %v583
    %s586 = sld [smem:[#allocation10 + $0x500]]
    %v587 = vstv %s586
    %v588 = vmul.f32 %v584, %v587
    %v589 = vmul.f32 %v585, %v587
    %v590 = vadd.f32 %v552, %v588
    %v591 = vadd.f32 %v553, %v589
    %s592 = sld [smem:[#allocation10 + $0x501]]
    %v593 = vstv %s592
    %v594 = vmul.f32 %v584, %v593
    %v595 = vmul.f32 %v585, %v593
    %v596 = vadd.f32 %v558, %v594
    %v597 = vadd.f32 %v559, %v595
    %s598 = sld [smem:[#allocation10 + $0x502]]
    %v599 = vstv %s598
    %v600 = vmul.f32 %v584, %v599
    %v601 = vmul.f32 %v585, %v599
    %v602 = vadd.f32 %v564, %v600
    %v603 = vadd.f32 %v565, %v601
    %s604 = sld [smem:[#allocation10 + $0x503]]
    %v605 = vstv %s604
    %v606 = vmul.f32 %v584, %v605
    %v607 = vmul.f32 %v585, %v605
    %v608 = vadd.f32 %v570, %v606
    %v609 = vadd.f32 %v571, %v607
    %s610 = sld [smem:[#allocation7 + $0xb]]
    %v611 = vstv %s610
    %v612 = vmul.f32 %v172, %v611
    %v613 = vmul.f32 %v173, %v611
    %s614 = sld [smem:[#allocation9 + $0xb]]
    %v615 = vstv %s614
    %v616 = vadd.f32 %v612, %v615
    %v617 = vadd.f32 %v613, %v615
    %vm618 = vcmp.ge.f32.partialorder %v616, 0.0
    %vm619 = vcmp.ge.f32.partialorder %v617, 0.0
    %v620 = vmul.f32 %v616, 0.01
    %v621 = vmul.f32 %v617, 0.01
    %v622 = vsel %vm618, %v616, %v620
    %v623 = vsel %vm619, %v617, %v621
    %s624 = sld [smem:[#allocation10 + $0x580]]
    %v625 = vstv %s624
    %v626 = vmul.f32 %v622, %v625
    %v627 = vmul.f32 %v623, %v625
    %v628 = vadd.f32 %v590, %v626
    %v629 = vadd.f32 %v591, %v627
    %s630 = sld [smem:[#allocation10 + $0x581]]
    %v631 = vstv %s630
    %v632 = vmul.f32 %v622, %v631
    %v633 = vmul.f32 %v623, %v631
    %v634 = vadd.f32 %v596, %v632
    %v635 = vadd.f32 %v597, %v633
    %s636 = sld [smem:[#allocation10 + $0x582]]
    %v637 = vstv %s636
    %v638 = vmul.f32 %v622, %v637
    %v639 = vmul.f32 %v623, %v637
    %v640 = vadd.f32 %v602, %v638
    %v641 = vadd.f32 %v603, %v639
    %s642 = sld [smem:[#allocation10 + $0x583]]
    %v643 = vstv %s642
    %v644 = vmul.f32 %v622, %v643
    %v645 = vmul.f32 %v623, %v643
    %v646 = vadd.f32 %v608, %v644
    %v647 = vadd.f32 %v609, %v645
    %s648 = sld [smem:[#allocation7 + $0xc]]
    %v649 = vstv %s648
    %v650 = vmul.f32 %v172, %v649
    %v651 = vmul.f32 %v173, %v649
    %s652 = sld [smem:[#allocation9 + $0xc]]
    %v653 = vstv %s652
    %v654 = vadd.f32 %v650, %v653
    %v655 = vadd.f32 %v651, %v653
    %vm656 = vcmp.ge.f32.partialorder %v654, 0.0
    %vm657 = vcmp.ge.f32.partialorder %v655, 0.0
    %v658 = vmul.f32 %v654, 0.01
    %v659 = vmul.f32 %v655, 0.01
    %v660 = vsel %vm656, %v654, %v658
    %v661 = vsel %vm657, %v655, %v659
    %s662 = sld [smem:[#allocation10 + $0x600]]
    %v663 = vstv %s662
    %v664 = vmul.f32 %v660, %v663
    %v665 = vmul.f32 %v661, %v663
    %v666 = vadd.f32 %v628, %v664
    %v667 = vadd.f32 %v629, %v665
    %s668 = sld [smem:[#allocation10 + $0x601]]
    %v669 = vstv %s668
    %v670 = vmul.f32 %v660, %v669
    %v671 = vmul.f32 %v661, %v669
    %v672 = vadd.f32 %v634, %v670
    %v673 = vadd.f32 %v635, %v671
    %s674 = sld [smem:[#allocation10 + $0x602]]
    %v675 = vstv %s674
    %v676 = vmul.f32 %v660, %v675
    %v677 = vmul.f32 %v661, %v675
    %v678 = vadd.f32 %v640, %v676
    %v679 = vadd.f32 %v641, %v677
    %s680 = sld [smem:[#allocation10 + $0x603]]
    %v681 = vstv %s680
    %v682 = vmul.f32 %v660, %v681
    %v683 = vmul.f32 %v661, %v681
    %v684 = vadd.f32 %v646, %v682
    %v685 = vadd.f32 %v647, %v683
    %s686 = sld [smem:[#allocation7 + $0xd]]
    %v687 = vstv %s686
    %v688 = vmul.f32 %v172, %v687
    %v689 = vmul.f32 %v173, %v687
    %s690 = sld [smem:[#allocation9 + $0xd]]
    %v691 = vstv %s690
    %v692 = vadd.f32 %v688, %v691
    %v693 = vadd.f32 %v689, %v691
    %vm694 = vcmp.ge.f32.partialorder %v692, 0.0
    %vm695 = vcmp.ge.f32.partialorder %v693, 0.0
    %v696 = vmul.f32 %v692, 0.01
    %v697 = vmul.f32 %v693, 0.01
    %v698 = vsel %vm694, %v692, %v696
    %v699 = vsel %vm695, %v693, %v697
    %s700 = sld [smem:[#allocation10 + $0x680]]
    %v701 = vstv %s700
    %v702 = vmul.f32 %v698, %v701
    %v703 = vmul.f32 %v699, %v701
    %v704 = vadd.f32 %v666, %v702
    %v705 = vadd.f32 %v667, %v703
    %s706 = sld [smem:[#allocation10 + $0x681]]
    %v707 = vstv %s706
    %v708 = vmul.f32 %v698, %v707
    %v709 = vmul.f32 %v699, %v707
    %v710 = vadd.f32 %v672, %v708
    %v711 = vadd.f32 %v673, %v709
    %s712 = sld [smem:[#allocation10 + $0x682]]
    %v713 = vstv %s712
    %v714 = vmul.f32 %v698, %v713
    %v715 = vmul.f32 %v699, %v713
    %v716 = vadd.f32 %v678, %v714
    %v717 = vadd.f32 %v679, %v715
    %s718 = sld [smem:[#allocation10 + $0x683]]
    %v719 = vstv %s718
    %v720 = vmul.f32 %v698, %v719
    %v721 = vmul.f32 %v699, %v719
    %v722 = vadd.f32 %v684, %v720
    %v723 = vadd.f32 %v685, %v721
    %s724 = sld [smem:[#allocation7 + $0xe]]
    %v725 = vstv %s724
    %v726 = vmul.f32 %v172, %v725
    %v727 = vmul.f32 %v173, %v725
    %s728 = sld [smem:[#allocation9 + $0xe]]
    %v729 = vstv %s728
    %v730 = vadd.f32 %v726, %v729
    %v731 = vadd.f32 %v727, %v729
    %vm732 = vcmp.ge.f32.partialorder %v730, 0.0
    %vm733 = vcmp.ge.f32.partialorder %v731, 0.0
    %v734 = vmul.f32 %v730, 0.01
    %v735 = vmul.f32 %v731, 0.01
    %v736 = vsel %vm732, %v730, %v734
    %v737 = vsel %vm733, %v731, %v735
    %s738 = sld [smem:[#allocation10 + $0x700]]
    %v739 = vstv %s738
    %v740 = vmul.f32 %v736, %v739
    %v741 = vmul.f32 %v737, %v739
    %v742 = vadd.f32 %v704, %v740
    %v743 = vadd.f32 %v705, %v741
    %s744 = sld [smem:[#allocation10 + $0x701]]
    %v745 = vstv %s744
    %v746 = vmul.f32 %v736, %v745
    %v747 = vmul.f32 %v737, %v745
    %v748 = vadd.f32 %v710, %v746
    %v749 = vadd.f32 %v711, %v747
    %s750 = sld [smem:[#allocation10 + $0x702]]
    %v751 = vstv %s750
    %v752 = vmul.f32 %v736, %v751
    %v753 = vmul.f32 %v737, %v751
    %v754 = vadd.f32 %v716, %v752
    %v755 = vadd.f32 %v717, %v753
    %s756 = sld [smem:[#allocation10 + $0x703]]
    %v757 = vstv %s756
    %v758 = vmul.f32 %v736, %v757
    %v759 = vmul.f32 %v737, %v757
    %v760 = vadd.f32 %v722, %v758
    %v761 = vadd.f32 %v723, %v759
    %s762 = sld [smem:[#allocation7 + $0xf]]
    %v763 = vstv %s762
    %v764 = vmul.f32 %v172, %v763
    %v765 = vmul.f32 %v173, %v763
    %s766 = sld [smem:[#allocation9 + $0xf]]
    %v767 = vstv %s766
    %v768 = vadd.f32 %v764, %v767
    %v769 = vadd.f32 %v765, %v767
    %vm770 = vcmp.ge.f32.partialorder %v768, 0.0
    %vm771 = vcmp.ge.f32.partialorder %v769, 0.0
    %v772 = vmul.f32 %v768, 0.01
    %v773 = vmul.f32 %v769, 0.01
    %v774 = vsel %vm770, %v768, %v772
    %v775 = vsel %vm771, %v769, %v773
    %s776 = sld [smem:[#allocation10 + $0x780]]
    %v777 = vstv %s776
    %v778 = vmul.f32 %v774, %v777
    %v779 = vmul.f32 %v775, %v777
    %v780 = vadd.f32 %v742, %v778
    %v781 = vadd.f32 %v743, %v779
    %s782 = sld [smem:[#allocation10 + $0x781]]
    %v783 = vstv %s782
    %v784 = vmul.f32 %v774, %v783
    %v785 = vmul.f32 %v775, %v783
    %v786 = vadd.f32 %v748, %v784
    %v787 = vadd.f32 %v749, %v785
    %s788 = sld [smem:[#allocation10 + $0x782]]
    %v789 = vstv %s788
    %v790 = vmul.f32 %v774, %v789
    %v791 = vmul.f32 %v775, %v789
    %v792 = vadd.f32 %v754, %v790
    %v793 = vadd.f32 %v755, %v791
    %s794 = sld [smem:[#allocation10 + $0x783]]
    %v795 = vstv %s794
    %v796 = vmul.f32 %v774, %v795
    %v797 = vmul.f32 %v775, %v795
    %v798 = vadd.f32 %v760, %v796
    %v799 = vadd.f32 %v761, %v797
    %v800 = vmax.f32 %v780, %v786
    %v801 = vmax.f32 %v781, %v787
    %v802 = vmax.f32 %v800, %v792
    %v803 = vmax.f32 %v801, %v793
    %v804 = vmax.f32 %v802, %v798
    %v805 = vmax.f32 %v803, %v799
    %v806 = vsub.f32 %v780, %v804
    %v807 = vsub.f32 %v781, %v805
    %v808 = vmul.f32 %v806, 1.442695
    %v809 = vpow.pop %v808
    %v810 = vmul.f32 %v807, 1.442695
    %v811 = vpow.pop %v810
    %v812 = vsub.f32 %v786, %v804
    %v813 = vsub.f32 %v787, %v805
    %v814 = vmul.f32 %v812, 1.442695
    %v815 = vpow.pop %v814
    %v816 = vmul.f32 %v813, 1.442695
    %v817 = vpow.pop %v816
    %v818 = vadd.f32 %v809, %v815
    %v819 = vadd.f32 %v811, %v817
    %v820 = vsub.f32 %v792, %v804
    %v821 = vsub.f32 %v793, %v805
    %v822 = vmul.f32 %v820, 1.442695
    %v823 = vpow.pop %v822
    %v824 = vmul.f32 %v821, 1.442695
    %v825 = vpow.pop %v824
    %v826 = vadd.f32 %v818, %v823
    %v827 = vadd.f32 %v819, %v825
    %v828 = vsub.f32 %v798, %v804
    %v829 = vsub.f32 %v799, %v805
    %v830 = vmul.f32 %v828, 1.442695
    %v831 = vpow.pop %v830
    %v832 = vmul.f32 %v829, 1.442695
    %v833 = vpow.pop %v832
    %v834 = vadd.f32 %v826, %v831
    %v835 = vadd.f32 %v827, %v833
    %v836 = vrcp.pop %v834
    %v837 = vrcp.pop %v835
    %v838 = vld [vmem:[%s7] sm:$0xff]
    %v839 = vld [vmem:[%s7 + $0x8] sm:$0xff]
    %v840 = vpack.c.bf16 %v839, %v838
    %v841 = vld [vmem:[#allocation14] sm:$0xff]
    %v842 = vld [vmem:[#allocation14 + $0x8] sm:$0xff]
    %v843 = vpack.c.bf16 %v175, %v174
    %s844 = sld [smem:[#allocation2]]
    %s845 = sadd.f32 %s844, 1.0
    %v846 = vstv %s845
    %v847 = vmul.f32 %v841, %v846
    %v848 = vmul.f32 %v842, %v846
    %vm849 = vcmask 130048
    %v851 = vsel %vm849, %v843, 0
    %853 = vmatprep.subr.bf16.mxu0 0
    %854 = vmatpush1.bf16.msra.mxu0 0
    %855 = vmatprep.subr.bf16.mxu0 0
    %856 = vmatpush1.bf16.msra.mxu0 0
    %857 = vmatprep.subr.bf16.mxu0 0
    %858 = vmatpush1.bf16.msra.mxu0 0
    %859 = vmatprep.subr.bf16.mxu0 0
    %860 = vmatpush1.bf16.msra.mxu0 0
    %861 = vmatprep.subr.bf16.mxu0 0
    %862 = vmatpush1.bf16.msra.mxu0 0
    %863 = vmatprep.subr.bf16.mxu0 0
    %864 = vmatpush1.bf16.msra.mxu0 0
    %865 = vmatprep.subr.bf16.mxu0 0
    %866 = vmatpush1.bf16.msra.mxu0 0
    %867 = vmatprep.subr.bf16.mxu0 0
    %868 = vmatpush1.bf16.msra.mxu0 %v840
    %869 = vmatprep.subr.bf16.mxu0 0
    %870 = vmatpush2.bf16.msra.mxu0 0
    %871 = vmatprep.subr.bf16.mxu0 0
    %872 = vmatpush2.bf16.msra.mxu0 0
    %873 = vmatprep.subr.bf16.mxu0 0
    %874 = vmatpush2.bf16.msra.mxu0 0
    %875 = vmatprep.subr.bf16.mxu0 0
    %876 = vmatpush2.bf16.msra.mxu0 0
    %877 = vmatprep.subr.bf16.mxu0 0
    %878 = vmatpush2.bf16.msra.mxu0 0
    %879 = vmatprep.subr.bf16.mxu0 0
    %880 = vmatpush2.bf16.msra.mxu0 0
    %881 = vmatprep.subr.bf16.mxu0 0
    %882 = vmatpush2.bf16.msra.mxu0 0
    %883 = vmatprep.subr.bf16.mxu0 0
    %884 = vmatpush2.bf16.msra.mxu0 0
    %885 = vmatprep.mubr.bf16.mxu0 0
    %886 = vmatmul.mubr.bf16.gmra.mxu0 %v851
    %v887 = vpop.f32.mrf.mxu0
    %v888 = vadd.f32 %v847, %v887
    %v889 = vpop.f32.mrf.mxu0
    %v890 = vpop.f32.mrf.mxu0
    %v891 = vadd.f32 %v848, %v890
    %v892 = vpop.f32.mrf.mxu0
    %893 = vdwg.mxu0
    %v894 = vld [vmem:[#allocation16] sm:$0xff]
    %v895 = vld [vmem:[#allocation16 + $0x8] sm:$0xff]
    %v896 = vld [vmem:[#allocation16 + $0x10] sm:$0xff]
    %v897 = vld [vmem:[#allocation16 + $0x18] sm:$0xff]
    %v898 = vld [vmem:[%s10] sm:$0x1]
    %v900 = vlaneseq
    %v901 = vshrl.u32 %v900, 7
    %v902 = vsub.s32 0, %v901
    %v903 = vrot.slane %v898, %v902
    %vm905 = vcmask 261120
    %v907 = vsel %vm905, %v888, 0
    %v910 = vsel %vm905, %v891, 0
    %912 = vmatprep.subr.mxu0 0.0
    %913 = vmatpush1.msra.mxu0 0.0
    %914 = vmatprep.subr.mxu0 0.0
    %915 = vmatpush1.msra.mxu0 0.0
    %916 = vmatprep.subr.mxu0 0.0
    %917 = vmatpush1.msra.mxu0 0.0
    %918 = vmatprep.subr.mxu0 0.0
    %919 = vmatpush1.msra.mxu0 0.0
    %920 = vmatprep.subr.mxu0 0.0
    %921 = vmatpush1.msra.mxu0 0.0
    %922 = vmatprep.subr.mxu0 0.0
    %923 = vmatpush1.msra.mxu0 0.0
    %924 = vmatprep.subr.mxu0 0.0
    %925 = vmatpush1.msra.mxu0 0.0
    %926 = vmatprep.subr.mxu0 0.0
    %927 = vmatpush1.msra.mxu0 0.0
    %928 = vmatprep.subr.mxu0 0.0
    %929 = vmatpush1.msra.mxu0 0.0
    %930 = vmatprep.subr.mxu0 0.0
    %931 = vmatpush1.msra.mxu0 0.0
    %932 = vmatprep.subr.mxu0 0.0
    %933 = vmatpush1.msra.mxu0 0.0
    %934 = vmatprep.subr.mxu0 0.0
    %935 = vmatpush1.msra.mxu0 0.0
    %936 = vmatprep.subr.mxu0 0.0
    %937 = vmatpush1.msra.mxu0 %v897
    %938 = vmatprep.subr.mxu0 0.0
    %939 = vmatpush1.msra.mxu0 %v896
    %940 = vmatprep.subr.mxu0 0.0
    %941 = vmatpush1.msra.mxu0 %v895
    %942 = vmatprep.subr.mxu0 0.0
    %943 = vmatpush1.msra.mxu0 %v894
    %944 = vmatprep.subr.mxu0 0.0
    %945 = vmatpush2.msra.mxu0 0.0
    %946 = vmatprep.subr.mxu0 0.0
    %947 = vmatpush2.msra.mxu0 0.0
    %948 = vmatprep.subr.mxu0 0.0
    %949 = vmatpush2.msra.mxu0 0.0
    %950 = vmatprep.subr.mxu0 0.0
    %951 = vmatpush2.msra.mxu0 0.0
    %952 = vmatprep.subr.mxu0 0.0
    %953 = vmatpush2.msra.mxu0 0.0
    %954 = vmatprep.subr.mxu0 0.0
    %955 = vmatpush2.msra.mxu0 0.0
    %956 = vmatprep.subr.mxu0 0.0
    %957 = vmatpush2.msra.mxu0 0.0
    %958 = vmatprep.subr.mxu0 0.0
    %959 = vmatpush2.msra.mxu0 0.0
    %960 = vmatprep.subr.mxu0 0.0
    %961 = vmatpush2.msra.mxu0 0.0
    %962 = vmatprep.subr.mxu0 0.0
    %963 = vmatpush2.msra.mxu0 0.0
    %964 = vmatprep.subr.mxu0 0.0
    %965 = vmatpush2.msra.mxu0 0.0
    %966 = vmatprep.subr.mxu0 0.0
    %967 = vmatpush2.msra.mxu0 0.0
    %968 = vmatprep.subr.mxu0 0.0
    %969 = vmatpush2.msra.mxu0 0.0
    %970 = vmatprep.subr.mxu0 0.0
    %971 = vmatpush2.msra.mxu0 0.0
    %972 = vmatprep.subr.mxu0 0.0
    %973 = vmatpush2.msra.mxu0 0.0
    %974 = vmatprep.subr.mxu0 0.0
    %975 = vmatpush2.msra.mxu0 0.0
    %976 = vmatprep.mubr.f32.mxu0 0.0
    %977 = vmatmul.mubr.f32.gmra.mxu0 %v907
    %v978 = vpop.f32.mrf.mxu0
    %v979 = vadd.f32 %v903, %v978
    %v980 = vpop.f32.mrf.mxu0
    %981 = vmatprep.mubr.f32.mxu0 0.0
    %982 = vmatmul.mubr.f32.gmra.mxu0 %v910
    %v983 = vpop.f32.mrf.mxu0
    %v984 = vadd.f32 %v903, %v983
    %v985 = vpop.f32.mrf.mxu0
    %986 = vdwg.mxu0
    %vm987 = vcmp.ge.f32.partialorder %v979, 0.0
    %vm988 = vcmp.ge.f32.partialorder %v984, 0.0
    %v989 = vmul.f32 %v979, 0.01
    %v990 = vmul.f32 %v984, 0.01
    %v991 = vsel %vm987, %v979, %v989
    %v992 = vsel %vm988, %v984, %v990
    %v993 = vld [vmem:[#allocation17] sm:$0xff]
    %v994 = vld [vmem:[#allocation17 + $0x8] sm:$0xff]
    %v995 = vld [vmem:[#allocation17 + $0x10] sm:$0xff]
    %v996 = vld [vmem:[#allocation17 + $0x18] sm:$0xff]
    %v997 = vld [vmem:[#allocation19] sm:$0x1]
    %v999 = vlaneseq
    %v1000 = vshrl.u32 %v999, 7
    %v1001 = vsub.s32 0, %v1000
    %v1002 = vrot.slane %v997, %v1001
    %v1005 = vsel %vm905, %v991, 0
    %v1008 = vsel %vm905, %v992, 0
    %1010 = vmatprep.subr.mxu0 0.0
    %1011 = vmatpush1.msra.mxu0 0.0
    %1012 = vmatprep.subr.mxu0 0.0
    %1013 = vmatpush1.msra.mxu0 0.0
    %1014 = vmatprep.subr.mxu0 0.0
    %1015 = vmatpush1.msra.mxu0 0.0
    %1016 = vmatprep.subr.mxu0 0.0
    %1017 = vmatpush1.msra.mxu0 0.0
    %1018 = vmatprep.subr.mxu0 0.0
    %1019 = vmatpush1.msra.mxu0 0.0
    %1020 = vmatprep.subr.mxu0 0.0
    %1021 = vmatpush1.msra.mxu0 0.0
    %1022 = vmatprep.subr.mxu0 0.0
    %1023 = vmatpush1.msra.mxu0 0.0
    %1024 = vmatprep.subr.mxu0 0.0
    %1025 = vmatpush1.msra.mxu0 0.0
    %1026 = vmatprep.subr.mxu0 0.0
    %1027 = vmatpush1.msra.mxu0 0.0
    %1028 = vmatprep.subr.mxu0 0.0
    %1029 = vmatpush1.msra.mxu0 0.0
    %1030 = vmatprep.subr.mxu0 0.0
    %1031 = vmatpush1.msra.mxu0 0.0
    %1032 = vmatprep.subr.mxu0 0.0
    %1033 = vmatpush1.msra.mxu0 0.0
    %1034 = vmatprep.subr.mxu0 0.0
    %1035 = vmatpush1.msra.mxu0 %v996
    %1036 = vmatprep.subr.mxu0 0.0
    %1037 = vmatpush1.msra.mxu0 %v995
    %1038 = vmatprep.subr.mxu0 0.0
    %1039 = vmatpush1.msra.mxu0 %v994
    %1040 = vmatprep.subr.mxu0 0.0
    %1041 = vmatpush1.msra.mxu0 %v993
    %1042 = vmatprep.subr.mxu0 0.0
    %1043 = vmatpush2.msra.mxu0 0.0
    %1044 = vmatprep.subr.mxu0 0.0
    %1045 = vmatpush2.msra.mxu0 0.0
    %1046 = vmatprep.subr.mxu0 0.0
    %1047 = vmatpush2.msra.mxu0 0.0
    %1048 = vmatprep.subr.mxu0 0.0
    %1049 = vmatpush2.msra.mxu0 0.0
    %1050 = vmatprep.subr.mxu0 0.0
    %1051 = vmatpush2.msra.mxu0 0.0
    %1052 = vmatprep.subr.mxu0 0.0
    %1053 = vmatpush2.msra.mxu0 0.0
    %1054 = vmatprep.subr.mxu0 0.0
    %1055 = vmatpush2.msra.mxu0 0.0
    %1056 = vmatprep.subr.mxu0 0.0
    %1057 = vmatpush2.msra.mxu0 0.0
    %1058 = vmatprep.subr.mxu0 0.0
    %1059 = vmatpush2.msra.mxu0 0.0
    %1060 = vmatprep.subr.mxu0 0.0
    %1061 = vmatpush2.msra.mxu0 0.0
    %1062 = vmatprep.subr.mxu0 0.0
    %1063 = vmatpush2.msra.mxu0 0.0
    %1064 = vmatprep.subr.mxu0 0.0
    %1065 = vmatpush2.msra.mxu0 0.0
    %1066 = vmatprep.subr.mxu0 0.0
    %1067 = vmatpush2.msra.mxu0 0.0
    %1068 = vmatprep.subr.mxu0 0.0
    %1069 = vmatpush2.msra.mxu0 0.0
    %1070 = vmatprep.subr.mxu0 0.0
    %1071 = vmatpush2.msra.mxu0 0.0
    %1072 = vmatprep.subr.mxu0 0.0
    %1073 = vmatpush2.msra.mxu0 0.0
    %1074 = vmatprep.mubr.f32.mxu0 0.0
    %1075 = vmatmul.mubr.f32.gmra.mxu0 %v1005
    %v1076 = vpop.f32.mrf.mxu0
    %v1077 = vadd.f32 %v1002, %v1076
    %v1078 = vpop.f32.mrf.mxu0
    %1079 = vmatprep.mubr.f32.mxu0 0.0
    %1080 = vmatmul.mubr.f32.gmra.mxu0 %v1008
    %v1081 = vpop.f32.mrf.mxu0
    %v1082 = vadd.f32 %v1002, %v1081
    %v1083 = vpop.f32.mrf.mxu0
    %1084 = vdwg.mxu0
    %v1085 = vlaneseq
    %v1086 = vand.u32 %v1085, 127
    %v1087 = vmul.f32 %v809, %v836
    %v1088 = vmul.f32 %v811, %v837
    %v1089 = vmul.f32 %v1087, %v178
    %v1090 = vmul.f32 %v1088, %v179
    %v1091 = vsel %vm849, %v1089, 0.0
    %1092 = vadd.xlane.f32.xlu0 %v1091
    %v1093 = vpop.xlane.xlu0 %1092
    %v1094 = vsel %vm849, %v1090, 0.0
    %1095 = vadd.xlane.f32.xlu0 %v1094
    %v1096 = vpop.xlane.xlu0 %1095
    %v1097 = vadd.f32 %v1093, %v1096
    %v1098 = vrot.slane %v1097, 4
    %v1099 = vadd.f32 %v1097, %v1098
    %v1100 = vrot.slane %v1099, 2
    %v1101 = vadd.f32 %v1099, %v1100
    %v1102 = vrot.slane %v1101, 1
    %v1103 = vadd.f32 %v1101, %v1102
    %vm1104 = vcmp.eq.s32.totalorder %v1086, 0
    %v1105 = vsel %vm1104, %v1103, 0.0
    %v1106 = vadd.f32 %v1105, 0.0
    %v1107 = vmul.f32 %v1089, %v1089
    %v1108 = vmul.f32 %v1090, %v1090
    %v1109 = vsel %vm849, %v1107, 0.0
    %1110 = vadd.xlane.f32.xlu0 %v1109
    %v1111 = vpop.xlane.xlu0 %1110
    %v1112 = vsel %vm849, %v1108, 0.0
    %1113 = vadd.xlane.f32.xlu0 %v1112
    %v1114 = vpop.xlane.xlu0 %1113
    %v1115 = vadd.f32 %v1111, %v1114
    %v1116 = vrot.slane %v1115, 4
    %v1117 = vadd.f32 %v1115, %v1116
    %v1118 = vrot.slane %v1117, 2
    %v1119 = vadd.f32 %v1117, %v1118
    %v1120 = vrot.slane %v1119, 1
    %v1121 = vadd.f32 %v1119, %v1120
    %v1122 = vadd.f32 %v1121, 0.0
    %v1123 = vmul.f32 %v1087, %v174
    %v1124 = vmul.f32 %v1088, %v175
    %v1125 = vpack.c.bf16 %v1124, %v1123
    %s1126 = sld [smem:[#allocation2 + $0x1]]
    %s1127 = sadd.f32 %s1126, 1.0
    %v1128 = vstv %s1127
    %v1129 = vmul.f32 %v841, %v1128
    %v1130 = vmul.f32 %v842, %v1128
    %v1132 = vsel %vm849, %v1125, 0
    %1134 = vmatprep.subr.bf16.mxu0 0
    %1135 = vmatpush1.bf16.msra.mxu0 0
    %1136 = vmatprep.subr.bf16.mxu0 0
    %1137 = vmatpush1.bf16.msra.mxu0 0
    %1138 = vmatprep.subr.bf16.mxu0 0
    %1139 = vmatpush1.bf16.msra.mxu0 0
    %1140 = vmatprep.subr.bf16.mxu0 0
    %1141 = vmatpush1.bf16.msra.mxu0 0
    %1142 = vmatprep.subr.bf16.mxu0 0
    %1143 = vmatpush1.bf16.msra.mxu0 0
    %1144 = vmatprep.subr.bf16.mxu0 0
    %1145 = vmatpush1.bf16.msra.mxu0 0
    %1146 = vmatprep.subr.bf16.mxu0 0
    %1147 = vmatpush1.bf16.msra.mxu0 0
    %1148 = vmatprep.subr.bf16.mxu0 0
    %1149 = vmatpush1.bf16.msra.mxu0 %v840
    %1150 = vmatprep.subr.bf16.mxu0 0
    %1151 = vmatpush2.bf16.msra.mxu0 0
    %1152 = vmatprep.subr.bf16.mxu0 0
    %1153 = vmatpush2.bf16.msra.mxu0 0
    %1154 = vmatprep.subr.bf16.mxu0 0
    %1155 = vmatpush2.bf16.msra.mxu0 0
    %1156 = vmatprep.subr.bf16.mxu0 0
    %1157 = vmatpush2.bf16.msra.mxu0 0
    %1158 = vmatprep.subr.bf16.mxu0 0
    %1159 = vmatpush2.bf16.msra.mxu0 0
    %1160 = vmatprep.subr.bf16.mxu0 0
    %1161 = vmatpush2.bf16.msra.mxu0 0
    %1162 = vmatprep.subr.bf16.mxu0 0
    %1163 = vmatpush2.bf16.msra.mxu0 0
    %1164 = vmatprep.subr.bf16.mxu0 0
    %1165 = vmatpush2.bf16.msra.mxu0 0
    %1166 = vmatprep.mubr.bf16.mxu0 0
    %1167 = vmatmul.mubr.bf16.gmra.mxu0 %v1132
    %v1168 = vpop.f32.mrf.mxu0
    %v1169 = vadd.f32 %v1129, %v1168
    %v1170 = vpop.f32.mrf.mxu0
    %v1171 = vpop.f32.mrf.mxu0
    %v1172 = vadd.f32 %v1130, %v1171
    %v1173 = vpop.f32.mrf.mxu0
    %1174 = vdwg.mxu0
    %s1175 = scalar_lea.vmem [#allocation16], 32
    %v1176 = vld [vmem:[%s1175] sm:$0xff]
    %v1177 = vld [vmem:[%s1175 + $0x8] sm:$0xff]
    %v1178 = vld [vmem:[%s1175 + $0x10] sm:$0xff]
    %v1179 = vld [vmem:[%s1175 + $0x18] sm:$0xff]
    %s1180 = scalar_lea.vmem %s10, 1
    %v1181 = vld [vmem:[%s1180] sm:$0x1]
    %v1183 = vlaneseq
    %v1184 = vshrl.u32 %v1183, 7
    %v1185 = vsub.s32 0, %v1184
    %v1186 = vrot.slane %v1181, %v1185
    %v1189 = vsel %vm905, %v1169, 0
    %v1192 = vsel %vm905, %v1172, 0
    %1194 = vmatprep.subr.mxu0 0.0
    %1195 = vmatpush1.msra.mxu0 0.0
    %1196 = vmatprep.subr.mxu0 0.0
    %1197 = vmatpush1.msra.mxu0 0.0
    %1198 = vmatprep.subr.mxu0 0.0
    %1199 = vmatpush1.msra.mxu0 0.0
    %1200 = vmatprep.subr.mxu0 0.0
    %1201 = vmatpush1.msra.mxu0 0.0
    %1202 = vmatprep.subr.mxu0 0.0
    %1203 = vmatpush1.msra.mxu0 0.0
    %1204 = vmatprep.subr.mxu0 0.0
    %1205 = vmatpush1.msra.mxu0 0.0
    %1206 = vmatprep.subr.mxu0 0.0
    %1207 = vmatpush1.msra.mxu0 0.0
    %1208 = vmatprep.subr.mxu0 0.0
    %1209 = vmatpush1.msra.mxu0 0.0
    %1210 = vmatprep.subr.mxu0 0.0
    %1211 = vmatpush1.msra.mxu0 0.0
    %1212 = vmatprep.subr.mxu0 0.0
    %1213 = vmatpush1.msra.mxu0 0.0
    %1214 = vmatprep.subr.mxu0 0.0
    %1215 = vmatpush1.msra.mxu0 0.0
    %1216 = vmatprep.subr.mxu0 0.0
    %1217 = vmatpush1.msra.mxu0 0.0
    %1218 = vmatprep.subr.mxu0 0.0
    %1219 = vmatpush1.msra.mxu0 %v1179
    %1220 = vmatprep.subr.mxu0 0.0
    %1221 = vmatpush1.msra.mxu0 %v1178
    %1222 = vmatprep.subr.mxu0 0.0
    %1223 = vmatpush1.msra.mxu0 %v1177
    %1224 = vmatprep.subr.mxu0 0.0
    %1225 = vmatpush1.msra.mxu0 %v1176
    %1226 = vmatprep.subr.mxu0 0.0
    %1227 = vmatpush2.msra.mxu0 0.0
    %1228 = vmatprep.subr.mxu0 0.0
    %1229 = vmatpush2.msra.mxu0 0.0
    %1230 = vmatprep.subr.mxu0 0.0
    %1231 = vmatpush2.msra.mxu0 0.0
    %1232 = vmatprep.subr.mxu0 0.0
    %1233 = vmatpush2.msra.mxu0 0.0
    %1234 = vmatprep.subr.mxu0 0.0
    %1235 = vmatpush2.msra.mxu0 0.0
    %1236 = vmatprep.subr.mxu0 0.0
    %1237 = vmatpush2.msra.mxu0 0.0
    %1238 = vmatprep.subr.mxu0 0.0
    %1239 = vmatpush2.msra.mxu0 0.0
    %1240 = vmatprep.subr.mxu0 0.0
    %1241 = vmatpush2.msra.mxu0 0.0
    %1242 = vmatprep.subr.mxu0 0.0
    %1243 = vmatpush2.msra.mxu0 0.0
    %1244 = vmatprep.subr.mxu0 0.0
    %1245 = vmatpush2.msra.mxu0 0.0
    %1246 = vmatprep.subr.mxu0 0.0
    %1247 = vmatpush2.msra.mxu0 0.0
    %1248 = vmatprep.subr.mxu0 0.0
    %1249 = vmatpush2.msra.mxu0 0.0
    %1250 = vmatprep.subr.mxu0 0.0
    %1251 = vmatpush2.msra.mxu0 0.0
    %1252 = vmatprep.subr.mxu0 0.0
    %1253 = vmatpush2.msra.mxu0 0.0
    %1254 = vmatprep.subr.mxu0 0.0
    %1255 = vmatpush2.msra.mxu0 0.0
    %1256 = vmatprep.subr.mxu0 0.0
    %1257 = vmatpush2.msra.mxu0 0.0
    %1258 = vmatprep.mubr.f32.mxu0 0.0
    %1259 = vmatmul.mubr.f32.gmra.mxu0 %v1189
    %v1260 = vpop.f32.mrf.mxu0
    %v1261 = vadd.f32 %v1186, %v1260
    %v1262 = vpop.f32.mrf.mxu0
    %1263 = vmatprep.mubr.f32.mxu0 0.0
    %1264 = vmatmul.mubr.f32.gmra.mxu0 %v1192
    %v1265 = vpop.f32.mrf.mxu0
    %v1266 = vadd.f32 %v1186, %v1265
    %v1267 = vpop.f32.mrf.mxu0
    %1268 = vdwg.mxu0
    %vm1269 = vcmp.ge.f32.partialorder %v1261, 0.0
    %vm1270 = vcmp.ge.f32.partialorder %v1266, 0.0
    %v1271 = vmul.f32 %v1261, 0.01
    %v1272 = vmul.f32 %v1266, 0.01
    %v1273 = vsel %vm1269, %v1261, %v1271
    %v1274 = vsel %vm1270, %v1266, %v1272
    %s1275 = scalar_lea.vmem [#allocation17], 32
    %v1276 = vld [vmem:[%s1275] sm:$0xff]
    %v1277 = vld [vmem:[%s1275 + $0x8] sm:$0xff]
    %v1278 = vld [vmem:[%s1275 + $0x10] sm:$0xff]
    %v1279 = vld [vmem:[%s1275 + $0x18] sm:$0xff]
    %s1280 = scalar_lea.vmem [#allocation19], 1
    %v1281 = vld [vmem:[%s1280] sm:$0x1]
    %v1283 = vlaneseq
    %v1284 = vshrl.u32 %v1283, 7
    %v1285 = vsub.s32 0, %v1284
    %v1286 = vrot.slane %v1281, %v1285
    %v1289 = vsel %vm905, %v1273, 0
    %v1292 = vsel %vm905, %v1274, 0
    %1294 = vmatprep.subr.mxu0 0.0
    %1295 = vmatpush1.msra.mxu0 0.0
    %1296 = vmatprep.subr.mxu0 0.0
    %1297 = vmatpush1.msra.mxu0 0.0
    %1298 = vmatprep.subr.mxu0 0.0
    %1299 = vmatpush1.msra.mxu0 0.0
    %1300 = vmatprep.subr.mxu0 0.0
    %1301 = vmatpush1.msra.mxu0 0.0
    %1302 = vmatprep.subr.mxu0 0.0
    %1303 = vmatpush1.msra.mxu0 0.0
    %1304 = vmatprep.subr.mxu0 0.0
    %1305 = vmatpush1.msra.mxu0 0.0
    %1306 = vmatprep.subr.mxu0 0.0
    %1307 = vmatpush1.msra.mxu0 0.0
    %1308 = vmatprep.subr.mxu0 0.0
    %1309 = vmatpush1.msra.mxu0 0.0
    %1310 = vmatprep.subr.mxu0 0.0
    %1311 = vmatpush1.msra.mxu0 0.0
    %1312 = vmatprep.subr.mxu0 0.0
    %1313 = vmatpush1.msra.mxu0 0.0
    %1314 = vmatprep.subr.mxu0 0.0
    %1315 = vmatpush1.msra.mxu0 0.0
    %1316 = vmatprep.subr.mxu0 0.0
    %1317 = vmatpush1.msra.mxu0 0.0
    %1318 = vmatprep.subr.mxu0 0.0
    %1319 = vmatpush1.msra.mxu0 %v1279
    %1320 = vmatprep.subr.mxu0 0.0
    %1321 = vmatpush1.msra.mxu0 %v1278
    %1322 = vmatprep.subr.mxu0 0.0
    %1323 = vmatpush1.msra.mxu0 %v1277
    %1324 = vmatprep.subr.mxu0 0.0
    %1325 = vmatpush1.msra.mxu0 %v1276
    %1326 = vmatprep.subr.mxu0 0.0
    %1327 = vmatpush2.msra.mxu0 0.0
    %1328 = vmatprep.subr.mxu0 0.0
    %1329 = vmatpush2.msra.mxu0 0.0
    %1330 = vmatprep.subr.mxu0 0.0
    %1331 = vmatpush2.msra.mxu0 0.0
    %1332 = vmatprep.subr.mxu0 0.0
    %1333 = vmatpush2.msra.mxu0 0.0
    %1334 = vmatprep.subr.mxu0 0.0
    %1335 = vmatpush2.msra.mxu0 0.0
    %1336 = vmatprep.subr.mxu0 0.0
    %1337 = vmatpush2.msra.mxu0 0.0
    %1338 = vmatprep.subr.mxu0 0.0
    %1339 = vmatpush2.msra.mxu0 0.0
    %1340 = vmatprep.subr.mxu0 0.0
    %1341 = vmatpush2.msra.mxu0 0.0
    %1342 = vmatprep.subr.mxu0 0.0
    %1343 = vmatpush2.msra.mxu0 0.0
    %1344 = vmatprep.subr.mxu0 0.0
    %1345 = vmatpush2.msra.mxu0 0.0
    %1346 = vmatprep.subr.mxu0 0.0
    %1347 = vmatpush2.msra.mxu0 0.0
    %1348 = vmatprep.subr.mxu0 0.0
    %1349 = vmatpush2.msra.mxu0 0.0
    %1350 = vmatprep.subr.mxu0 0.0
    %1351 = vmatpush2.msra.mxu0 0.0
    %1352 = vmatprep.subr.mxu0 0.0
    %1353 = vmatpush2.msra.mxu0 0.0
    %1354 = vmatprep.subr.mxu0 0.0
    %1355 = vmatpush2.msra.mxu0 0.0
    %1356 = vmatprep.subr.mxu0 0.0
    %1357 = vmatpush2.msra.mxu0 0.0
    %1358 = vmatprep.mubr.f32.mxu0 0.0
    %1359 = vmatmul.mubr.f32.gmra.mxu0 %v1289
    %v1360 = vpop.f32.mrf.mxu0
    %v1361 = vadd.f32 %v1286, %v1360
    %v1362 = vpop.f32.mrf.mxu0
    %1363 = vmatprep.mubr.f32.mxu0 0.0
    %1364 = vmatmul.mubr.f32.gmra.mxu0 %v1292
    %v1365 = vpop.f32.mrf.mxu0
    %v1366 = vadd.f32 %v1286, %v1365
    %v1367 = vpop.f32.mrf.mxu0
    %1368 = vdwg.mxu0
    %v1369 = vadd.f32 %v1077, %v1361
    %v1370 = vadd.f32 %v1082, %v1366
    %v1371 = vmul.f32 %v815, %v836
    %v1372 = vmul.f32 %v817, %v837
    %v1373 = vmul.f32 %v1371, %v178
    %v1374 = vmul.f32 %v1372, %v179
    %v1375 = vsel %vm849, %v1373, 0.0
    %1376 = vadd.xlane.f32.xlu0 %v1375
    %v1377 = vpop.xlane.xlu0 %1376
    %v1378 = vsel %vm849, %v1374, 0.0
    %1379 = vadd.xlane.f32.xlu0 %v1378
    %v1380 = vpop.xlane.xlu0 %1379
    %v1381 = vadd.f32 %v1377, %v1380
    %v1382 = vrot.slane %v1381, 4
    %v1383 = vadd.f32 %v1381, %v1382
    %v1384 = vrot.slane %v1383, 2
    %v1385 = vadd.f32 %v1383, %v1384
    %v1386 = vrot.slane %v1385, 1
    %v1387 = vadd.f32 %v1385, %v1386
    %vm1388 = vcmp.eq.s32.totalorder %v1086, 1
    %v1389 = vsel %vm1388, %v1387, 0.0
    %v1390 = vadd.f32 %v1106, %v1389
    %v1391 = vmul.f32 %v1373, %v1373
    %v1392 = vmul.f32 %v1374, %v1374
    %v1393 = vsel %vm849, %v1391, 0.0
    %1394 = vadd.xlane.f32.xlu0 %v1393
    %v1395 = vpop.xlane.xlu0 %1394
    %v1396 = vsel %vm849, %v1392, 0.0
    %1397 = vadd.xlane.f32.xlu0 %v1396
    %v1398 = vpop.xlane.xlu0 %1397
    %v1399 = vadd.f32 %v1395, %v1398
    %v1400 = vrot.slane %v1399, 4
    %v1401 = vadd.f32 %v1399, %v1400
    %v1402 = vrot.slane %v1401, 2
    %v1403 = vadd.f32 %v1401, %v1402
    %v1404 = vrot.slane %v1403, 1
    %v1405 = vadd.f32 %v1403, %v1404
    %v1406 = vadd.f32 %v1122, %v1405
    %v1407 = vmul.f32 %v1371, %v174
    %v1408 = vmul.f32 %v1372, %v175
    %v1409 = vpack.c.bf16 %v1408, %v1407
    %s1410 = sld [smem:[#allocation2 + $0x2]]
    %s1411 = sadd.f32 %s1410, 1.0
    %v1412 = vstv %s1411
    %v1413 = vmul.f32 %v841, %v1412
    %v1414 = vmul.f32 %v842, %v1412
    %v1416 = vsel %vm849, %v1409, 0
    %1418 = vmatprep.subr.bf16.mxu0 0
    %1419 = vmatpush1.bf16.msra.mxu0 0
    %1420 = vmatprep.subr.bf16.mxu0 0
    %1421 = vmatpush1.bf16.msra.mxu0 0
    %1422 = vmatprep.subr.bf16.mxu0 0
    %1423 = vmatpush1.bf16.msra.mxu0 0
    %1424 = vmatprep.subr.bf16.mxu0 0
    %1425 = vmatpush1.bf16.msra.mxu0 0
    %1426 = vmatprep.subr.bf16.mxu0 0
    %1427 = vmatpush1.bf16.msra.mxu0 0
    %1428 = vmatprep.subr.bf16.mxu0 0
    %1429 = vmatpush1.bf16.msra.mxu0 0
    %1430 = vmatprep.subr.bf16.mxu0 0
    %1431 = vmatpush1.bf16.msra.mxu0 0
    %1432 = vmatprep.subr.bf16.mxu0 0
    %1433 = vmatpush1.bf16.msra.mxu0 %v840
    %1434 = vmatprep.subr.bf16.mxu0 0
    %1435 = vmatpush2.bf16.msra.mxu0 0
    %1436 = vmatprep.subr.bf16.mxu0 0
    %1437 = vmatpush2.bf16.msra.mxu0 0
    %1438 = vmatprep.subr.bf16.mxu0 0
    %1439 = vmatpush2.bf16.msra.mxu0 0
    %1440 = vmatprep.subr.bf16.mxu0 0
    %1441 = vmatpush2.bf16.msra.mxu0 0
    %1442 = vmatprep.subr.bf16.mxu0 0
    %1443 = vmatpush2.bf16.msra.mxu0 0
    %1444 = vmatprep.subr.bf16.mxu0 0
    %1445 = vmatpush2.bf16.msra.mxu0 0
    %1446 = vmatprep.subr.bf16.mxu0 0
    %1447 = vmatpush2.bf16.msra.mxu0 0
    %1448 = vmatprep.subr.bf16.mxu0 0
    %1449 = vmatpush2.bf16.msra.mxu0 0
    %1450 = vmatprep.mubr.bf16.mxu0 0
    %1451 = vmatmul.mubr.bf16.gmra.mxu0 %v1416
    %v1452 = vpop.f32.mrf.mxu0
    %v1453 = vadd.f32 %v1413, %v1452
    %v1454 = vpop.f32.mrf.mxu0
    %v1455 = vpop.f32.mrf.mxu0
    %v1456 = vadd.f32 %v1414, %v1455
    %v1457 = vpop.f32.mrf.mxu0
    %1458 = vdwg.mxu0
    %s1459 = scalar_lea.vmem [#allocation16], 64
    %v1460 = vld [vmem:[%s1459] sm:$0xff]
    %v1461 = vld [vmem:[%s1459 + $0x8] sm:$0xff]
    %v1462 = vld [vmem:[%s1459 + $0x10] sm:$0xff]
    %v1463 = vld [vmem:[%s1459 + $0x18] sm:$0xff]
    %s1464 = scalar_lea.vmem %s10, 2
    %v1465 = vld [vmem:[%s1464] sm:$0x1]
    %v1467 = vlaneseq
    %v1468 = vshrl.u32 %v1467, 7
    %v1469 = vsub.s32 0, %v1468
    %v1470 = vrot.slane %v1465, %v1469
    %v1473 = vsel %vm905, %v1453, 0
    %v1476 = vsel %vm905, %v1456, 0
    %1478 = vmatprep.subr.mxu0 0.0
    %1479 = vmatpush1.msra.mxu0 0.0
    %1480 = vmatprep.subr.mxu0 0.0
    %1481 = vmatpush1.msra.mxu0 0.0
    %1482 = vmatprep.subr.mxu0 0.0
    %1483 = vmatpush1.msra.mxu0 0.0
    %1484 = vmatprep.subr.mxu0 0.0
    %1485 = vmatpush1.msra.mxu0 0.0
    %1486 = vmatprep.subr.mxu0 0.0
    %1487 = vmatpush1.msra.mxu0 0.0
    %1488 = vmatprep.subr.mxu0 0.0
    %1489 = vmatpush1.msra.mxu0 0.0
    %1490 = vmatprep.subr.mxu0 0.0
    %1491 = vmatpush1.msra.mxu0 0.0
    %1492 = vmatprep.subr.mxu0 0.0
    %1493 = vmatpush1.msra.mxu0 0.0
    %1494 = vmatprep.subr.mxu0 0.0
    %1495 = vmatpush1.msra.mxu0 0.0
    %1496 = vmatprep.subr.mxu0 0.0
    %1497 = vmatpush1.msra.mxu0 0.0
    %1498 = vmatprep.subr.mxu0 0.0
    %1499 = vmatpush1.msra.mxu0 0.0
    %1500 = vmatprep.subr.mxu0 0.0
    %1501 = vmatpush1.msra.mxu0 0.0
    %1502 = vmatprep.subr.mxu0 0.0
    %1503 = vmatpush1.msra.mxu0 %v1463
    %1504 = vmatprep.subr.mxu0 0.0
    %1505 = vmatpush1.msra.mxu0 %v1462
    %1506 = vmatprep.subr.mxu0 0.0
    %1507 = vmatpush1.msra.mxu0 %v1461
    %1508 = vmatprep.subr.mxu0 0.0
    %1509 = vmatpush1.msra.mxu0 %v1460
    %1510 = vmatprep.subr.mxu0 0.0
    %1511 = vmatpush2.msra.mxu0 0.0
    %1512 = vmatprep.subr.mxu0 0.0
    %1513 = vmatpush2.msra.mxu0 0.0
    %1514 = vmatprep.subr.mxu0 0.0
    %1515 = vmatpush2.msra.mxu0 0.0
    %1516 = vmatprep.subr.mxu0 0.0
    %1517 = vmatpush2.msra.mxu0 0.0
    %1518 = vmatprep.subr.mxu0 0.0
    %1519 = vmatpush2.msra.mxu0 0.0
    %1520 = vmatprep.subr.mxu0 0.0
    %1521 = vmatpush2.msra.mxu0 0.0
    %1522 = vmatprep.subr.mxu0 0.0
    %1523 = vmatpush2.msra.mxu0 0.0
    %1524 = vmatprep.subr.mxu0 0.0
    %1525 = vmatpush2.msra.mxu0 0.0
    %1526 = vmatprep.subr.mxu0 0.0
    %1527 = vmatpush2.msra.mxu0 0.0
    %1528 = vmatprep.subr.mxu0 0.0
    %1529 = vmatpush2.msra.mxu0 0.0
    %1530 = vmatprep.subr.mxu0 0.0
    %1531 = vmatpush2.msra.mxu0 0.0
    %1532 = vmatprep.subr.mxu0 0.0
    %1533 = vmatpush2.msra.mxu0 0.0
    %1534 = vmatprep.subr.mxu0 0.0
    %1535 = vmatpush2.msra.mxu0 0.0
    %1536 = vmatprep.subr.mxu0 0.0
    %1537 = vmatpush2.msra.mxu0 0.0
    %1538 = vmatprep.subr.mxu0 0.0
    %1539 = vmatpush2.msra.mxu0 0.0
    %1540 = vmatprep.subr.mxu0 0.0
    %1541 = vmatpush2.msra.mxu0 0.0
    %1542 = vmatprep.mubr.f32.mxu0 0.0
    %1543 = vmatmul.mubr.f32.gmra.mxu0 %v1473
    %v1544 = vpop.f32.mrf.mxu0
    %v1545 = vadd.f32 %v1470, %v1544
    %v1546 = vpop.f32.mrf.mxu0
    %1547 = vmatprep.mubr.f32.mxu0 0.0
    %1548 = vmatmul.mubr.f32.gmra.mxu0 %v1476
    %v1549 = vpop.f32.mrf.mxu0
    %v1550 = vadd.f32 %v1470, %v1549
    %v1551 = vpop.f32.mrf.mxu0
    %1552 = vdwg.mxu0
    %vm1553 = vcmp.ge.f32.partialorder %v1545, 0.0
    %vm1554 = vcmp.ge.f32.partialorder %v1550, 0.0
    %v1555 = vmul.f32 %v1545, 0.01
    %v1556 = vmul.f32 %v1550, 0.01
    %v1557 = vsel %vm1553, %v1545, %v1555
    %v1558 = vsel %vm1554, %v1550, %v1556
    %s1559 = scalar_lea.vmem [#allocation17], 64
    %v1560 = vld [vmem:[%s1559] sm:$0xff]
    %v1561 = vld [vmem:[%s1559 + $0x8] sm:$0xff]
    %v1562 = vld [vmem:[%s1559 + $0x10] sm:$0xff]
    %v1563 = vld [vmem:[%s1559 + $0x18] sm:$0xff]
    %s1564 = scalar_lea.vmem [#allocation19], 2
    %v1565 = vld [vmem:[%s1564] sm:$0x1]
    %v1567 = vlaneseq
    %v1568 = vshrl.u32 %v1567, 7
    %v1569 = vsub.s32 0, %v1568
    %v1570 = vrot.slane %v1565, %v1569
    %v1573 = vsel %vm905, %v1557, 0
    %v1576 = vsel %vm905, %v1558, 0
    %1578 = vmatprep.subr.mxu0 0.0
    %1579 = vmatpush1.msra.mxu0 0.0
    %1580 = vmatprep.subr.mxu0 0.0
    %1581 = vmatpush1.msra.mxu0 0.0
    %1582 = vmatprep.subr.mxu0 0.0
    %1583 = vmatpush1.msra.mxu0 0.0
    %1584 = vmatprep.subr.mxu0 0.0
    %1585 = vmatpush1.msra.mxu0 0.0
    %1586 = vmatprep.subr.mxu0 0.0
    %1587 = vmatpush1.msra.mxu0 0.0
    %1588 = vmatprep.subr.mxu0 0.0
    %1589 = vmatpush1.msra.mxu0 0.0
    %1590 = vmatprep.subr.mxu0 0.0
    %1591 = vmatpush1.msra.mxu0 0.0
    %1592 = vmatprep.subr.mxu0 0.0
    %1593 = vmatpush1.msra.mxu0 0.0
    %1594 = vmatprep.subr.mxu0 0.0
    %1595 = vmatpush1.msra.mxu0 0.0
    %1596 = vmatprep.subr.mxu0 0.0
    %1597 = vmatpush1.msra.mxu0 0.0
    %1598 = vmatprep.subr.mxu0 0.0
    %1599 = vmatpush1.msra.mxu0 0.0
    %1600 = vmatprep.subr.mxu0 0.0
    %1601 = vmatpush1.msra.mxu0 0.0
    %1602 = vmatprep.subr.mxu0 0.0
    %1603 = vmatpush1.msra.mxu0 %v1563
    %1604 = vmatprep.subr.mxu0 0.0
    %1605 = vmatpush1.msra.mxu0 %v1562
    %1606 = vmatprep.subr.mxu0 0.0
    %1607 = vmatpush1.msra.mxu0 %v1561
    %1608 = vmatprep.subr.mxu0 0.0
    %1609 = vmatpush1.msra.mxu0 %v1560
    %1610 = vmatprep.subr.mxu0 0.0
    %1611 = vmatpush2.msra.mxu0 0.0
    %1612 = vmatprep.subr.mxu0 0.0
    %1613 = vmatpush2.msra.mxu0 0.0
    %1614 = vmatprep.subr.mxu0 0.0
    %1615 = vmatpush2.msra.mxu0 0.0
    %1616 = vmatprep.subr.mxu0 0.0
    %1617 = vmatpush2.msra.mxu0 0.0
    %1618 = vmatprep.subr.mxu0 0.0
    %1619 = vmatpush2.msra.mxu0 0.0
    %1620 = vmatprep.subr.mxu0 0.0
    %1621 = vmatpush2.msra.mxu0 0.0
    %1622 = vmatprep.subr.mxu0 0.0
    %1623 = vmatpush2.msra.mxu0 0.0
    %1624 = vmatprep.subr.mxu0 0.0
    %1625 = vmatpush2.msra.mxu0 0.0
    %1626 = vmatprep.subr.mxu0 0.0
    %1627 = vmatpush2.msra.mxu0 0.0
    %1628 = vmatprep.subr.mxu0 0.0
    %1629 = vmatpush2.msra.mxu0 0.0
    %1630 = vmatprep.subr.mxu0 0.0
    %1631 = vmatpush2.msra.mxu0 0.0
    %1632 = vmatprep.subr.mxu0 0.0
    %1633 = vmatpush2.msra.mxu0 0.0
    %1634 = vmatprep.subr.mxu0 0.0
    %1635 = vmatpush2.msra.mxu0 0.0
    %1636 = vmatprep.subr.mxu0 0.0
    %1637 = vmatpush2.msra.mxu0 0.0
    %1638 = vmatprep.subr.mxu0 0.0
    %1639 = vmatpush2.msra.mxu0 0.0
    %1640 = vmatprep.subr.mxu0 0.0
    %1641 = vmatpush2.msra.mxu0 0.0
    %1642 = vmatprep.mubr.f32.mxu0 0.0
    %1643 = vmatmul.mubr.f32.gmra.mxu0 %v1573
    %v1644 = vpop.f32.mrf.mxu0
    %v1645 = vadd.f32 %v1570, %v1644
    %v1646 = vpop.f32.mrf.mxu0
    %1647 = vmatprep.mubr.f32.mxu0 0.0
    %1648 = vmatmul.mubr.f32.gmra.mxu0 %v1576
    %v1649 = vpop.f32.mrf.mxu0
    %v1650 = vadd.f32 %v1570, %v1649
    %v1651 = vpop.f32.mrf.mxu0
    %1652 = vdwg.mxu0
    %v1653 = vadd.f32 %v1369, %v1645
    %v1654 = vadd.f32 %v1370, %v1650
    %v1655 = vmul.f32 %v823, %v836
    %v1656 = vmul.f32 %v825, %v837
    %v1657 = vmul.f32 %v1655, %v178
    %v1658 = vmul.f32 %v1656, %v179
    %v1659 = vsel %vm849, %v1657, 0.0
    %1660 = vadd.xlane.f32.xlu0 %v1659
    %v1661 = vpop.xlane.xlu0 %1660
    %v1662 = vsel %vm849, %v1658, 0.0
    %1663 = vadd.xlane.f32.xlu0 %v1662
    %v1664 = vpop.xlane.xlu0 %1663
    %v1665 = vadd.f32 %v1661, %v1664
    %v1666 = vrot.slane %v1665, 4
    %v1667 = vadd.f32 %v1665, %v1666
    %v1668 = vrot.slane %v1667, 2
    %v1669 = vadd.f32 %v1667, %v1668
    %v1670 = vrot.slane %v1669, 1
    %v1671 = vadd.f32 %v1669, %v1670
    %vm1672 = vcmp.eq.s32.totalorder %v1086, 2
    %v1673 = vsel %vm1672, %v1671, 0.0
    %v1674 = vadd.f32 %v1390, %v1673
    %v1675 = vmul.f32 %v1657, %v1657
    %v1676 = vmul.f32 %v1658, %v1658
    %v1677 = vsel %vm849, %v1675, 0.0
    %1678 = vadd.xlane.f32.xlu0 %v1677
    %v1679 = vpop.xlane.xlu0 %1678
    %v1680 = vsel %vm849, %v1676, 0.0
    %1681 = vadd.xlane.f32.xlu0 %v1680
    %v1682 = vpop.xlane.xlu0 %1681
    %v1683 = vadd.f32 %v1679, %v1682
    %v1684 = vrot.slane %v1683, 4
    %v1685 = vadd.f32 %v1683, %v1684
    %v1686 = vrot.slane %v1685, 2
    %v1687 = vadd.f32 %v1685, %v1686
    %v1688 = vrot.slane %v1687, 1
    %v1689 = vadd.f32 %v1687, %v1688
    %v1690 = vadd.f32 %v1406, %v1689
    %v1691 = vmul.f32 %v1655, %v174
    %v1692 = vmul.f32 %v1656, %v175
    %v1693 = vpack.c.bf16 %v1692, %v1691
    %s1694 = sld [smem:[#allocation2 + $0x3]]
    %s1695 = sadd.f32 %s1694, 1.0
    %v1696 = vstv %s1695
    %v1697 = vmul.f32 %v841, %v1696
    %v1698 = vmul.f32 %v842, %v1696
    %v1700 = vsel %vm849, %v1693, 0
    %1702 = vmatprep.subr.bf16.mxu0 0
    %1703 = vmatpush1.bf16.msra.mxu0 0
    %1704 = vmatprep.subr.bf16.mxu0 0
    %1705 = vmatpush1.bf16.msra.mxu0 0
    %1706 = vmatprep.subr.bf16.mxu0 0
    %1707 = vmatpush1.bf16.msra.mxu0 0
    %1708 = vmatprep.subr.bf16.mxu0 0
    %1709 = vmatpush1.bf16.msra.mxu0 0
    %1710 = vmatprep.subr.bf16.mxu0 0
    %1711 = vmatpush1.bf16.msra.mxu0 0
    %1712 = vmatprep.subr.bf16.mxu0 0
    %1713 = vmatpush1.bf16.msra.mxu0 0
    %1714 = vmatprep.subr.bf16.mxu0 0
    %1715 = vmatpush1.bf16.msra.mxu0 0
    %1716 = vmatprep.subr.bf16.mxu0 0
    %1717 = vmatpush1.bf16.msra.mxu0 %v840
    %1718 = vmatprep.subr.bf16.mxu0 0
    %1719 = vmatpush2.bf16.msra.mxu0 0
    %1720 = vmatprep.subr.bf16.mxu0 0
    %1721 = vmatpush2.bf16.msra.mxu0 0
    %1722 = vmatprep.subr.bf16.mxu0 0
    %1723 = vmatpush2.bf16.msra.mxu0 0
    %1724 = vmatprep.subr.bf16.mxu0 0
    %1725 = vmatpush2.bf16.msra.mxu0 0
    %1726 = vmatprep.subr.bf16.mxu0 0
    %1727 = vmatpush2.bf16.msra.mxu0 0
    %1728 = vmatprep.subr.bf16.mxu0 0
    %1729 = vmatpush2.bf16.msra.mxu0 0
    %1730 = vmatprep.subr.bf16.mxu0 0
    %1731 = vmatpush2.bf16.msra.mxu0 0
    %1732 = vmatprep.subr.bf16.mxu0 0
    %1733 = vmatpush2.bf16.msra.mxu0 0
    %1734 = vmatprep.mubr.bf16.mxu0 0
    %1735 = vmatmul.mubr.bf16.gmra.mxu0 %v1700
    %v1736 = vpop.f32.mrf.mxu0
    %v1737 = vadd.f32 %v1697, %v1736
    %v1738 = vpop.f32.mrf.mxu0
    %v1739 = vpop.f32.mrf.mxu0
    %v1740 = vadd.f32 %v1698, %v1739
    %v1741 = vpop.f32.mrf.mxu0
    %1742 = vdwg.mxu0
    %s1743 = scalar_lea.vmem [#allocation16], 96
    %v1744 = vld [vmem:[%s1743] sm:$0xff]
    %v1745 = vld [vmem:[%s1743 + $0x8] sm:$0xff]
    %v1746 = vld [vmem:[%s1743 + $0x10] sm:$0xff]
    %v1747 = vld [vmem:[%s1743 + $0x18] sm:$0xff]
    %s1748 = scalar_lea.vmem %s10, 3
    %v1749 = vld [vmem:[%s1748] sm:$0x1]
    %v1751 = vlaneseq
    %v1752 = vshrl.u32 %v1751, 7
    %v1753 = vsub.s32 0, %v1752
    %v1754 = vrot.slane %v1749, %v1753
    %v1757 = vsel %vm905, %v1737, 0
    %v1760 = vsel %vm905, %v1740, 0
    %1762 = vmatprep.subr.mxu0 0.0
    %1763 = vmatpush1.msra.mxu0 0.0
    %1764 = vmatprep.subr.mxu0 0.0
    %1765 = vmatpush1.msra.mxu0 0.0
    %1766 = vmatprep.subr.mxu0 0.0
    %1767 = vmatpush1.msra.mxu0 0.0
    %1768 = vmatprep.subr.mxu0 0.0
    %1769 = vmatpush1.msra.mxu0 0.0
    %1770 = vmatprep.subr.mxu0 0.0
    %1771 = vmatpush1.msra.mxu0 0.0
    %1772 = vmatprep.subr.mxu0 0.0
    %1773 = vmatpush1.msra.mxu0 0.0
    %1774 = vmatprep.subr.mxu0 0.0
    %1775 = vmatpush1.msra.mxu0 0.0
    %1776 = vmatprep.subr.mxu0 0.0
    %1777 = vmatpush1.msra.mxu0 0.0
    %1778 = vmatprep.subr.mxu0 0.0
    %1779 = vmatpush1.msra.mxu0 0.0
    %1780 = vmatprep.subr.mxu0 0.0
    %1781 = vmatpush1.msra.mxu0 0.0
    %1782 = vmatprep.subr.mxu0 0.0
    %1783 = vmatpush1.msra.mxu0 0.0
    %1784 = vmatprep.subr.mxu0 0.0
    %1785 = vmatpush1.msra.mxu0 0.0
    %1786 = vmatprep.subr.mxu0 0.0
    %1787 = vmatpush1.msra.mxu0 %v1747
    %1788 = vmatprep.subr.mxu0 0.0
    %1789 = vmatpush1.msra.mxu0 %v1746
    %1790 = vmatprep.subr.mxu0 0.0
    %1791 = vmatpush1.msra.mxu0 %v1745
    %1792 = vmatprep.subr.mxu0 0.0
    %1793 = vmatpush1.msra.mxu0 %v1744
    %1794 = vmatprep.subr.mxu0 0.0
    %1795 = vmatpush2.msra.mxu0 0.0
    %1796 = vmatprep.subr.mxu0 0.0
    %1797 = vmatpush2.msra.mxu0 0.0
    %1798 = vmatprep.subr.mxu0 0.0
    %1799 = vmatpush2.msra.mxu0 0.0
    %1800 = vmatprep.subr.mxu0 0.0
    %1801 = vmatpush2.msra.mxu0 0.0
    %1802 = vmatprep.subr.mxu0 0.0
    %1803 = vmatpush2.msra.mxu0 0.0
    %1804 = vmatprep.subr.mxu0 0.0
    %1805 = vmatpush2.msra.mxu0 0.0
    %1806 = vmatprep.subr.mxu0 0.0
    %1807 = vmatpush2.msra.mxu0 0.0
    %1808 = vmatprep.subr.mxu0 0.0
    %1809 = vmatpush2.msra.mxu0 0.0
    %1810 = vmatprep.subr.mxu0 0.0
    %1811 = vmatpush2.msra.mxu0 0.0
    %1812 = vmatprep.subr.mxu0 0.0
    %1813 = vmatpush2.msra.mxu0 0.0
    %1814 = vmatprep.subr.mxu0 0.0
    %1815 = vmatpush2.msra.mxu0 0.0
    %1816 = vmatprep.subr.mxu0 0.0
    %1817 = vmatpush2.msra.mxu0 0.0
    %1818 = vmatprep.subr.mxu0 0.0
    %1819 = vmatpush2.msra.mxu0 0.0
    %1820 = vmatprep.subr.mxu0 0.0
    %1821 = vmatpush2.msra.mxu0 0.0
    %1822 = vmatprep.subr.mxu0 0.0
    %1823 = vmatpush2.msra.mxu0 0.0
    %1824 = vmatprep.subr.mxu0 0.0
    %1825 = vmatpush2.msra.mxu0 0.0
    %1826 = vmatprep.mubr.f32.mxu0 0.0
    %1827 = vmatmul.mubr.f32.gmra.mxu0 %v1757
    %v1828 = vpop.f32.mrf.mxu0
    %v1829 = vadd.f32 %v1754, %v1828
    %v1830 = vpop.f32.mrf.mxu0
    %1831 = vmatprep.mubr.f32.mxu0 0.0
    %1832 = vmatmul.mubr.f32.gmra.mxu0 %v1760
    %v1833 = vpop.f32.mrf.mxu0
    %v1834 = vadd.f32 %v1754, %v1833
    %v1835 = vpop.f32.mrf.mxu0
    %1836 = vdwg.mxu0
    %vm1837 = vcmp.ge.f32.partialorder %v1829, 0.0
    %vm1838 = vcmp.ge.f32.partialorder %v1834, 0.0
    %v1839 = vmul.f32 %v1829, 0.01
    %v1840 = vmul.f32 %v1834, 0.01
    %v1841 = vsel %vm1837, %v1829, %v1839
    %v1842 = vsel %vm1838, %v1834, %v1840
    %s1843 = scalar_lea.vmem [#allocation17], 96
    %v1844 = vld [vmem:[%s1843] sm:$0xff]
    %v1845 = vld [vmem:[%s1843 + $0x8] sm:$0xff]
    %v1846 = vld [vmem:[%s1843 + $0x10] sm:$0xff]
    %v1847 = vld [vmem:[%s1843 + $0x18] sm:$0xff]
    %s1848 = scalar_lea.vmem [#allocation19], 3
    %v1849 = vld [vmem:[%s1848] sm:$0x1]
    %v1851 = vlaneseq
    %v1852 = vshrl.u32 %v1851, 7
    %v1853 = vsub.s32 0, %v1852
    %v1854 = vrot.slane %v1849, %v1853
    %v1857 = vsel %vm905, %v1841, 0
    %v1860 = vsel %vm905, %v1842, 0
    %1862 = vmatprep.subr.mxu0 0.0
    %1863 = vmatpush1.msra.mxu0 0.0
    %1864 = vmatprep.subr.mxu0 0.0
    %1865 = vmatpush1.msra.mxu0 0.0
    %1866 = vmatprep.subr.mxu0 0.0
    %1867 = vmatpush1.msra.mxu0 0.0
    %1868 = vmatprep.subr.mxu0 0.0
    %1869 = vmatpush1.msra.mxu0 0.0
    %1870 = vmatprep.subr.mxu0 0.0
    %1871 = vmatpush1.msra.mxu0 0.0
    %1872 = vmatprep.subr.mxu0 0.0
    %1873 = vmatpush1.msra.mxu0 0.0
    %1874 = vmatprep.subr.mxu0 0.0
    %1875 = vmatpush1.msra.mxu0 0.0
    %1876 = vmatprep.subr.mxu0 0.0
    %1877 = vmatpush1.msra.mxu0 0.0
    %1878 = vmatprep.subr.mxu0 0.0
    %1879 = vmatpush1.msra.mxu0 0.0
    %1880 = vmatprep.subr.mxu0 0.0
    %1881 = vmatpush1.msra.mxu0 0.0
    %1882 = vmatprep.subr.mxu0 0.0
    %1883 = vmatpush1.msra.mxu0 0.0
    %1884 = vmatprep.subr.mxu0 0.0
    %1885 = vmatpush1.msra.mxu0 0.0
    %1886 = vmatprep.subr.mxu0 0.0
    %1887 = vmatpush1.msra.mxu0 %v1847
    %1888 = vmatprep.subr.mxu0 0.0
    %1889 = vmatpush1.msra.mxu0 %v1846
    %1890 = vmatprep.subr.mxu0 0.0
    %1891 = vmatpush1.msra.mxu0 %v1845
    %1892 = vmatprep.subr.mxu0 0.0
    %1893 = vmatpush1.msra.mxu0 %v1844
    %1894 = vmatprep.subr.mxu0 0.0
    %1895 = vmatpush2.msra.mxu0 0.0
    %1896 = vmatprep.subr.mxu0 0.0
    %1897 = vmatpush2.msra.mxu0 0.0
    %1898 = vmatprep.subr.mxu0 0.0
    %1899 = vmatpush2.msra.mxu0 0.0
    %1900 = vmatprep.subr.mxu0 0.0
    %1901 = vmatpush2.msra.mxu0 0.0
    %1902 = vmatprep.subr.mxu0 0.0
    %1903 = vmatpush2.msra.mxu0 0.0
    %1904 = vmatprep.subr.mxu0 0.0
    %1905 = vmatpush2.msra.mxu0 0.0
    %1906 = vmatprep.subr.mxu0 0.0
    %1907 = vmatpush2.msra.mxu0 0.0
    %1908 = vmatprep.subr.mxu0 0.0
    %1909 = vmatpush2.msra.mxu0 0.0
    %1910 = vmatprep.subr.mxu0 0.0
    %1911 = vmatpush2.msra.mxu0 0.0
    %1912 = vmatprep.subr.mxu0 0.0
    %1913 = vmatpush2.msra.mxu0 0.0
    %1914 = vmatprep.subr.mxu0 0.0
    %1915 = vmatpush2.msra.mxu0 0.0
    %1916 = vmatprep.subr.mxu0 0.0
    %1917 = vmatpush2.msra.mxu0 0.0
    %1918 = vmatprep.subr.mxu0 0.0
    %1919 = vmatpush2.msra.mxu0 0.0
    %1920 = vmatprep.subr.mxu0 0.0
    %1921 = vmatpush2.msra.mxu0 0.0
    %1922 = vmatprep.subr.mxu0 0.0
    %1923 = vmatpush2.msra.mxu0 0.0
    %1924 = vmatprep.subr.mxu0 0.0
    %1925 = vmatpush2.msra.mxu0 0.0
    %1926 = vmatprep.mubr.f32.mxu0 0.0
    %1927 = vmatmul.mubr.f32.gmra.mxu0 %v1857
    %v1928 = vpop.f32.mrf.mxu0
    %v1929 = vadd.f32 %v1854, %v1928
    %v1930 = vpop.f32.mrf.mxu0
    %1931 = vmatprep.mubr.f32.mxu0 0.0
    %1932 = vmatmul.mubr.f32.gmra.mxu0 %v1860
    %v1933 = vpop.f32.mrf.mxu0
    %v1934 = vadd.f32 %v1854, %v1933
    %v1935 = vpop.f32.mrf.mxu0
    %1936 = vdwg.mxu0
    %v1937 = vadd.f32 %v1653, %v1929
    %v1938 = vadd.f32 %v1654, %v1934
    %v1939 = vmul.f32 %v831, %v836
    %v1940 = vmul.f32 %v833, %v837
    %v1941 = vmul.f32 %v1939, %v178
    %v1942 = vmul.f32 %v1940, %v179
    %v1943 = vsel %vm849, %v1941, 0.0
    %1944 = vadd.xlane.f32.xlu0 %v1943
    %v1945 = vpop.xlane.xlu0 %1944
    %v1946 = vsel %vm849, %v1942, 0.0
    %1947 = vadd.xlane.f32.xlu0 %v1946
    %v1948 = vpop.xlane.xlu0 %1947
    %v1949 = vadd.f32 %v1945, %v1948
    %v1950 = vrot.slane %v1949, 4
    %v1951 = vadd.f32 %v1949, %v1950
    %v1952 = vrot.slane %v1951, 2
    %v1953 = vadd.f32 %v1951, %v1952
    %v1954 = vrot.slane %v1953, 1
    %v1955 = vadd.f32 %v1953, %v1954
    %vm1956 = vcmp.eq.s32.totalorder %v1086, 3
    %v1957 = vsel %vm1956, %v1955, 0.0
    %v1958 = vadd.f32 %v1674, %v1957
    %v1959 = vmul.f32 %v1941, %v1941
    %v1960 = vmul.f32 %v1942, %v1942
    %v1961 = vsel %vm849, %v1959, 0.0
    %1962 = vadd.xlane.f32.xlu0 %v1961
    %v1963 = vpop.xlane.xlu0 %1962
    %v1964 = vsel %vm849, %v1960, 0.0
    %1965 = vadd.xlane.f32.xlu0 %v1964
    %v1966 = vpop.xlane.xlu0 %1965
    %v1967 = vadd.f32 %v1963, %v1966
    %v1968 = vrot.slane %v1967, 4
    %v1969 = vadd.f32 %v1967, %v1968
    %v1970 = vrot.slane %v1969, 2
    %v1971 = vadd.f32 %v1969, %v1970
    %v1972 = vrot.slane %v1971, 1
    %v1973 = vadd.f32 %v1971, %v1972
    %v1974 = vadd.f32 %v1690, %v1973
    %v1975 = vmul.f32 %v1939, %v174
    %v1976 = vmul.f32 %v1940, %v175
    %v1977 = vpack.c.bf16 %v1976, %v1975
    %s1978 = sld [smem:[#allocation2 + $0x4]]
    %s1979 = sadd.f32 %s1978, 1.0
    %v1980 = vstv %s1979
    %v1981 = vmul.f32 %v841, %v1980
    %v1982 = vmul.f32 %v842, %v1980
    %v1984 = vsel %vm849, %v1977, 0
    %1986 = vmatprep.subr.bf16.mxu0 0
    %1987 = vmatpush1.bf16.msra.mxu0 0
    %1988 = vmatprep.subr.bf16.mxu0 0
    %1989 = vmatpush1.bf16.msra.mxu0 0
    %1990 = vmatprep.subr.bf16.mxu0 0
    %1991 = vmatpush1.bf16.msra.mxu0 0
    %1992 = vmatprep.subr.bf16.mxu0 0
    %1993 = vmatpush1.bf16.msra.mxu0 0
    %1994 = vmatprep.subr.bf16.mxu0 0
    %1995 = vmatpush1.bf16.msra.mxu0 0
    %1996 = vmatprep.subr.bf16.mxu0 0
    %1997 = vmatpush1.bf16.msra.mxu0 0
    %1998 = vmatprep.subr.bf16.mxu0 0
    %1999 = vmatpush1.bf16.msra.mxu0 0
    %2000 = vmatprep.subr.bf16.mxu0 0
    %2001 = vmatpush1.bf16.msra.mxu0 %v840
    %2002 = vmatprep.subr.bf16.mxu0 0
    %2003 = vmatpush2.bf16.msra.mxu0 0
    %2004 = vmatprep.subr.bf16.mxu0 0
    %2005 = vmatpush2.bf16.msra.mxu0 0
    %2006 = vmatprep.subr.bf16.mxu0 0
    %2007 = vmatpush2.bf16.msra.mxu0 0
    %2008 = vmatprep.subr.bf16.mxu0 0
    %2009 = vmatpush2.bf16.msra.mxu0 0
    %2010 = vmatprep.subr.bf16.mxu0 0
    %2011 = vmatpush2.bf16.msra.mxu0 0
    %2012 = vmatprep.subr.bf16.mxu0 0
    %2013 = vmatpush2.bf16.msra.mxu0 0
    %2014 = vmatprep.subr.bf16.mxu0 0
    %2015 = vmatpush2.bf16.msra.mxu0 0
    %2016 = vmatprep.subr.bf16.mxu0 0
    %2017 = vmatpush2.bf16.msra.mxu0 0
    %2018 = vmatprep.mubr.bf16.mxu0 0
    %2019 = vmatmul.mubr.bf16.gmra.mxu0 %v1984
    %v2020 = vpop.f32.mrf.mxu0
    %v2021 = vadd.f32 %v1981, %v2020
    %v2022 = vpop.f32.mrf.mxu0
    %v2023 = vpop.f32.mrf.mxu0
    %v2024 = vadd.f32 %v1982, %v2023
    %v2025 = vpop.f32.mrf.mxu0
    %2026 = vdwg.mxu0
    %s2027 = scalar_lea.vmem [#allocation16], 128
    %v2028 = vld [vmem:[%s2027] sm:$0xff]
    %v2029 = vld [vmem:[%s2027 + $0x8] sm:$0xff]
    %v2030 = vld [vmem:[%s2027 + $0x10] sm:$0xff]
    %v2031 = vld [vmem:[%s2027 + $0x18] sm:$0xff]
    %s2032 = scalar_lea.vmem %s10, 4
    %v2033 = vld [vmem:[%s2032] sm:$0x1]
    %v2035 = vlaneseq
    %v2036 = vshrl.u32 %v2035, 7
    %v2037 = vsub.s32 0, %v2036
    %v2038 = vrot.slane %v2033, %v2037
    %v2041 = vsel %vm905, %v2021, 0
    %v2044 = vsel %vm905, %v2024, 0
    %2046 = vmatprep.subr.mxu0 0.0
    %2047 = vmatpush1.msra.mxu0 0.0
    %2048 = vmatprep.subr.mxu0 0.0
    %2049 = vmatpush1.msra.mxu0 0.0
    %2050 = vmatprep.subr.mxu0 0.0
    %2051 = vmatpush1.msra.mxu0 0.0
    %2052 = vmatprep.subr.mxu0 0.0
    %2053 = vmatpush1.msra.mxu0 0.0
    %2054 = vmatprep.subr.mxu0 0.0
    %2055 = vmatpush1.msra.mxu0 0.0
    %2056 = vmatprep.subr.mxu0 0.0
    %2057 = vmatpush1.msra.mxu0 0.0
    %2058 = vmatprep.subr.mxu0 0.0
    %2059 = vmatpush1.msra.mxu0 0.0
    %2060 = vmatprep.subr.mxu0 0.0
    %2061 = vmatpush1.msra.mxu0 0.0
    %2062 = vmatprep.subr.mxu0 0.0
    %2063 = vmatpush1.msra.mxu0 0.0
    %2064 = vmatprep.subr.mxu0 0.0
    %2065 = vmatpush1.msra.mxu0 0.0
    %2066 = vmatprep.subr.mxu0 0.0
    %2067 = vmatpush1.msra.mxu0 0.0
    %2068 = vmatprep.subr.mxu0 0.0
    %2069 = vmatpush1.msra.mxu0 0.0
    %2070 = vmatprep.subr.mxu0 0.0
    %2071 = vmatpush1.msra.mxu0 %v2031
    %2072 = vmatprep.subr.mxu0 0.0
    %2073 = vmatpush1.msra.mxu0 %v2030
    %2074 = vmatprep.subr.mxu0 0.0
    %2075 = vmatpush1.msra.mxu0 %v2029
    %2076 = vmatprep.subr.mxu0 0.0
    %2077 = vmatpush1.msra.mxu0 %v2028
    %2078 = vmatprep.subr.mxu0 0.0
    %2079 = vmatpush2.msra.mxu0 0.0
    %2080 = vmatprep.subr.mxu0 0.0
    %2081 = vmatpush2.msra.mxu0 0.0
    %2082 = vmatprep.subr.mxu0 0.0
    %2083 = vmatpush2.msra.mxu0 0.0
    %2084 = vmatprep.subr.mxu0 0.0
    %2085 = vmatpush2.msra.mxu0 0.0
    %2086 = vmatprep.subr.mxu0 0.0
    %2087 = vmatpush2.msra.mxu0 0.0
    %2088 = vmatprep.subr.mxu0 0.0
    %2089 = vmatpush2.msra.mxu0 0.0
    %2090 = vmatprep.subr.mxu0 0.0
    %2091 = vmatpush2.msra.mxu0 0.0
    %2092 = vmatprep.subr.mxu0 0.0
    %2093 = vmatpush2.msra.mxu0 0.0
    %2094 = vmatprep.subr.mxu0 0.0
    %2095 = vmatpush2.msra.mxu0 0.0
    %2096 = vmatprep.subr.mxu0 0.0
    %2097 = vmatpush2.msra.mxu0 0.0
    %2098 = vmatprep.subr.mxu0 0.0
    %2099 = vmatpush2.msra.mxu0 0.0
    %2100 = vmatprep.subr.mxu0 0.0
    %2101 = vmatpush2.msra.mxu0 0.0
    %2102 = vmatprep.subr.mxu0 0.0
    %2103 = vmatpush2.msra.mxu0 0.0
    %2104 = vmatprep.subr.mxu0 0.0
    %2105 = vmatpush2.msra.mxu0 0.0
    %2106 = vmatprep.subr.mxu0 0.0
    %2107 = vmatpush2.msra.mxu0 0.0
    %2108 = vmatprep.subr.mxu0 0.0
    %2109 = vmatpush2.msra.mxu0 0.0
    %2110 = vmatprep.mubr.f32.mxu0 0.0
    %2111 = vmatmul.mubr.f32.gmra.mxu0 %v2041
    %v2112 = vpop.f32.mrf.mxu0
    %v2113 = vadd.f32 %v2038, %v2112
    %v2114 = vpop.f32.mrf.mxu0
    %2115 = vmatprep.mubr.f32.mxu0 0.0
    %2116 = vmatmul.mubr.f32.gmra.mxu0 %v2044
    %v2117 = vpop.f32.mrf.mxu0
    %v2118 = vadd.f32 %v2038, %v2117
    %v2119 = vpop.f32.mrf.mxu0
    %2120 = vdwg.mxu0
    %vm2121 = vcmp.ge.f32.partialorder %v2113, 0.0
    %vm2122 = vcmp.ge.f32.partialorder %v2118, 0.0
    %v2123 = vmul.f32 %v2113, 0.01
    %v2124 = vmul.f32 %v2118, 0.01
    %v2125 = vsel %vm2121, %v2113, %v2123
    %v2126 = vsel %vm2122, %v2118, %v2124
    %s2127 = scalar_lea.vmem [#allocation17], 128
    %v2128 = vld [vmem:[%s2127] sm:$0xff]
    %v2129 = vld [vmem:[%s2127 + $0x8] sm:$0xff]
    %v2130 = vld [vmem:[%s2127 + $0x10] sm:$0xff]
    %v2131 = vld [vmem:[%s2127 + $0x18] sm:$0xff]
    %s2132 = scalar_lea.vmem [#allocation19], 4
    %v2133 = vld [vmem:[%s2132] sm:$0x1]
    %v2135 = vlaneseq
    %v2136 = vshrl.u32 %v2135, 7
    %v2137 = vsub.s32 0, %v2136
    %v2138 = vrot.slane %v2133, %v2137
    %v2141 = vsel %vm905, %v2125, 0
    %v2144 = vsel %vm905, %v2126, 0
    %2146 = vmatprep.subr.mxu0 0.0
    %2147 = vmatpush1.msra.mxu0 0.0
    %2148 = vmatprep.subr.mxu0 0.0
    %2149 = vmatpush1.msra.mxu0 0.0
    %2150 = vmatprep.subr.mxu0 0.0
    %2151 = vmatpush1.msra.mxu0 0.0
    %2152 = vmatprep.subr.mxu0 0.0
    %2153 = vmatpush1.msra.mxu0 0.0
    %2154 = vmatprep.subr.mxu0 0.0
    %2155 = vmatpush1.msra.mxu0 0.0
    %2156 = vmatprep.subr.mxu0 0.0
    %2157 = vmatpush1.msra.mxu0 0.0
    %2158 = vmatprep.subr.mxu0 0.0
    %2159 = vmatpush1.msra.mxu0 0.0
    %2160 = vmatprep.subr.mxu0 0.0
    %2161 = vmatpush1.msra.mxu0 0.0
    %2162 = vmatprep.subr.mxu0 0.0
    %2163 = vmatpush1.msra.mxu0 0.0
    %2164 = vmatprep.subr.mxu0 0.0
    %2165 = vmatpush1.msra.mxu0 0.0
    %2166 = vmatprep.subr.mxu0 0.0
    %2167 = vmatpush1.msra.mxu0 0.0
    %2168 = vmatprep.subr.mxu0 0.0
    %2169 = vmatpush1.msra.mxu0 0.0
    %2170 = vmatprep.subr.mxu0 0.0
    %2171 = vmatpush1.msra.mxu0 %v2131
    %2172 = vmatprep.subr.mxu0 0.0
    %2173 = vmatpush1.msra.mxu0 %v2130
    %2174 = vmatprep.subr.mxu0 0.0
    %2175 = vmatpush1.msra.mxu0 %v2129
    %2176 = vmatprep.subr.mxu0 0.0
    %2177 = vmatpush1.msra.mxu0 %v2128
    %2178 = vmatprep.subr.mxu0 0.0
    %2179 = vmatpush2.msra.mxu0 0.0
    %2180 = vmatprep.subr.mxu0 0.0
    %2181 = vmatpush2.msra.mxu0 0.0
    %2182 = vmatprep.subr.mxu0 0.0
    %2183 = vmatpush2.msra.mxu0 0.0
    %2184 = vmatprep.subr.mxu0 0.0
    %2185 = vmatpush2.msra.mxu0 0.0
    %2186 = vmatprep.subr.mxu0 0.0
    %2187 = vmatpush2.msra.mxu0 0.0
    %2188 = vmatprep.subr.mxu0 0.0
    %2189 = vmatpush2.msra.mxu0 0.0
    %2190 = vmatprep.subr.mxu0 0.0
    %2191 = vmatpush2.msra.mxu0 0.0
    %2192 = vmatprep.subr.mxu0 0.0
    %2193 = vmatpush2.msra.mxu0 0.0
    %2194 = vmatprep.subr.mxu0 0.0
    %2195 = vmatpush2.msra.mxu0 0.0
    %2196 = vmatprep.subr.mxu0 0.0
    %2197 = vmatpush2.msra.mxu0 0.0
    %2198 = vmatprep.subr.mxu0 0.0
    %2199 = vmatpush2.msra.mxu0 0.0
    %2200 = vmatprep.subr.mxu0 0.0
    %2201 = vmatpush2.msra.mxu0 0.0
    %2202 = vmatprep.subr.mxu0 0.0
    %2203 = vmatpush2.msra.mxu0 0.0
    %2204 = vmatprep.subr.mxu0 0.0
    %2205 = vmatpush2.msra.mxu0 0.0
    %2206 = vmatprep.subr.mxu0 0.0
    %2207 = vmatpush2.msra.mxu0 0.0
    %2208 = vmatprep.subr.mxu0 0.0
    %2209 = vmatpush2.msra.mxu0 0.0
    %2210 = vmatprep.mubr.f32.mxu0 0.0
    %2211 = vmatmul.mubr.f32.gmra.mxu0 %v2141
    %v2212 = vpop.f32.mrf.mxu0
    %v2213 = vadd.f32 %v2138, %v2212
    %v2214 = vpop.f32.mrf.mxu0
    %2215 = vmatprep.mubr.f32.mxu0 0.0
    %2216 = vmatmul.mubr.f32.gmra.mxu0 %v2144
    %v2217 = vpop.f32.mrf.mxu0
    %v2218 = vadd.f32 %v2138, %v2217
    %v2219 = vpop.f32.mrf.mxu0
    %2220 = vdwg.mxu0
    %v2221 = vadd.f32 %v1937, %v2213
    %v2222 = vadd.f32 %v1938, %v2218
    %2223 = vst.msk [vmem:[#allocation20] sm:$0xff] %vm905, %v2221
    %2224 = vst.msk [vmem:[#allocation20 + $0x8] sm:$0xff] %vm905, %v2222
    %vm2225 = vcmask 24576
    %2226 = vst.msk [vmem:[#allocation21] sm:$0x1] %vm2225, %v1958
    %vm2227 = vcmask 0
    %2228 = vst.msk [vmem:[#allocation23] sm:$0x1] %vm2227, %v1974
    // Predicated region
    $region94: #{tpu_custom_call.1} parent=1 // pred_check
      _
    $region95: #{tpu_custom_call.1} parent=1 // pred_check_branch
      %2230 = sbr.rel (0) target = $region97
    $region96: #{tpu_custom_call.1} parent=1 // pred_region
      %s2232 = ssub.s32 256, 256
      %2233 = vsyncadd [#allocation4], %s2232
      %s2234 = sshll.u32 [#allocation20], 4
      %s2235 = int_to_ptr.vmem [resolvable:$true] %s2234
      %2240 = dma.vmem_to_hbm [thread:$0]  %s2235, 256, %s13, [#allocation4], 128, 128, 8
    $region97: #{tpu_custom_call.1} parent=1 // pred_fallthru
      _
    // Predicated region
    $region98: #{tpu_custom_call.1} parent=1 // pred_check
      _
    $region99: #{tpu_custom_call.1} parent=1 // pred_check_branch
      %2242 = sbr.rel (0) target = $region101
    $region100: #{tpu_custom_call.1} parent=1 // pred_region
      %s2244 = ssub.s32 16, 16
      %2245 = vsyncadd [#allocation22], %s2244
      %s2247 = sshll.u32 [#allocation21], 4
      %s2248 = int_to_ptr.vmem [resolvable:$true] %s2247
      %2250 = dma.vmem_to_hbm [thread:$0]  %s2248, 16, %s14, [#allocation22]
    $region101: #{tpu_custom_call.1} parent=1 // pred_fallthru
      _
    // Predicated region
    $region102: #{tpu_custom_call.1} parent=1 // pred_check
      _
    $region103: #{tpu_custom_call.1} parent=1 // pred_check_branch
      %2252 = sbr.rel (0) target = $region105
    $region104: #{tpu_custom_call.1} parent=1 // pred_region
      %s2254 = ssub.s32 16, 16
      %2255 = vsyncadd [#allocation22], %s2254
      %s2257 = sshll.u32 [#allocation23], 4
      %s2258 = int_to_ptr.vmem [resolvable:$true] %s2257
      %2260 = dma.vmem_to_hbm [thread:$0]  %s2258, 16, %s15, [#allocation22]
    $region105: #{tpu_custom_call.1} parent=1 // pred_fallthru
      _
    // Predicated region
    $region106: #{tpu_custom_call.1} parent=1 // pred_check
      _
    $region107: #{tpu_custom_call.1} parent=1 // pred_check_branch
      %2262 = sbr.rel (0) target = $region109
    $region108: #{tpu_custom_call.1} parent=1 // pred_region
      %2263 = dma.done [#allocation4], 256
    $region109: #{tpu_custom_call.1} parent=1 // pred_fallthru
      _
    // Predicated region
    $region110: #{tpu_custom_call.1} parent=1 // pred_check
      _
    $region111: #{tpu_custom_call.1} parent=1 // pred_check_branch
      %2265 = sbr.rel (0) target = $region113
    $region112: #{tpu_custom_call.1} parent=1 // pred_region
      %2266 = dma.done [#allocation22], 16
    $region113: #{tpu_custom_call.1} parent=1 // pred_fallthru
      _
    // Predicated region
    $region114: #{tpu_custom_call.1} parent=1 // pred_check
      _
    $region115: #{tpu_custom_call.1} parent=1 // pred_check_branch
      %2268 = sbr.rel (0) target = $region117
    $region116: #{tpu_custom_call.1} parent=1 // pred_region
      %2269 = dma.done [#allocation22], 16
    $region117: #{tpu_custom_call.1} parent=1 // pred_fallthru
      _
    %2270 = vsyncpa [#allocation3], 1
    %2271 = vsyncpa [#allocation15], 1
    %2272 = vsyncpa [#allocation18], 1
    %2273 = vsyncpa [#allocation4], 1
    %2274 = vsyncpa [#allocation22], 1
    %2275 = vsyncpa [#allocation5], 1
    %2276 = vsyncpa [#allocation8], 1
    %2277 = vsyncpa [#allocation12], 1
    %2278 = vsyncpa [#allocation6], 1

</llo_original>
